<compile_context>
chip_gen: v7x
topology: tpu7x:2x2x1
jax: 0.10.0
libtpu: 0.0.40
codegen_flags: <defaults>
</compile_context>

<pallas_src>
import functools
import math

import jax
import jax.numpy as jnp
from jax.experimental import pallas as pl
from jax.experimental.pallas import tpu as pltpu

# ----- hyper-parameters consistent with ModifiedViT.__init__ ------------------
IMAGE_SIZE = 16
PATCH_SIZE = 4
NUM_LAYERS = 2
NUM_HEADS = 2
HIDDEN_DIM = 32
MLP_DIM = 64
NUM_CLASSES = 10
IN_CHANNELS = 1          # conv_proj has in_channels=1 in the module
LN_EPS = 1e-6

NUM_PATCHES = (IMAGE_SIZE // PATCH_SIZE) ** 2
SEQ_LEN = NUM_PATCHES + 1
HEAD_DIM = HIDDEN_DIM // NUM_HEADS
PATCH_FEATS = IN_CHANNELS * PATCH_SIZE * PATCH_SIZE


# ----------------------------- in-kernel helpers ------------------------------
def _erf(x):
    # Abramowitz & Stegun 7.1.26 rational approximation of erf (|err| < 1.5e-7),
    # built only from ops with guaranteed Pallas/Mosaic lowerings.
    p = 0.3275911
    a1, a2, a3, a4, a5 = 0.254829592, -0.284496736, 1.421413741, -1.453152027, 1.061405429
    z = jnp.abs(x)
    t = 1.0 / (1.0 + p * z)
    poly = ((((a5 * t + a4) * t + a3) * t + a2) * t + a1) * t
    e = 1.0 - poly * jnp.exp(-z * z)
    return jnp.where(x >= 0, e, -e)


def _gelu(x):
    # exact (erf-based) GELU, matching torch.nn.GELU() default
    return 0.5 * x * (1.0 + _erf(x * (1.0 / math.sqrt(2.0))))


def _layernorm(x, w, b):
    mu = jnp.mean(x, axis=-1, keepdims=True)
    xc = x - mu
    var = jnp.mean(xc * xc, axis=-1, keepdims=True)
    return xc * jax.lax.rsqrt(var + LN_EPS) * w + b


# ------------------------------- fused kernel ---------------------------------
def _vit_fused_kernel(batch, patches_ref, conv_w_ref, base_ref, *refs):
    """Whole ModifiedViT forward for a batch, fully VMEM-resident.

    refs = [12 weight refs per encoder layer] * NUM_LAYERS
           + [ln_w, ln_b, head_w, head_b]      (final LN + head)
           + [out_ref]                         (output, (B, NUM_CLASSES))
           + [attn_ref]                        (VMEM scratch, (B*S, D))
    """
    layer_refs = refs[:12 * NUM_LAYERS]
    ln_w_ref, ln_b_ref, head_w_ref, head_b_ref, out_ref, attn_ref = refs[12 * NUM_LAYERS:]

    # --- patch embedding (conv_proj with kernel=stride=patch as one matmul) ---
    # base already holds: class_token + pos[0] on class rows, pos[1:] + conv_b
    # on patch rows; the class rows of `patches` are zero, so one fused
    # matmul+add builds the full (B*S, D) token slab.
    x = (jnp.dot(patches_ref[...], conv_w_ref[...], preferred_element_type=jnp.float32)
         + base_ref[...])                                            # (B*S, D)

    scale = 1.0 / math.sqrt(HEAD_DIM)

    # --- encoder layers (statically unrolled) ---------------------------------
    for l in range(NUM_LAYERS):
        (ln1_w, ln1_b, qkv_w, qkv_b, ow, ob,
         ln2_w, ln2_b, w1, b1, w2, b2) = layer_refs[l * 12:(l + 1) * 12]

        # pre-norm multi-head self-attention (nn.MultiheadAttention, batch_first)
        h = _layernorm(x, ln1_w[...], ln1_b[...])
        qkv = (jnp.dot(h, qkv_w[...], preferred_element_type=jnp.float32)
               + qkv_b[...])                                         # (B*S, 3D)

        # per-(batch, head) scores; head outputs collected into one VMEM slab
        for b in range(batch):
            r0 = b * SEQ_LEN
            for hh in range(NUM_HEADS):
                c0 = hh * HEAD_DIM
                q = qkv[r0:r0 + SEQ_LEN, c0:c0 + HEAD_DIM]
                k = qkv[r0:r0 + SEQ_LEN, HIDDEN_DIM + c0:HIDDEN_DIM + c0 + HEAD_DIM]
                v = qkv[r0:r0 + SEQ_LEN, 2 * HIDDEN_DIM + c0:2 * HIDDEN_DIM + c0 + HEAD_DIM]
                s = jax.lax.dot_general(q, k, (((1,), (1,)), ((), ())),
                                        preferred_element_type=jnp.float32) * scale
                s = s - jnp.max(s, axis=-1, keepdims=True)
                e = jnp.exp(s)
                p = e * pl.reciprocal(jnp.sum(e, axis=-1, keepdims=True), approx=True)
                attn_ref[r0:r0 + SEQ_LEN, c0:c0 + HEAD_DIM] = jnp.dot(
                    p, v, preferred_element_type=jnp.float32)        # (S, HEAD_DIM)

        # single out-projection over the whole batch slab + residual 1
        attn = (jnp.dot(attn_ref[...], ow[...], preferred_element_type=jnp.float32)
                + ob[...])
        x = x + attn

        # pre-norm MLP block + residual 2
        h2 = _layernorm(x, ln2_w[...], ln2_b[...])
        m = jnp.dot(h2, w1[...], preferred_element_type=jnp.float32) + b1[...]
        m = _gelu(m)
        m = jnp.dot(m, w2[...], preferred_element_type=jnp.float32) + b2[...]
        x = x + m

    # --- final LN + classification head, class-token rows only ----------------
    for b in range(batch):
        r0 = b * SEQ_LEN
        cls_b = x[r0:r0 + 1, :]                                      # (1, D)
        hcls = _layernorm(cls_b, ln_w_ref[...], ln_b_ref[...])
        out_ref[b:b + 1, :] = (jnp.dot(hcls, head_w_ref[...],
                                       preferred_element_type=jnp.float32)
                               + head_b_ref[...])


# --------------------------------- JAX glue ------------------------------------
def _extract_patches(x):
    # x: (B, C, H, W)  ->  (B, num_patches, C*P*P), flatten order (c, ph, pw)
    b, c, hgt, wid = x.shape
    p = PATCH_SIZE
    nh, nw = hgt // p, wid // p
    x = x.reshape(b, c, nh, p, nw, p).transpose(0, 2, 4, 1, 3, 5)
    return x.reshape(b, nh * nw, c * p * p)


def modified_vit_forward(x, params):
    """Pallas forward of ModifiedViT. x: (B, 1, IMAGE_SIZE, IMAGE_SIZE) float32 (NCHW)."""
    b = x.shape[0]
    bs = b * SEQ_LEN

    # layout-only prep (plain JAX glue): patch extraction, class-token row
    # insertion (as a zero patch row) and the precomputed additive base
    # (class_token + pos on class rows, pos + conv bias on patch rows).
    patches3 = _extract_patches(x)                                   # (B, NP, PF)
    zeros = jnp.zeros((b, 1, PATCH_FEATS), jnp.float32)
    patches_ext = jnp.concatenate([zeros, patches3], axis=1).reshape(bs, PATCH_FEATS)

    pos = params["pos_embedding"][0]                                 # (S, D)
    base_one = jnp.concatenate(
        [params["class_token"][0] + pos[0:1], pos[1:] + params["conv_b"]], axis=0)
    base = jnp.broadcast_to(base_one[None], (b, SEQ_LEN, HIDDEN_DIM)).reshape(bs, HIDDEN_DIM)

    # per-layer weights, with Q/K/V fused into one (D, 3D) matmul weight
    layer_args = []
    for lp in params["layers"]:
        qkv_w = jnp.concatenate([lp["q_w"], lp["k_w"], lp["v_w"]], axis=1)   # (D, 3D)
        qkv_b = jnp.concatenate([lp["q_b"], lp["k_b"], lp["v_b"]], axis=1)   # (1, 3D)
        layer_args += [lp["ln1_w"], lp["ln1_b"], qkv_w, qkv_b,
                       lp["out_w"], lp["out_b"], lp["ln2_w"], lp["ln2_b"],
                       lp["fc1_w"], lp["fc1_b"], lp["fc2_w"], lp["fc2_b"]]

    args = ([patches_ext, params["conv_w"], base] + layer_args
            + [params["ln_w"], params["ln_b"], params["head_w"], params["head_b"]])

    # TODO(synk): dropout / attention_dropout default to 0.0 (identity in eval);
    # no dropout is emitted.
    return pl.pallas_call(
        functools.partial(_vit_fused_kernel, b),
        out_shape=jax.ShapeDtypeStruct((b, NUM_CLASSES), jnp.float32),
        scratch_shapes=[pltpu.VMEM((bs, HIDDEN_DIM), jnp.float32)],
    )(*args)


# ---------------------------- parameter construction ---------------------------
def init_params(key):
    keys = iter(jax.random.split(key, 64))
    nk = lambda: next(keys)
    d, m = HIDDEN_DIM, MLP_DIM

    params = {
        # conv_proj expressed as a (C*P*P, D) matmul weight (std = sqrt(1/fan_in))
        "conv_w": jax.random.normal(nk(), (PATCH_FEATS, d), jnp.float32)
                  * math.sqrt(1.0 / PATCH_FEATS),
        "conv_b": jnp.zeros((1, d), jnp.float32),
        "class_token": jnp.zeros((1, 1, d), jnp.float32),        # zeros, as in __init__
        "pos_embedding": jax.random.normal(nk(), (1, SEQ_LEN, d), jnp.float32) * 0.02,
        "ln_w": jnp.ones((1, d), jnp.float32),                   # encoder.ln
        "ln_b": jnp.zeros((1, d), jnp.float32),
        # NOTE: the torch __init__ zero-initialises the classification head (output
        # would be identically zero); we use a small deterministic random head so
        # the kernel compute is observable.  representation_size=None branch.
        "head_w": jax.random.normal(nk(), (d, NUM_CLASSES), jnp.float32)
                  * math.sqrt(1.0 / d),
        "head_b": jnp.zeros((1, NUM_CLASSES), jnp.float32),
        "layers": [],
    }
    for _ in range(NUM_LAYERS):
        lp = {
            "ln1_w": jnp.ones((1, d), jnp.float32),
            "ln1_b": jnp.zeros((1, d), jnp.float32),
            "q_w": jax.random.normal(nk(), (d, d), jnp.float32) * math.sqrt(1.0 / d),
            "q_b": jax.random.normal(nk(), (1, d), jnp.float32) * 0.02,
            "k_w": jax.random.normal(nk(), (d, d), jnp.float32) * math.sqrt(1.0 / d),
            "k_b": jax.random.normal(nk(), (1, d), jnp.float32) * 0.02,
            "v_w": jax.random.normal(nk(), (d, d), jnp.float32) * math.sqrt(1.0 / d),
            "v_b": jax.random.normal(nk(), (1, d), jnp.float32) * 0.02,
            "out_w": jax.random.normal(nk(), (d, d), jnp.float32) * math.sqrt(1.0 / d),
            "out_b": jax.random.normal(nk(), (1, d), jnp.float32) * 0.02,
            "ln2_w": jnp.ones((1, d), jnp.float32),
            "ln2_b": jnp.zeros((1, d), jnp.float32),
            "fc1_w": jax.random.normal(nk(), (d, m), jnp.float32) * math.sqrt(1.0 / d),
            "fc1_b": jax.random.normal(nk(), (1, m), jnp.float32) * 0.02,
            "fc2_w": jax.random.normal(nk(), (m, d), jnp.float32) * math.sqrt(1.0 / m),
            "fc2_b": jax.random.normal(nk(), (1, d), jnp.float32) * 0.02,
        }
        params["layers"].append(lp)
    return params


# ------------------------------ pure-JAX reference ------------------------------
def _ref_ln(x, w, b):
    mu = jnp.mean(x, axis=-1, keepdims=True)
    var = jnp.mean((x - mu) ** 2, axis=-1, keepdims=True)
    return (x - mu) * jax.lax.rsqrt(var + LN_EPS) * w + b


def reference_forward(x, params):
    b = x.shape[0]
    patches = _extract_patches(x)                                # (B, Np, C*P*P)
    tok = patches @ params["conv_w"] + params["conv_b"][0]
    cls = jnp.broadcast_to(params["class_token"], (b, 1, HIDDEN_DIM))
    seq = jnp.concatenate([cls, tok], axis=1) + params["pos_embedding"]
    for lp in params["layers"]:
        h = _ref_ln(seq, lp["ln1_w"][0], lp["ln1_b"][0])
        q = h @ lp["q_w"] + lp["q_b"][0]
        k = h @ lp["k_w"] + lp["k_b"][0]
        v = h @ lp["v_w"] + lp["v_b"][0]
        qh = q.reshape(b, SEQ_LEN, NUM_HEADS, HEAD_DIM).transpose(0, 2, 1, 3)
        kh = k.reshape(b, SEQ_LEN, NUM_HEADS, HEAD_DIM).transpose(0, 2, 1, 3)
        vh = v.reshape(b, SEQ_LEN, NUM_HEADS, HEAD_DIM).transpose(0, 2, 1, 3)
        s = jnp.einsum("bhqd,bhkd->bhqk", qh, kh) / math.sqrt(HEAD_DIM)
        p = jax.nn.softmax(s, axis=-1)
        a = jnp.einsum("bhqk,bhkd->bhqd", p, vh).transpose(0, 2, 1, 3)
        a = a.reshape(b, SEQ_LEN, HIDDEN_DIM) @ lp["out_w"] + lp["out_b"][0]
        seq = seq + a
        h2 = _ref_ln(seq, lp["ln2_w"][0], lp["ln2_b"][0])
        mm = jax.nn.gelu(h2 @ lp["fc1_w"] + lp["fc1_b"][0], approximate=False)
        mm = mm @ lp["fc2_w"] + lp["fc2_b"][0]
        seq = seq + mm
    cls_out = _ref_ln(seq, params["ln_w"][0], params["ln_b"][0])[:, 0]
    return cls_out @ params["head_w"] + params["head_b"][0]


# ------------------------------------ main --------------------------------------
if __name__ == "__main__":
    key = jax.random.PRNGKey(0)
    k_param, k_input = jax.random.split(key)
    params = init_params(k_param)

    # NCHW image input with a single channel, matching conv_proj(in_channels=1)
    x = jax.random.normal(k_input, (2, IN_CHANNELS, IMAGE_SIZE, IMAGE_SIZE), jnp.float32)

    logits = jax.block_until_ready(modified_vit_forward(x, params))
    ref = jax.block_until_ready(reference_forward(x, params))

    assert logits.shape == (2, NUM_CLASSES), logits.shape
    # tolerance slightly relaxed vs. 1e-3 to accommodate the EUP approximate
    # reciprocal used for the softmax denominator (per perf feedback).
    assert jnp.allclose(logits, ref, atol=2e-3, rtol=2e-3), (
        f"mismatch: max abs diff {jnp.max(jnp.abs(logits - ref))}"
    )
    print("KERNEL_OK")
</pallas_src>

<mosaic_0001>
module attributes {stable_mosaic.version = 11 : i64} {
  func.func @_vit_fused_kernel(%arg0: memref<34x16xf32, #tpu.memory_space<vmem>>, %arg1: memref<16x32xf32, #tpu.memory_space<vmem>>, %arg2: memref<34x32xf32, #tpu.memory_space<vmem>>, %arg3: memref<1x32xf32, #tpu.memory_space<vmem>>, %arg4: memref<1x32xf32, #tpu.memory_space<vmem>>, %arg5: memref<32x96xf32, #tpu.memory_space<vmem>>, %arg6: memref<1x96xf32, #tpu.memory_space<vmem>>, %arg7: memref<32x32xf32, #tpu.memory_space<vmem>>, %arg8: memref<1x32xf32, #tpu.memory_space<vmem>>, %arg9: memref<1x32xf32, #tpu.memory_space<vmem>>, %arg10: memref<1x32xf32, #tpu.memory_space<vmem>>, %arg11: memref<32x64xf32, #tpu.memory_space<vmem>>, %arg12: memref<1x64xf32, #tpu.memory_space<vmem>>, %arg13: memref<64x32xf32, #tpu.memory_space<vmem>>, %arg14: memref<1x32xf32, #tpu.memory_space<vmem>>, %arg15: memref<1x32xf32, #tpu.memory_space<vmem>>, %arg16: memref<1x32xf32, #tpu.memory_space<vmem>>, %arg17: memref<32x96xf32, #tpu.memory_space<vmem>>, %arg18: memref<1x96xf32, #tpu.memory_space<vmem>>, %arg19: memref<32x32xf32, #tpu.memory_space<vmem>>, %arg20: memref<1x32xf32, #tpu.memory_space<vmem>>, %arg21: memref<1x32xf32, #tpu.memory_space<vmem>>, %arg22: memref<1x32xf32, #tpu.memory_space<vmem>>, %arg23: memref<32x64xf32, #tpu.memory_space<vmem>>, %arg24: memref<1x64xf32, #tpu.memory_space<vmem>>, %arg25: memref<64x32xf32, #tpu.memory_space<vmem>>, %arg26: memref<1x32xf32, #tpu.memory_space<vmem>>, %arg27: memref<1x32xf32, #tpu.memory_space<vmem>>, %arg28: memref<1x32xf32, #tpu.memory_space<vmem>>, %arg29: memref<32x10xf32, #tpu.memory_space<vmem>>, %arg30: memref<1x10xf32, #tpu.memory_space<vmem>>, %arg31: memref<2x10xf32, #tpu.memory_space<vmem>>, %arg32: memref<34x32xf32, #tpu.memory_space<vmem>>) attributes {dimension_semantics = [], scalar_prefetch = 0 : i64, scratch_operands = 1 : i64, tpu.core_type = #tpu.core_type<tc>} {
    %c0 = arith.constant 0 : index
    %c0_0 = arith.constant 0 : index
    %0 = vector.load %arg0[%c0, %c0_0] : memref<34x16xf32, #tpu.memory_space<vmem>>, vector<34x16xf32>
    %c0_1 = arith.constant 0 : index
    %c0_2 = arith.constant 0 : index
    %1 = vector.load %arg1[%c0_1, %c0_2] : memref<16x32xf32, #tpu.memory_space<vmem>>, vector<16x32xf32>
    %cst = arith.constant dense<0.000000e+00> : vector<34x32xf32>
    %2 = tpu.matmul %0, %1, %cst {dimension_numbers = #tpu.dot_dimension_numbers<[1], [0], [0], [1], [0, 0, 1, 1], [], []>} : vector<34x16xf32>, vector<16x32xf32>, vector<34x32xf32> -> vector<34x32xf32>
    %c0_3 = arith.constant 0 : index
    %c0_4 = arith.constant 0 : index
    %3 = vector.load %arg2[%c0_3, %c0_4] : memref<34x32xf32, #tpu.memory_space<vmem>>, vector<34x32xf32>
    %4 = arith.addf %2, %3 : vector<34x32xf32>
    %c0_5 = arith.constant 0 : index
    %c0_6 = arith.constant 0 : index
    %5 = vector.load %arg3[%c0_5, %c0_6] : memref<1x32xf32, #tpu.memory_space<vmem>>, vector<1x32xf32>
    %c0_7 = arith.constant 0 : index
    %c0_8 = arith.constant 0 : index
    %6 = vector.load %arg4[%c0_7, %c0_8] : memref<1x32xf32, #tpu.memory_space<vmem>>, vector<1x32xf32>
    %cst_9 = arith.constant dense<0.000000e+00> : vector<34xf32>
    %7 = vector.multi_reduction <add>, %4, %cst_9 [1] : vector<34x32xf32> to vector<34xf32>
    %8 = vector.shape_cast %7 : vector<34xf32> to vector<34x1xf32>
    %cst_10 = arith.constant 3.200000e+01 : f32
    %9 = vector.broadcast %cst_10 : f32 to vector<34x1xf32>
    %10 = arith.divf %8, %9 : vector<34x1xf32>
    %11 = vector.broadcast %10 : vector<34x1xf32> to vector<34x32xf32>
    %12 = arith.subf %4, %11 : vector<34x32xf32>
    %13 = arith.mulf %12, %12 : vector<34x32xf32>
    %cst_11 = arith.constant dense<0.000000e+00> : vector<34xf32>
    %14 = vector.multi_reduction <add>, %13, %cst_11 [1] : vector<34x32xf32> to vector<34xf32>
    %15 = vector.shape_cast %14 : vector<34xf32> to vector<34x1xf32>
    %cst_12 = arith.constant 3.200000e+01 : f32
    %16 = vector.broadcast %cst_12 : f32 to vector<34x1xf32>
    %17 = arith.divf %15, %16 : vector<34x1xf32>
    %cst_13 = arith.constant 9.99999997E-7 : f32
    %18 = vector.broadcast %cst_13 : f32 to vector<34x1xf32>
    %19 = arith.addf %17, %18 : vector<34x1xf32>
    %20 = math.rsqrt %19 : vector<34x1xf32>
    %21 = vector.broadcast %20 : vector<34x1xf32> to vector<34x32xf32>
    %22 = arith.mulf %12, %21 : vector<34x32xf32>
    %23 = vector.broadcast %5 : vector<1x32xf32> to vector<34x32xf32>
    %24 = arith.mulf %22, %23 : vector<34x32xf32>
    %25 = vector.broadcast %6 : vector<1x32xf32> to vector<34x32xf32>
    %26 = arith.addf %24, %25 : vector<34x32xf32>
    %c0_14 = arith.constant 0 : index
    %c0_15 = arith.constant 0 : index
    %27 = vector.load %arg5[%c0_14, %c0_15] : memref<32x96xf32, #tpu.memory_space<vmem>>, vector<32x96xf32>
    %cst_16 = arith.constant dense<0.000000e+00> : vector<34x96xf32>
    %28 = tpu.matmul %26, %27, %cst_16 {dimension_numbers = #tpu.dot_dimension_numbers<[1], [0], [0], [1], [0, 0, 1, 1], [], []>} : vector<34x32xf32>, vector<32x96xf32>, vector<34x96xf32> -> vector<34x96xf32>
    %c0_17 = arith.constant 0 : index
    %c0_18 = arith.constant 0 : index
    %29 = vector.load %arg6[%c0_17, %c0_18] : memref<1x96xf32, #tpu.memory_space<vmem>>, vector<1x96xf32>
    %30 = vector.broadcast %29 : vector<1x96xf32> to vector<34x96xf32>
    %31 = arith.addf %28, %30 : vector<34x96xf32>
    %32 = vector.extract_strided_slice %31 {offsets = [0, 0], sizes = [17, 16], strides = [1, 1]} : vector<34x96xf32> to vector<17x16xf32>
    %33 = vector.extract_strided_slice %31 {offsets = [0, 32], sizes = [17, 16], strides = [1, 1]} : vector<34x96xf32> to vector<17x16xf32>
    %34 = vector.extract_strided_slice %31 {offsets = [0, 64], sizes = [17, 16], strides = [1, 1]} : vector<34x96xf32> to vector<17x16xf32>
    %cst_19 = arith.constant dense<0.000000e+00> : vector<17x17xf32>
    %35 = tpu.matmul %32, %33, %cst_19 {dimension_numbers = #tpu.dot_dimension_numbers<[1], [1], [0], [0], [0, 0, 1, 0], [], []>} : vector<17x16xf32>, vector<17x16xf32>, vector<17x17xf32> -> vector<17x17xf32>
    %cst_20 = arith.constant 2.500000e-01 : f32
    %36 = vector.broadcast %cst_20 : f32 to vector<17x17xf32>
    %37 = arith.mulf %35, %36 : vector<17x17xf32>
    %cst_21 = arith.constant dense<0xFF800000> : vector<17xf32>
    %38 = vector.multi_reduction <maximumf>, %37, %cst_21 [1] : vector<17x17xf32> to vector<17xf32>
    %39 = vector.shape_cast %38 : vector<17xf32> to vector<17x1xf32>
    %40 = vector.broadcast %39 : vector<17x1xf32> to vector<17x17xf32>
    %41 = arith.subf %37, %40 : vector<17x17xf32>
    %42 = math.exp %41 : vector<17x17xf32>
    %cst_22 = arith.constant dense<0.000000e+00> : vector<17xf32>
    %43 = vector.multi_reduction <add>, %42, %cst_22 [1] : vector<17x17xf32> to vector<17xf32>
    %44 = vector.shape_cast %43 : vector<17xf32> to vector<17x1xf32>
    %45 = tpu.reciprocal %44 {approx = true} : vector<17x1xf32> -> vector<17x1xf32>
    %46 = vector.broadcast %45 : vector<17x1xf32> to vector<17x17xf32>
    %47 = arith.mulf %42, %46 : vector<17x17xf32>
    %cst_23 = arith.constant dense<0.000000e+00> : vector<17x16xf32>
    %48 = tpu.matmul %47, %34, %cst_23 {dimension_numbers = #tpu.dot_dimension_numbers<[1], [0], [0], [1], [0, 0, 1, 1], [], []>} : vector<17x17xf32>, vector<17x16xf32>, vector<17x16xf32> -> vector<17x16xf32>
    %c0_24 = arith.constant 0 : index
    %c0_25 = arith.constant 0 : index
    %49 = vector.load %arg32[%c0_24, %c0_25] : memref<34x32xf32, #tpu.memory_space<vmem>>, vector<17x16xf32>
    tpu.vector_store %arg32[%c0_24, %c0_25], %48 {strides = array<i32>} : memref<34x32xf32, #tpu.memory_space<vmem>>, vector<17x16xf32>,
    %50 = vector.extract_strided_slice %31 {offsets = [0, 16], sizes = [17, 16], strides = [1, 1]} : vector<34x96xf32> to vector<17x16xf32>
    %51 = vector.extract_strided_slice %31 {offsets = [0, 48], sizes = [17, 16], strides = [1, 1]} : vector<34x96xf32> to vector<17x16xf32>
    %52 = vector.extract_strided_slice %31 {offsets = [0, 80], sizes = [17, 16], strides = [1, 1]} : vector<34x96xf32> to vector<17x16xf32>
    %cst_26 = arith.constant dense<0.000000e+00> : vector<17x17xf32>
    %53 = tpu.matmul %50, %51, %cst_26 {dimension_numbers = #tpu.dot_dimension_numbers<[1], [1], [0], [0], [0, 0, 1, 0], [], []>} : vector<17x16xf32>, vector<17x16xf32>, vector<17x17xf32> -> vector<17x17xf32>
    %cst_27 = arith.constant 2.500000e-01 : f32
    %54 = vector.broadcast %cst_27 : f32 to vector<17x17xf32>
    %55 = arith.mulf %53, %54 : vector<17x17xf32>
    %cst_28 = arith.constant dense<0xFF800000> : vector<17xf32>
    %56 = vector.multi_reduction <maximumf>, %55, %cst_28 [1] : vector<17x17xf32> to vector<17xf32>
    %57 = vector.shape_cast %56 : vector<17xf32> to vector<17x1xf32>
    %58 = vector.broadcast %57 : vector<17x1xf32> to vector<17x17xf32>
    %59 = arith.subf %55, %58 : vector<17x17xf32>
    %60 = math.exp %59 : vector<17x17xf32>
    %cst_29 = arith.constant dense<0.000000e+00> : vector<17xf32>
    %61 = vector.multi_reduction <add>, %60, %cst_29 [1] : vector<17x17xf32> to vector<17xf32>
    %62 = vector.shape_cast %61 : vector<17xf32> to vector<17x1xf32>
    %63 = tpu.reciprocal %62 {approx = true} : vector<17x1xf32> -> vector<17x1xf32>
    %64 = vector.broadcast %63 : vector<17x1xf32> to vector<17x17xf32>
    %65 = arith.mulf %60, %64 : vector<17x17xf32>
    %cst_30 = arith.constant dense<0.000000e+00> : vector<17x16xf32>
    %66 = tpu.matmul %65, %52, %cst_30 {dimension_numbers = #tpu.dot_dimension_numbers<[1], [0], [0], [1], [0, 0, 1, 1], [], []>} : vector<17x17xf32>, vector<17x16xf32>, vector<17x16xf32> -> vector<17x16xf32>
    %c0_31 = arith.constant 0 : index
    %c16 = arith.constant 16 : index
    %67 = vector.load %arg32[%c0_31, %c16] : memref<34x32xf32, #tpu.memory_space<vmem>>, vector<17x16xf32>
    tpu.vector_store %arg32[%c0_31, %c16], %66 {strides = array<i32>} : memref<34x32xf32, #tpu.memory_space<vmem>>, vector<17x16xf32>,
    %68 = vector.extract_strided_slice %31 {offsets = [17, 0], sizes = [17, 16], strides = [1, 1]} : vector<34x96xf32> to vector<17x16xf32>
    %69 = vector.extract_strided_slice %31 {offsets = [17, 32], sizes = [17, 16], strides = [1, 1]} : vector<34x96xf32> to vector<17x16xf32>
    %70 = vector.extract_strided_slice %31 {offsets = [17, 64], sizes = [17, 16], strides = [1, 1]} : vector<34x96xf32> to vector<17x16xf32>
    %cst_32 = arith.constant dense<0.000000e+00> : vector<17x17xf32>
    %71 = tpu.matmul %68, %69, %cst_32 {dimension_numbers = #tpu.dot_dimension_numbers<[1], [1], [0], [0], [0, 0, 1, 0], [], []>} : vector<17x16xf32>, vector<17x16xf32>, vector<17x17xf32> -> vector<17x17xf32>
    %cst_33 = arith.constant 2.500000e-01 : f32
    %72 = vector.broadcast %cst_33 : f32 to vector<17x17xf32>
    %73 = arith.mulf %71, %72 : vector<17x17xf32>
    %cst_34 = arith.constant dense<0xFF800000> : vector<17xf32>
    %74 = vector.multi_reduction <maximumf>, %73, %cst_34 [1] : vector<17x17xf32> to vector<17xf32>
    %75 = vector.shape_cast %74 : vector<17xf32> to vector<17x1xf32>
    %76 = vector.broadcast %75 : vector<17x1xf32> to vector<17x17xf32>
    %77 = arith.subf %73, %76 : vector<17x17xf32>
    %78 = math.exp %77 : vector<17x17xf32>
    %cst_35 = arith.constant dense<0.000000e+00> : vector<17xf32>
    %79 = vector.multi_reduction <add>, %78, %cst_35 [1] : vector<17x17xf32> to vector<17xf32>
    %80 = vector.shape_cast %79 : vector<17xf32> to vector<17x1xf32>
    %81 = tpu.reciprocal %80 {approx = true} : vector<17x1xf32> -> vector<17x1xf32>
    %82 = vector.broadcast %81 : vector<17x1xf32> to vector<17x17xf32>
    %83 = arith.mulf %78, %82 : vector<17x17xf32>
    %cst_36 = arith.constant dense<0.000000e+00> : vector<17x16xf32>
    %84 = tpu.matmul %83, %70, %cst_36 {dimension_numbers = #tpu.dot_dimension_numbers<[1], [0], [0], [1], [0, 0, 1, 1], [], []>} : vector<17x17xf32>, vector<17x16xf32>, vector<17x16xf32> -> vector<17x16xf32>
    %c17 = arith.constant 17 : index
    %c0_37 = arith.constant 0 : index
    %85 = vector.load %arg32[%c17, %c0_37] : memref<34x32xf32, #tpu.memory_space<vmem>>, vector<17x16xf32>
    tpu.vector_store %arg32[%c17, %c0_37], %84 {strides = array<i32>} : memref<34x32xf32, #tpu.memory_space<vmem>>, vector<17x16xf32>,
    %86 = vector.extract_strided_slice %31 {offsets = [17, 16], sizes = [17, 16], strides = [1, 1]} : vector<34x96xf32> to vector<17x16xf32>
    %87 = vector.extract_strided_slice %31 {offsets = [17, 48], sizes = [17, 16], strides = [1, 1]} : vector<34x96xf32> to vector<17x16xf32>
    %88 = vector.extract_strided_slice %31 {offsets = [17, 80], sizes = [17, 16], strides = [1, 1]} : vector<34x96xf32> to vector<17x16xf32>
    %cst_38 = arith.constant dense<0.000000e+00> : vector<17x17xf32>
    %89 = tpu.matmul %86, %87, %cst_38 {dimension_numbers = #tpu.dot_dimension_numbers<[1], [1], [0], [0], [0, 0, 1, 0], [], []>} : vector<17x16xf32>, vector<17x16xf32>, vector<17x17xf32> -> vector<17x17xf32>
    %cst_39 = arith.constant 2.500000e-01 : f32
    %90 = vector.broadcast %cst_39 : f32 to vector<17x17xf32>
    %91 = arith.mulf %89, %90 : vector<17x17xf32>
    %cst_40 = arith.constant dense<0xFF800000> : vector<17xf32>
    %92 = vector.multi_reduction <maximumf>, %91, %cst_40 [1] : vector<17x17xf32> to vector<17xf32>
    %93 = vector.shape_cast %92 : vector<17xf32> to vector<17x1xf32>
    %94 = vector.broadcast %93 : vector<17x1xf32> to vector<17x17xf32>
    %95 = arith.subf %91, %94 : vector<17x17xf32>
    %96 = math.exp %95 : vector<17x17xf32>
    %cst_41 = arith.constant dense<0.000000e+00> : vector<17xf32>
    %97 = vector.multi_reduction <add>, %96, %cst_41 [1] : vector<17x17xf32> to vector<17xf32>
    %98 = vector.shape_cast %97 : vector<17xf32> to vector<17x1xf32>
    %99 = tpu.reciprocal %98 {approx = true} : vector<17x1xf32> -> vector<17x1xf32>
    %100 = vector.broadcast %99 : vector<17x1xf32> to vector<17x17xf32>
    %101 = arith.mulf %96, %100 : vector<17x17xf32>
    %cst_42 = arith.constant dense<0.000000e+00> : vector<17x16xf32>
    %102 = tpu.matmul %101, %88, %cst_42 {dimension_numbers = #tpu.dot_dimension_numbers<[1], [0], [0], [1], [0, 0, 1, 1], [], []>} : vector<17x17xf32>, vector<17x16xf32>, vector<17x16xf32> -> vector<17x16xf32>
    %c17_43 = arith.constant 17 : index
    %c16_44 = arith.constant 16 : index
    %103 = vector.load %arg32[%c17_43, %c16_44] : memref<34x32xf32, #tpu.memory_space<vmem>>, vector<17x16xf32>
    tpu.vector_store %arg32[%c17_43, %c16_44], %102 {strides = array<i32>} : memref<34x32xf32, #tpu.memory_space<vmem>>, vector<17x16xf32>,
    %c0_45 = arith.constant 0 : index
    %c0_46 = arith.constant 0 : index
    %104 = vector.load %arg32[%c0_45, %c0_46] : memref<34x32xf32, #tpu.memory_space<vmem>>, vector<34x32xf32>
    %c0_47 = arith.constant 0 : index
    %c0_48 = arith.constant 0 : index
    %105 = vector.load %arg7[%c0_47, %c0_48] : memref<32x32xf32, #tpu.memory_space<vmem>>, vector<32x32xf32>
    %cst_49 = arith.constant dense<0.000000e+00> : vector<34x32xf32>
    %106 = tpu.matmul %104, %105, %cst_49 {dimension_numbers = #tpu.dot_dimension_numbers<[1], [0], [0], [1], [0, 0, 1, 1], [], []>} : vector<34x32xf32>, vector<32x32xf32>, vector<34x32xf32> -> vector<34x32xf32>
    %c0_50 = arith.constant 0 : index
    %c0_51 = arith.constant 0 : index
    %107 = vector.load %arg8[%c0_50, %c0_51] : memref<1x32xf32, #tpu.memory_space<vmem>>, vector<1x32xf32>
    %108 = vector.broadcast %107 : vector<1x32xf32> to vector<34x32xf32>
    %109 = arith.addf %106, %108 : vector<34x32xf32>
    %110 = arith.addf %4, %109 : vector<34x32xf32>
    %c0_52 = arith.constant 0 : index
    %c0_53 = arith.constant 0 : index
    %111 = vector.load %arg9[%c0_52, %c0_53] : memref<1x32xf32, #tpu.memory_space<vmem>>, vector<1x32xf32>
    %c0_54 = arith.constant 0 : index
    %c0_55 = arith.constant 0 : index
    %112 = vector.load %arg10[%c0_54, %c0_55] : memref<1x32xf32, #tpu.memory_space<vmem>>, vector<1x32xf32>
    %cst_56 = arith.constant dense<0.000000e+00> : vector<34xf32>
    %113 = vector.multi_reduction <add>, %110, %cst_56 [1] : vector<34x32xf32> to vector<34xf32>
    %114 = vector.shape_cast %113 : vector<34xf32> to vector<34x1xf32>
    %cst_57 = arith.constant 3.200000e+01 : f32
    %115 = vector.broadcast %cst_57 : f32 to vector<34x1xf32>
    %116 = arith.divf %114, %115 : vector<34x1xf32>
    %117 = vector.broadcast %116 : vector<34x1xf32> to vector<34x32xf32>
    %118 = arith.subf %110, %117 : vector<34x32xf32>
    %119 = arith.mulf %118, %118 : vector<34x32xf32>
    %cst_58 = arith.constant dense<0.000000e+00> : vector<34xf32>
    %120 = vector.multi_reduction <add>, %119, %cst_58 [1] : vector<34x32xf32> to vector<34xf32>
    %121 = vector.shape_cast %120 : vector<34xf32> to vector<34x1xf32>
    %cst_59 = arith.constant 3.200000e+01 : f32
    %122 = vector.broadcast %cst_59 : f32 to vector<34x1xf32>
    %123 = arith.divf %121, %122 : vector<34x1xf32>
    %cst_60 = arith.constant 9.99999997E-7 : f32
    %124 = vector.broadcast %cst_60 : f32 to vector<34x1xf32>
    %125 = arith.addf %123, %124 : vector<34x1xf32>
    %126 = math.rsqrt %125 : vector<34x1xf32>
    %127 = vector.broadcast %126 : vector<34x1xf32> to vector<34x32xf32>
    %128 = arith.mulf %118, %127 : vector<34x32xf32>
    %129 = vector.broadcast %111 : vector<1x32xf32> to vector<34x32xf32>
    %130 = arith.mulf %128, %129 : vector<34x32xf32>
    %131 = vector.broadcast %112 : vector<1x32xf32> to vector<34x32xf32>
    %132 = arith.addf %130, %131 : vector<34x32xf32>
    %c0_61 = arith.constant 0 : index
    %c0_62 = arith.constant 0 : index
    %133 = vector.load %arg11[%c0_61, %c0_62] : memref<32x64xf32, #tpu.memory_space<vmem>>, vector<32x64xf32>
    %cst_63 = arith.constant dense<0.000000e+00> : vector<34x64xf32>
    %134 = tpu.matmul %132, %133, %cst_63 {dimension_numbers = #tpu.dot_dimension_numbers<[1], [0], [0], [1], [0, 0, 1, 1], [], []>} : vector<34x32xf32>, vector<32x64xf32>, vector<34x64xf32> -> vector<34x64xf32>
    %c0_64 = arith.constant 0 : index
    %c0_65 = arith.constant 0 : index
    %135 = vector.load %arg12[%c0_64, %c0_65] : memref<1x64xf32, #tpu.memory_space<vmem>>, vector<1x64xf32>
    %136 = vector.broadcast %135 : vector<1x64xf32> to vector<34x64xf32>
    %137 = arith.addf %134, %136 : vector<34x64xf32>
    %cst_66 = arith.constant 5.000000e-01 : f32
    %138 = vector.broadcast %cst_66 : f32 to vector<34x64xf32>
    %139 = arith.mulf %138, %137 : vector<34x64xf32>
    %cst_67 = arith.constant 0.707106769 : f32
    %140 = vector.broadcast %cst_67 : f32 to vector<34x64xf32>
    %141 = arith.mulf %137, %140 : vector<34x64xf32>
    %142 = math.absf %141 : vector<34x64xf32>
    %cst_68 = arith.constant 0.327591091 : f32
    %143 = vector.broadcast %cst_68 : f32 to vector<34x64xf32>
    %144 = arith.mulf %143, %142 : vector<34x64xf32>
    %cst_69 = arith.constant 1.000000e+00 : f32
    %145 = vector.broadcast %cst_69 : f32 to vector<34x64xf32>
    %146 = arith.addf %145, %144 : vector<34x64xf32>
    %cst_70 = arith.constant 1.000000e+00 : f32
    %147 = vector.broadcast %cst_70 : f32 to vector<34x64xf32>
    %148 = arith.divf %147, %146 : vector<34x64xf32>
    %cst_71 = arith.constant 1.06140542 : f32
    %149 = vector.broadcast %cst_71 : f32 to vector<34x64xf32>
    %150 = arith.mulf %149, %148 : vector<34x64xf32>
    %cst_72 = arith.constant -1.45315206 : f32
    %151 = vector.broadcast %cst_72 : f32 to vector<34x64xf32>
    %152 = arith.addf %150, %151 : vector<34x64xf32>
    %153 = arith.mulf %152, %148 : vector<34x64xf32>
    %cst_73 = arith.constant 1.42141378 : f32
    %154 = vector.broadcast %cst_73 : f32 to vector<34x64xf32>
    %155 = arith.addf %153, %154 : vector<34x64xf32>
    %156 = arith.mulf %155, %148 : vector<34x64xf32>
    %cst_74 = arith.constant -0.284496725 : f32
    %157 = vector.broadcast %cst_74 : f32 to vector<34x64xf32>
    %158 = arith.addf %156, %157 : vector<34x64xf32>
    %159 = arith.mulf %158, %148 : vector<34x64xf32>
    %cst_75 = arith.constant 0.254829586 : f32
    %160 = vector.broadcast %cst_75 : f32 to vector<34x64xf32>
    %161 = arith.addf %159, %160 : vector<34x64xf32>
    %162 = arith.mulf %161, %148 : vector<34x64xf32>
    %cst_76 = arith.constant 0.000000e+00 : f32
    %163 = vector.broadcast %cst_76 : f32 to vector<34x64xf32>
    %164 = arith.subf %163, %142 : vector<34x64xf32>
    %165 = arith.mulf %164, %142 : vector<34x64xf32>
    %166 = math.exp %165 : vector<34x64xf32>
    %167 = arith.mulf %162, %166 : vector<34x64xf32>
    %cst_77 = arith.constant 1.000000e+00 : f32
    %168 = vector.broadcast %cst_77 : f32 to vector<34x64xf32>
    %169 = arith.subf %168, %167 : vector<34x64xf32>
    %cst_78 = arith.constant 0.000000e+00 : f32
    %170 = vector.broadcast %cst_78 : f32 to vector<34x64xf32>
    %171 = arith.cmpf oge, %141, %170 : vector<34x64xf32>
    %cst_79 = arith.constant 0.000000e+00 : f32
    %172 = vector.broadcast %cst_79 : f32 to vector<34x64xf32>
    %173 = arith.subf %172, %169 : vector<34x64xf32>
    %174 = arith.select %171, %169, %173 : vector<34x64xi1>, vector<34x64xf32>
    %cst_80 = arith.constant 1.000000e+00 : f32
    %175 = vector.broadcast %cst_80 : f32 to vector<34x64xf32>
    %176 = arith.addf %175, %174 : vector<34x64xf32>
    %177 = arith.mulf %139, %176 : vector<34x64xf32>
    %c0_81 = arith.constant 0 : index
    %c0_82 = arith.constant 0 : index
    %178 = vector.load %arg13[%c0_81, %c0_82] : memref<64x32xf32, #tpu.memory_space<vmem>>, vector<64x32xf32>
    %cst_83 = arith.constant dense<0.000000e+00> : vector<34x32xf32>
    %179 = tpu.matmul %177, %178, %cst_83 {dimension_numbers = #tpu.dot_dimension_numbers<[1], [0], [0], [1], [0, 0, 1, 1], [], []>} : vector<34x64xf32>, vector<64x32xf32>, vector<34x32xf32> -> vector<34x32xf32>
    %c0_84 = arith.constant 0 : index
    %c0_85 = arith.constant 0 : index
    %180 = vector.load %arg14[%c0_84, %c0_85] : memref<1x32xf32, #tpu.memory_space<vmem>>, vector<1x32xf32>
    %181 = vector.broadcast %180 : vector<1x32xf32> to vector<34x32xf32>
    %182 = arith.addf %179, %181 : vector<34x32xf32>
    %183 = arith.addf %110, %182 : vector<34x32xf32>
    %c0_86 = arith.constant 0 : index
    %c0_87 = arith.constant 0 : index
    %184 = vector.load %arg15[%c0_86, %c0_87] : memref<1x32xf32, #tpu.memory_space<vmem>>, vector<1x32xf32>
    %c0_88 = arith.constant 0 : index
    %c0_89 = arith.constant 0 : index
    %185 = vector.load %arg16[%c0_88, %c0_89] : memref<1x32xf32, #tpu.memory_space<vmem>>, vector<1x32xf32>
    %cst_90 = arith.constant dense<0.000000e+00> : vector<34xf32>
    %186 = vector.multi_reduction <add>, %183, %cst_90 [1] : vector<34x32xf32> to vector<34xf32>
    %187 = vector.shape_cast %186 : vector<34xf32> to vector<34x1xf32>
    %cst_91 = arith.constant 3.200000e+01 : f32
    %188 = vector.broadcast %cst_91 : f32 to vector<34x1xf32>
    %189 = arith.divf %187, %188 : vector<34x1xf32>
    %190 = vector.broadcast %189 : vector<34x1xf32> to vector<34x32xf32>
    %191 = arith.subf %183, %190 : vector<34x32xf32>
    %192 = arith.mulf %191, %191 : vector<34x32xf32>
    %cst_92 = arith.constant dense<0.000000e+00> : vector<34xf32>
    %193 = vector.multi_reduction <add>, %192, %cst_92 [1] : vector<34x32xf32> to vector<34xf32>
    %194 = vector.shape_cast %193 : vector<34xf32> to vector<34x1xf32>
    %cst_93 = arith.constant 3.200000e+01 : f32
    %195 = vector.broadcast %cst_93 : f32 to vector<34x1xf32>
    %196 = arith.divf %194, %195 : vector<34x1xf32>
    %cst_94 = arith.constant 9.99999997E-7 : f32
    %197 = vector.broadcast %cst_94 : f32 to vector<34x1xf32>
    %198 = arith.addf %196, %197 : vector<34x1xf32>
    %199 = math.rsqrt %198 : vector<34x1xf32>
    %200 = vector.broadcast %199 : vector<34x1xf32> to vector<34x32xf32>
    %201 = arith.mulf %191, %200 : vector<34x32xf32>
    %202 = vector.broadcast %184 : vector<1x32xf32> to vector<34x32xf32>
    %203 = arith.mulf %201, %202 : vector<34x32xf32>
    %204 = vector.broadcast %185 : vector<1x32xf32> to vector<34x32xf32>
    %205 = arith.addf %203, %204 : vector<34x32xf32>
    %c0_95 = arith.constant 0 : index
    %c0_96 = arith.constant 0 : index
    %206 = vector.load %arg17[%c0_95, %c0_96] : memref<32x96xf32, #tpu.memory_space<vmem>>, vector<32x96xf32>
    %cst_97 = arith.constant dense<0.000000e+00> : vector<34x96xf32>
    %207 = tpu.matmul %205, %206, %cst_97 {dimension_numbers = #tpu.dot_dimension_numbers<[1], [0], [0], [1], [0, 0, 1, 1], [], []>} : vector<34x32xf32>, vector<32x96xf32>, vector<34x96xf32> -> vector<34x96xf32>
    %c0_98 = arith.constant 0 : index
    %c0_99 = arith.constant 0 : index
    %208 = vector.load %arg18[%c0_98, %c0_99] : memref<1x96xf32, #tpu.memory_space<vmem>>, vector<1x96xf32>
    %209 = vector.broadcast %208 : vector<1x96xf32> to vector<34x96xf32>
    %210 = arith.addf %207, %209 : vector<34x96xf32>
    %211 = vector.extract_strided_slice %210 {offsets = [0, 0], sizes = [17, 16], strides = [1, 1]} : vector<34x96xf32> to vector<17x16xf32>
    %212 = vector.extract_strided_slice %210 {offsets = [0, 32], sizes = [17, 16], strides = [1, 1]} : vector<34x96xf32> to vector<17x16xf32>
    %213 = vector.extract_strided_slice %210 {offsets = [0, 64], sizes = [17, 16], strides = [1, 1]} : vector<34x96xf32> to vector<17x16xf32>
    %cst_100 = arith.constant dense<0.000000e+00> : vector<17x17xf32>
    %214 = tpu.matmul %211, %212, %cst_100 {dimension_numbers = #tpu.dot_dimension_numbers<[1], [1], [0], [0], [0, 0, 1, 0], [], []>} : vector<17x16xf32>, vector<17x16xf32>, vector<17x17xf32> -> vector<17x17xf32>
    %cst_101 = arith.constant 2.500000e-01 : f32
    %215 = vector.broadcast %cst_101 : f32 to vector<17x17xf32>
    %216 = arith.mulf %214, %215 : vector<17x17xf32>
    %cst_102 = arith.constant dense<0xFF800000> : vector<17xf32>
    %217 = vector.multi_reduction <maximumf>, %216, %cst_102 [1] : vector<17x17xf32> to vector<17xf32>
    %218 = vector.shape_cast %217 : vector<17xf32> to vector<17x1xf32>
    %219 = vector.broadcast %218 : vector<17x1xf32> to vector<17x17xf32>
    %220 = arith.subf %216, %219 : vector<17x17xf32>
    %221 = math.exp %220 : vector<17x17xf32>
    %cst_103 = arith.constant dense<0.000000e+00> : vector<17xf32>
    %222 = vector.multi_reduction <add>, %221, %cst_103 [1] : vector<17x17xf32> to vector<17xf32>
    %223 = vector.shape_cast %222 : vector<17xf32> to vector<17x1xf32>
    %224 = tpu.reciprocal %223 {approx = true} : vector<17x1xf32> -> vector<17x1xf32>
    %225 = vector.broadcast %224 : vector<17x1xf32> to vector<17x17xf32>
    %226 = arith.mulf %221, %225 : vector<17x17xf32>
    %cst_104 = arith.constant dense<0.000000e+00> : vector<17x16xf32>
    %227 = tpu.matmul %226, %213, %cst_104 {dimension_numbers = #tpu.dot_dimension_numbers<[1], [0], [0], [1], [0, 0, 1, 1], [], []>} : vector<17x17xf32>, vector<17x16xf32>, vector<17x16xf32> -> vector<17x16xf32>
    %c0_105 = arith.constant 0 : index
    %c0_106 = arith.constant 0 : index
    %228 = vector.load %arg32[%c0_105, %c0_106] : memref<34x32xf32, #tpu.memory_space<vmem>>, vector<17x16xf32>
    tpu.vector_store %arg32[%c0_105, %c0_106], %227 {strides = array<i32>} : memref<34x32xf32, #tpu.memory_space<vmem>>, vector<17x16xf32>,
    %229 = vector.extract_strided_slice %210 {offsets = [0, 16], sizes = [17, 16], strides = [1, 1]} : vector<34x96xf32> to vector<17x16xf32>
    %230 = vector.extract_strided_slice %210 {offsets = [0, 48], sizes = [17, 16], strides = [1, 1]} : vector<34x96xf32> to vector<17x16xf32>
    %231 = vector.extract_strided_slice %210 {offsets = [0, 80], sizes = [17, 16], strides = [1, 1]} : vector<34x96xf32> to vector<17x16xf32>
    %cst_107 = arith.constant dense<0.000000e+00> : vector<17x17xf32>
    %232 = tpu.matmul %229, %230, %cst_107 {dimension_numbers = #tpu.dot_dimension_numbers<[1], [1], [0], [0], [0, 0, 1, 0], [], []>} : vector<17x16xf32>, vector<17x16xf32>, vector<17x17xf32> -> vector<17x17xf32>
    %cst_108 = arith.constant 2.500000e-01 : f32
    %233 = vector.broadcast %cst_108 : f32 to vector<17x17xf32>
    %234 = arith.mulf %232, %233 : vector<17x17xf32>
    %cst_109 = arith.constant dense<0xFF800000> : vector<17xf32>
    %235 = vector.multi_reduction <maximumf>, %234, %cst_109 [1] : vector<17x17xf32> to vector<17xf32>
    %236 = vector.shape_cast %235 : vector<17xf32> to vector<17x1xf32>
    %237 = vector.broadcast %236 : vector<17x1xf32> to vector<17x17xf32>
    %238 = arith.subf %234, %237 : vector<17x17xf32>
    %239 = math.exp %238 : vector<17x17xf32>
    %cst_110 = arith.constant dense<0.000000e+00> : vector<17xf32>
    %240 = vector.multi_reduction <add>, %239, %cst_110 [1] : vector<17x17xf32> to vector<17xf32>
    %241 = vector.shape_cast %240 : vector<17xf32> to vector<17x1xf32>
    %242 = tpu.reciprocal %241 {approx = true} : vector<17x1xf32> -> vector<17x1xf32>
    %243 = vector.broadcast %242 : vector<17x1xf32> to vector<17x17xf32>
    %244 = arith.mulf %239, %243 : vector<17x17xf32>
    %cst_111 = arith.constant dense<0.000000e+00> : vector<17x16xf32>
    %245 = tpu.matmul %244, %231, %cst_111 {dimension_numbers = #tpu.dot_dimension_numbers<[1], [0], [0], [1], [0, 0, 1, 1], [], []>} : vector<17x17xf32>, vector<17x16xf32>, vector<17x16xf32> -> vector<17x16xf32>
    %c0_112 = arith.constant 0 : index
    %c16_113 = arith.constant 16 : index
    %246 = vector.load %arg32[%c0_112, %c16_113] : memref<34x32xf32, #tpu.memory_space<vmem>>, vector<17x16xf32>
    tpu.vector_store %arg32[%c0_112, %c16_113], %245 {strides = array<i32>} : memref<34x32xf32, #tpu.memory_space<vmem>>, vector<17x16xf32>,
    %247 = vector.extract_strided_slice %210 {offsets = [17, 0], sizes = [17, 16], strides = [1, 1]} : vector<34x96xf32> to vector<17x16xf32>
    %248 = vector.extract_strided_slice %210 {offsets = [17, 32], sizes = [17, 16], strides = [1, 1]} : vector<34x96xf32> to vector<17x16xf32>
    %249 = vector.extract_strided_slice %210 {offsets = [17, 64], sizes = [17, 16], strides = [1, 1]} : vector<34x96xf32> to vector<17x16xf32>
    %cst_114 = arith.constant dense<0.000000e+00> : vector<17x17xf32>
    %250 = tpu.matmul %247, %248, %cst_114 {dimension_numbers = #tpu.dot_dimension_numbers<[1], [1], [0], [0], [0, 0, 1, 0], [], []>} : vector<17x16xf32>, vector<17x16xf32>, vector<17x17xf32> -> vector<17x17xf32>
    %cst_115 = arith.constant 2.500000e-01 : f32
    %251 = vector.broadcast %cst_115 : f32 to vector<17x17xf32>
    %252 = arith.mulf %250, %251 : vector<17x17xf32>
    %cst_116 = arith.constant dense<0xFF800000> : vector<17xf32>
    %253 = vector.multi_reduction <maximumf>, %252, %cst_116 [1] : vector<17x17xf32> to vector<17xf32>
    %254 = vector.shape_cast %253 : vector<17xf32> to vector<17x1xf32>
    %255 = vector.broadcast %254 : vector<17x1xf32> to vector<17x17xf32>
    %256 = arith.subf %252, %255 : vector<17x17xf32>
    %257 = math.exp %256 : vector<17x17xf32>
    %cst_117 = arith.constant dense<0.000000e+00> : vector<17xf32>
    %258 = vector.multi_reduction <add>, %257, %cst_117 [1] : vector<17x17xf32> to vector<17xf32>
    %259 = vector.shape_cast %258 : vector<17xf32> to vector<17x1xf32>
    %260 = tpu.reciprocal %259 {approx = true} : vector<17x1xf32> -> vector<17x1xf32>
    %261 = vector.broadcast %260 : vector<17x1xf32> to vector<17x17xf32>
    %262 = arith.mulf %257, %261 : vector<17x17xf32>
    %cst_118 = arith.constant dense<0.000000e+00> : vector<17x16xf32>
    %263 = tpu.matmul %262, %249, %cst_118 {dimension_numbers = #tpu.dot_dimension_numbers<[1], [0], [0], [1], [0, 0, 1, 1], [], []>} : vector<17x17xf32>, vector<17x16xf32>, vector<17x16xf32> -> vector<17x16xf32>
    %c17_119 = arith.constant 17 : index
    %c0_120 = arith.constant 0 : index
    %264 = vector.load %arg32[%c17_119, %c0_120] : memref<34x32xf32, #tpu.memory_space<vmem>>, vector<17x16xf32>
    tpu.vector_store %arg32[%c17_119, %c0_120], %263 {strides = array<i32>} : memref<34x32xf32, #tpu.memory_space<vmem>>, vector<17x16xf32>,
    %265 = vector.extract_strided_slice %210 {offsets = [17, 16], sizes = [17, 16], strides = [1, 1]} : vector<34x96xf32> to vector<17x16xf32>
    %266 = vector.extract_strided_slice %210 {offsets = [17, 48], sizes = [17, 16], strides = [1, 1]} : vector<34x96xf32> to vector<17x16xf32>
    %267 = vector.extract_strided_slice %210 {offsets = [17, 80], sizes = [17, 16], strides = [1, 1]} : vector<34x96xf32> to vector<17x16xf32>
    %cst_121 = arith.constant dense<0.000000e+00> : vector<17x17xf32>
    %268 = tpu.matmul %265, %266, %cst_121 {dimension_numbers = #tpu.dot_dimension_numbers<[1], [1], [0], [0], [0, 0, 1, 0], [], []>} : vector<17x16xf32>, vector<17x16xf32>, vector<17x17xf32> -> vector<17x17xf32>
    %cst_122 = arith.constant 2.500000e-01 : f32
    %269 = vector.broadcast %cst_122 : f32 to vector<17x17xf32>
    %270 = arith.mulf %268, %269 : vector<17x17xf32>
    %cst_123 = arith.constant dense<0xFF800000> : vector<17xf32>
    %271 = vector.multi_reduction <maximumf>, %270, %cst_123 [1] : vector<17x17xf32> to vector<17xf32>
    %272 = vector.shape_cast %271 : vector<17xf32> to vector<17x1xf32>
    %273 = vector.broadcast %272 : vector<17x1xf32> to vector<17x17xf32>
    %274 = arith.subf %270, %273 : vector<17x17xf32>
    %275 = math.exp %274 : vector<17x17xf32>
    %cst_124 = arith.constant dense<0.000000e+00> : vector<17xf32>
    %276 = vector.multi_reduction <add>, %275, %cst_124 [1] : vector<17x17xf32> to vector<17xf32>
    %277 = vector.shape_cast %276 : vector<17xf32> to vector<17x1xf32>
    %278 = tpu.reciprocal %277 {approx = true} : vector<17x1xf32> -> vector<17x1xf32>
    %279 = vector.broadcast %278 : vector<17x1xf32> to vector<17x17xf32>
    %280 = arith.mulf %275, %279 : vector<17x17xf32>
    %cst_125 = arith.constant dense<0.000000e+00> : vector<17x16xf32>
    %281 = tpu.matmul %280, %267, %cst_125 {dimension_numbers = #tpu.dot_dimension_numbers<[1], [0], [0], [1], [0, 0, 1, 1], [], []>} : vector<17x17xf32>, vector<17x16xf32>, vector<17x16xf32> -> vector<17x16xf32>
    %c17_126 = arith.constant 17 : index
    %c16_127 = arith.constant 16 : index
    %282 = vector.load %arg32[%c17_126, %c16_127] : memref<34x32xf32, #tpu.memory_space<vmem>>, vector<17x16xf32>
    tpu.vector_store %arg32[%c17_126, %c16_127], %281 {strides = array<i32>} : memref<34x32xf32, #tpu.memory_space<vmem>>, vector<17x16xf32>,
    %c0_128 = arith.constant 0 : index
    %c0_129 = arith.constant 0 : index
    %283 = vector.load %arg32[%c0_128, %c0_129] : memref<34x32xf32, #tpu.memory_space<vmem>>, vector<34x32xf32>
    %c0_130 = arith.constant 0 : index
    %c0_131 = arith.constant 0 : index
    %284 = vector.load %arg19[%c0_130, %c0_131] : memref<32x32xf32, #tpu.memory_space<vmem>>, vector<32x32xf32>
    %cst_132 = arith.constant dense<0.000000e+00> : vector<34x32xf32>
    %285 = tpu.matmul %283, %284, %cst_132 {dimension_numbers = #tpu.dot_dimension_numbers<[1], [0], [0], [1], [0, 0, 1, 1], [], []>} : vector<34x32xf32>, vector<32x32xf32>, vector<34x32xf32> -> vector<34x32xf32>
    %c0_133 = arith.constant 0 : index
    %c0_134 = arith.constant 0 : index
    %286 = vector.load %arg20[%c0_133, %c0_134] : memref<1x32xf32, #tpu.memory_space<vmem>>, vector<1x32xf32>
    %287 = vector.broadcast %286 : vector<1x32xf32> to vector<34x32xf32>
    %288 = arith.addf %285, %287 : vector<34x32xf32>
    %289 = arith.addf %183, %288 : vector<34x32xf32>
    %c0_135 = arith.constant 0 : index
    %c0_136 = arith.constant 0 : index
    %290 = vector.load %arg21[%c0_135, %c0_136] : memref<1x32xf32, #tpu.memory_space<vmem>>, vector<1x32xf32>
    %c0_137 = arith.constant 0 : index
    %c0_138 = arith.constant 0 : index
    %291 = vector.load %arg22[%c0_137, %c0_138] : memref<1x32xf32, #tpu.memory_space<vmem>>, vector<1x32xf32>
    %cst_139 = arith.constant dense<0.000000e+00> : vector<34xf32>
    %292 = vector.multi_reduction <add>, %289, %cst_139 [1] : vector<34x32xf32> to vector<34xf32>
    %293 = vector.shape_cast %292 : vector<34xf32> to vector<34x1xf32>
    %cst_140 = arith.constant 3.200000e+01 : f32
    %294 = vector.broadcast %cst_140 : f32 to vector<34x1xf32>
    %295 = arith.divf %293, %294 : vector<34x1xf32>
    %296 = vector.broadcast %295 : vector<34x1xf32> to vector<34x32xf32>
    %297 = arith.subf %289, %296 : vector<34x32xf32>
    %298 = arith.mulf %297, %297 : vector<34x32xf32>
    %cst_141 = arith.constant dense<0.000000e+00> : vector<34xf32>
    %299 = vector.multi_reduction <add>, %298, %cst_141 [1] : vector<34x32xf32> to vector<34xf32>
    %300 = vector.shape_cast %299 : vector<34xf32> to vector<34x1xf32>
    %cst_142 = arith.constant 3.200000e+01 : f32
    %301 = vector.broadcast %cst_142 : f32 to vector<34x1xf32>
    %302 = arith.divf %300, %301 : vector<34x1xf32>
    %cst_143 = arith.constant 9.99999997E-7 : f32
    %303 = vector.broadcast %cst_143 : f32 to vector<34x1xf32>
    %304 = arith.addf %302, %303 : vector<34x1xf32>
    %305 = math.rsqrt %304 : vector<34x1xf32>
    %306 = vector.broadcast %305 : vector<34x1xf32> to vector<34x32xf32>
    %307 = arith.mulf %297, %306 : vector<34x32xf32>
    %308 = vector.broadcast %290 : vector<1x32xf32> to vector<34x32xf32>
    %309 = arith.mulf %307, %308 : vector<34x32xf32>
    %310 = vector.broadcast %291 : vector<1x32xf32> to vector<34x32xf32>
    %311 = arith.addf %309, %310 : vector<34x32xf32>
    %c0_144 = arith.constant 0 : index
    %c0_145 = arith.constant 0 : index
    %312 = vector.load %arg23[%c0_144, %c0_145] : memref<32x64xf32, #tpu.memory_space<vmem>>, vector<32x64xf32>
    %cst_146 = arith.constant dense<0.000000e+00> : vector<34x64xf32>
    %313 = tpu.matmul %311, %312, %cst_146 {dimension_numbers = #tpu.dot_dimension_numbers<[1], [0], [0], [1], [0, 0, 1, 1], [], []>} : vector<34x32xf32>, vector<32x64xf32>, vector<34x64xf32> -> vector<34x64xf32>
    %c0_147 = arith.constant 0 : index
    %c0_148 = arith.constant 0 : index
    %314 = vector.load %arg24[%c0_147, %c0_148] : memref<1x64xf32, #tpu.memory_space<vmem>>, vector<1x64xf32>
    %315 = vector.broadcast %314 : vector<1x64xf32> to vector<34x64xf32>
    %316 = arith.addf %313, %315 : vector<34x64xf32>
    %cst_149 = arith.constant 5.000000e-01 : f32
    %317 = vector.broadcast %cst_149 : f32 to vector<34x64xf32>
    %318 = arith.mulf %317, %316 : vector<34x64xf32>
    %cst_150 = arith.constant 0.707106769 : f32
    %319 = vector.broadcast %cst_150 : f32 to vector<34x64xf32>
    %320 = arith.mulf %316, %319 : vector<34x64xf32>
    %321 = math.absf %320 : vector<34x64xf32>
    %cst_151 = arith.constant 0.327591091 : f32
    %322 = vector.broadcast %cst_151 : f32 to vector<34x64xf32>
    %323 = arith.mulf %322, %321 : vector<34x64xf32>
    %cst_152 = arith.constant 1.000000e+00 : f32
    %324 = vector.broadcast %cst_152 : f32 to vector<34x64xf32>
    %325 = arith.addf %324, %323 : vector<34x64xf32>
    %cst_153 = arith.constant 1.000000e+00 : f32
    %326 = vector.broadcast %cst_153 : f32 to vector<34x64xf32>
    %327 = arith.divf %326, %325 : vector<34x64xf32>
    %cst_154 = arith.constant 1.06140542 : f32
    %328 = vector.broadcast %cst_154 : f32 to vector<34x64xf32>
    %329 = arith.mulf %328, %327 : vector<34x64xf32>
    %cst_155 = arith.constant -1.45315206 : f32
    %330 = vector.broadcast %cst_155 : f32 to vector<34x64xf32>
    %331 = arith.addf %329, %330 : vector<34x64xf32>
    %332 = arith.mulf %331, %327 : vector<34x64xf32>
    %cst_156 = arith.constant 1.42141378 : f32
    %333 = vector.broadcast %cst_156 : f32 to vector<34x64xf32>
    %334 = arith.addf %332, %333 : vector<34x64xf32>
    %335 = arith.mulf %334, %327 : vector<34x64xf32>
    %cst_157 = arith.constant -0.284496725 : f32
    %336 = vector.broadcast %cst_157 : f32 to vector<34x64xf32>
    %337 = arith.addf %335, %336 : vector<34x64xf32>
    %338 = arith.mulf %337, %327 : vector<34x64xf32>
    %cst_158 = arith.constant 0.254829586 : f32
    %339 = vector.broadcast %cst_158 : f32 to vector<34x64xf32>
    %340 = arith.addf %338, %339 : vector<34x64xf32>
    %341 = arith.mulf %340, %327 : vector<34x64xf32>
    %cst_159 = arith.constant 0.000000e+00 : f32
    %342 = vector.broadcast %cst_159 : f32 to vector<34x64xf32>
    %343 = arith.subf %342, %321 : vector<34x64xf32>
    %344 = arith.mulf %343, %321 : vector<34x64xf32>
    %345 = math.exp %344 : vector<34x64xf32>
    %346 = arith.mulf %341, %345 : vector<34x64xf32>
    %cst_160 = arith.constant 1.000000e+00 : f32
    %347 = vector.broadcast %cst_160 : f32 to vector<34x64xf32>
    %348 = arith.subf %347, %346 : vector<34x64xf32>
    %cst_161 = arith.constant 0.000000e+00 : f32
    %349 = vector.broadcast %cst_161 : f32 to vector<34x64xf32>
    %350 = arith.cmpf oge, %320, %349 : vector<34x64xf32>
    %cst_162 = arith.constant 0.000000e+00 : f32
    %351 = vector.broadcast %cst_162 : f32 to vector<34x64xf32>
    %352 = arith.subf %351, %348 : vector<34x64xf32>
    %353 = arith.select %350, %348, %352 : vector<34x64xi1>, vector<34x64xf32>
    %cst_163 = arith.constant 1.000000e+00 : f32
    %354 = vector.broadcast %cst_163 : f32 to vector<34x64xf32>
    %355 = arith.addf %354, %353 : vector<34x64xf32>
    %356 = arith.mulf %318, %355 : vector<34x64xf32>
    %c0_164 = arith.constant 0 : index
    %c0_165 = arith.constant 0 : index
    %357 = vector.load %arg25[%c0_164, %c0_165] : memref<64x32xf32, #tpu.memory_space<vmem>>, vector<64x32xf32>
    %cst_166 = arith.constant dense<0.000000e+00> : vector<34x32xf32>
    %358 = tpu.matmul %356, %357, %cst_166 {dimension_numbers = #tpu.dot_dimension_numbers<[1], [0], [0], [1], [0, 0, 1, 1], [], []>} : vector<34x64xf32>, vector<64x32xf32>, vector<34x32xf32> -> vector<34x32xf32>
    %c0_167 = arith.constant 0 : index
    %c0_168 = arith.constant 0 : index
    %359 = vector.load %arg26[%c0_167, %c0_168] : memref<1x32xf32, #tpu.memory_space<vmem>>, vector<1x32xf32>
    %360 = vector.broadcast %359 : vector<1x32xf32> to vector<34x32xf32>
    %361 = arith.addf %358, %360 : vector<34x32xf32>
    %362 = arith.addf %289, %361 : vector<34x32xf32>
    %363 = vector.extract_strided_slice %362 {offsets = [0, 0], sizes = [1, 32], strides = [1, 1]} : vector<34x32xf32> to vector<1x32xf32>
    %c0_169 = arith.constant 0 : index
    %c0_170 = arith.constant 0 : index
    %364 = vector.load %arg27[%c0_169, %c0_170] : memref<1x32xf32, #tpu.memory_space<vmem>>, vector<1x32xf32>
    %c0_171 = arith.constant 0 : index
    %c0_172 = arith.constant 0 : index
    %365 = vector.load %arg28[%c0_171, %c0_172] : memref<1x32xf32, #tpu.memory_space<vmem>>, vector<1x32xf32>
    %cst_173 = arith.constant dense<0.000000e+00> : vector<1xf32>
    %366 = vector.multi_reduction <add>, %363, %cst_173 [1] : vector<1x32xf32> to vector<1xf32>
    %367 = vector.shape_cast %366 : vector<1xf32> to vector<1x1xf32>
    %cst_174 = arith.constant 3.200000e+01 : f32
    %368 = vector.broadcast %cst_174 : f32 to vector<1x1xf32>
    %369 = arith.divf %367, %368 : vector<1x1xf32>
    %370 = vector.broadcast %369 : vector<1x1xf32> to vector<1x32xf32>
    %371 = arith.subf %363, %370 : vector<1x32xf32>
    %372 = arith.mulf %371, %371 : vector<1x32xf32>
    %cst_175 = arith.constant dense<0.000000e+00> : vector<1xf32>
    %373 = vector.multi_reduction <add>, %372, %cst_175 [1] : vector<1x32xf32> to vector<1xf32>
    %374 = vector.shape_cast %373 : vector<1xf32> to vector<1x1xf32>
    %cst_176 = arith.constant 3.200000e+01 : f32
    %375 = vector.broadcast %cst_176 : f32 to vector<1x1xf32>
    %376 = arith.divf %374, %375 : vector<1x1xf32>
    %cst_177 = arith.constant 9.99999997E-7 : f32
    %377 = vector.broadcast %cst_177 : f32 to vector<1x1xf32>
    %378 = arith.addf %376, %377 : vector<1x1xf32>
    %379 = math.rsqrt %378 : vector<1x1xf32>
    %380 = vector.broadcast %379 : vector<1x1xf32> to vector<1x32xf32>
    %381 = arith.mulf %371, %380 : vector<1x32xf32>
    %382 = arith.mulf %381, %364 : vector<1x32xf32>
    %383 = arith.addf %382, %365 : vector<1x32xf32>
    %c0_178 = arith.constant 0 : index
    %c0_179 = arith.constant 0 : index
    %384 = vector.load %arg29[%c0_178, %c0_179] : memref<32x10xf32, #tpu.memory_space<vmem>>, vector<32x10xf32>
    %cst_180 = arith.constant dense<0.000000e+00> : vector<1x10xf32>
    %385 = tpu.matmul %383, %384, %cst_180 {dimension_numbers = #tpu.dot_dimension_numbers<[1], [0], [0], [1], [0, 0, 1, 1], [], []>} : vector<1x32xf32>, vector<32x10xf32>, vector<1x10xf32> -> vector<1x10xf32>
    %c0_181 = arith.constant 0 : index
    %c0_182 = arith.constant 0 : index
    %386 = vector.load %arg30[%c0_181, %c0_182] : memref<1x10xf32, #tpu.memory_space<vmem>>, vector<1x10xf32>
    %387 = arith.addf %385, %386 : vector<1x10xf32>
    %c0_183 = arith.constant 0 : index
    %c0_184 = arith.constant 0 : index
    %388 = vector.load %arg31[%c0_183, %c0_184] : memref<2x10xf32, #tpu.memory_space<vmem>>, vector<1x10xf32>
    tpu.vector_store %arg31[%c0_183, %c0_184], %387 {strides = array<i32>} : memref<2x10xf32, #tpu.memory_space<vmem>>, vector<1x10xf32>,
    %389 = vector.extract_strided_slice %362 {offsets = [17, 0], sizes = [1, 32], strides = [1, 1]} : vector<34x32xf32> to vector<1x32xf32>
    %c0_185 = arith.constant 0 : index
    %c0_186 = arith.constant 0 : index
    %390 = vector.load %arg27[%c0_185, %c0_186] : memref<1x32xf32, #tpu.memory_space<vmem>>, vector<1x32xf32>
    %c0_187 = arith.constant 0 : index
    %c0_188 = arith.constant 0 : index
    %391 = vector.load %arg28[%c0_187, %c0_188] : memref<1x32xf32, #tpu.memory_space<vmem>>, vector<1x32xf32>
    %cst_189 = arith.constant dense<0.000000e+00> : vector<1xf32>
    %392 = vector.multi_reduction <add>, %389, %cst_189 [1] : vector<1x32xf32> to vector<1xf32>
    %393 = vector.shape_cast %392 : vector<1xf32> to vector<1x1xf32>
    %cst_190 = arith.constant 3.200000e+01 : f32
    %394 = vector.broadcast %cst_190 : f32 to vector<1x1xf32>
    %395 = arith.divf %393, %394 : vector<1x1xf32>
    %396 = vector.broadcast %395 : vector<1x1xf32> to vector<1x32xf32>
    %397 = arith.subf %389, %396 : vector<1x32xf32>
    %398 = arith.mulf %397, %397 : vector<1x32xf32>
    %cst_191 = arith.constant dense<0.000000e+00> : vector<1xf32>
    %399 = vector.multi_reduction <add>, %398, %cst_191 [1] : vector<1x32xf32> to vector<1xf32>
    %400 = vector.shape_cast %399 : vector<1xf32> to vector<1x1xf32>
    %cst_192 = arith.constant 3.200000e+01 : f32
    %401 = vector.broadcast %cst_192 : f32 to vector<1x1xf32>
    %402 = arith.divf %400, %401 : vector<1x1xf32>
    %cst_193 = arith.constant 9.99999997E-7 : f32
    %403 = vector.broadcast %cst_193 : f32 to vector<1x1xf32>
    %404 = arith.addf %402, %403 : vector<1x1xf32>
    %405 = math.rsqrt %404 : vector<1x1xf32>
    %406 = vector.broadcast %405 : vector<1x1xf32> to vector<1x32xf32>
    %407 = arith.mulf %397, %406 : vector<1x32xf32>
    %408 = arith.mulf %407, %390 : vector<1x32xf32>
    %409 = arith.addf %408, %391 : vector<1x32xf32>
    %c0_194 = arith.constant 0 : index
    %c0_195 = arith.constant 0 : index
    %410 = vector.load %arg29[%c0_194, %c0_195] : memref<32x10xf32, #tpu.memory_space<vmem>>, vector<32x10xf32>
    %cst_196 = arith.constant dense<0.000000e+00> : vector<1x10xf32>
    %411 = tpu.matmul %409, %410, %cst_196 {dimension_numbers = #tpu.dot_dimension_numbers<[1], [0], [0], [1], [0, 0, 1, 1], [], []>} : vector<1x32xf32>, vector<32x10xf32>, vector<1x10xf32> -> vector<1x10xf32>
    %c0_197 = arith.constant 0 : index
    %c0_198 = arith.constant 0 : index
    %412 = vector.load %arg30[%c0_197, %c0_198] : memref<1x10xf32, #tpu.memory_space<vmem>>, vector<1x10xf32>
    %413 = arith.addf %411, %412 : vector<1x10xf32>
    %c1 = arith.constant 1 : index
    %c0_199 = arith.constant 0 : index
    %414 = vector.load %arg31[%c1, %c0_199] : memref<2x10xf32, #tpu.memory_space<vmem>>, vector<1x10xf32>
    tpu.vector_store %arg31[%c1, %c0_199], %413 {strides = array<i32>} : memref<2x10xf32, #tpu.memory_space<vmem>>, vector<1x10xf32>,
    return
  }
}

</mosaic_0001>

<llo_original>
// kernel: tpu_custom_call.1
$region0: #{tpu_custom_call.1}
  #allocation0 [shape = 'u32[]', space=smem, size = 0x4, offset = 0x4, fixed_abs, tag = 'smem constant byte address 0x4 - core index']
  #allocation1 [shape = 'u32[144,128]{1,0:T(1,128)}', space=vmem, size = 0x12000, scoped, tag = 'internal scratch']
  #allocation2 [shape = 'f32[34,32]{1,0:T(8,128)}', space=vmem, size = 0x5000, scoped, tag = 'scratch operand']
  %s0 = inlined_call_operand.smem [shape: u32[32], index: -1, kind: input, shape index: {}]
  %s1 = sld [smem:[%s0]]
  %s2 = scalar_lea.smem %s0, 1
  %s3 = sld [smem:[%s2]]
  %s4 = scalar_lea.smem %s0, 2
  %s5 = sld [smem:[%s4]]
  %s6 = scalar_lea.smem %s0, 3
  %s7 = sld [smem:[%s6]]
  %s8 = scalar_lea.smem %s0, 4
  %s9 = sld [smem:[%s8]]
  %s10 = scalar_lea.smem %s0, 5
  %s11 = sld [smem:[%s10]]
  %s12 = scalar_lea.smem %s0, 6
  %s13 = sld [smem:[%s12]]
  %s14 = scalar_lea.smem %s0, 7
  %s15 = sld [smem:[%s14]]
  %s16 = scalar_lea.smem %s0, 8
  %s17 = sld [smem:[%s16]]
  %s18 = scalar_lea.smem %s0, 9
  %s19 = sld [smem:[%s18]]
  %s20 = scalar_lea.smem %s0, 10
  %s21 = sld [smem:[%s20]]
  %s22 = scalar_lea.smem %s0, 11
  %s23 = sld [smem:[%s22]]
  %s24 = scalar_lea.smem %s0, 12
  %s25 = sld [smem:[%s24]]
  %s26 = scalar_lea.smem %s0, 13
  %s27 = sld [smem:[%s26]]
  %s28 = scalar_lea.smem %s0, 14
  %s29 = sld [smem:[%s28]]
  %s30 = scalar_lea.smem %s0, 15
  %s31 = sld [smem:[%s30]]
  %s32 = scalar_lea.smem %s0, 16
  %s33 = sld [smem:[%s32]]
  %s34 = scalar_lea.smem %s0, 17
  %s35 = sld [smem:[%s34]]
  %s36 = scalar_lea.smem %s0, 18
  %s37 = sld [smem:[%s36]]
  %s38 = scalar_lea.smem %s0, 19
  %s39 = sld [smem:[%s38]]
  %s40 = scalar_lea.smem %s0, 20
  %s41 = sld [smem:[%s40]]
  %s42 = scalar_lea.smem %s0, 21
  %s43 = sld [smem:[%s42]]
  %s44 = scalar_lea.smem %s0, 22
  %s45 = sld [smem:[%s44]]
  %s46 = scalar_lea.smem %s0, 23
  %s47 = sld [smem:[%s46]]
  %s48 = scalar_lea.smem %s0, 24
  %s49 = sld [smem:[%s48]]
  %s50 = scalar_lea.smem %s0, 25
  %s51 = sld [smem:[%s50]]
  %s52 = scalar_lea.smem %s0, 26
  %s53 = sld [smem:[%s52]]
  %s54 = scalar_lea.smem %s0, 27
  %s55 = sld [smem:[%s54]]
  %s56 = scalar_lea.smem %s0, 28
  %s57 = sld [smem:[%s56]]
  %s58 = scalar_lea.smem %s0, 29
  %s59 = sld [smem:[%s58]]
  %s60 = scalar_lea.smem %s0, 30
  %s61 = sld [smem:[%s60]]
  %s62 = scalar_lea.smem %s0, 31
  %s63 = sld [smem:[%s62]]
  %s64 = sld [smem:[#allocation0]]
  $region134: #{tpu_custom_call.1} parent=0
    _
  %s66 = ssub.s32 1, %s64
  %s67 = scalar_select 0, %s66, %s64
  $region1: #{tpu_custom_call.1} parent=0
    #allocation3 [shape = 'u8[1024]{0}', space=vmem, size = 0x400, scoped, tag = 'output window, operand 0, single buffered']
    #allocation4 [shape = 's32[1]{0}', space=sflag, size = 0x4, scoped, tag = 'scoped memory for tpu_custom_call.1']
    %68 = vsyncpa [#allocation4], 0
    // Predicated region
    $region2: #{tpu_custom_call.1} parent=1 // pred_check
      _
    $region3: #{tpu_custom_call.1} parent=1 // pred_check_branch
      %70 = sbr.rel (0) target = $region5
    $region4: #{tpu_custom_call.1} parent=1 // pred_region
      _
    $region5: #{tpu_custom_call.1} parent=1 // pred_fallthru
      _
    // Predicated region
    $region6: #{tpu_custom_call.1} parent=1 // pred_check
      _
    $region7: #{tpu_custom_call.1} parent=1 // pred_check_branch
      %72 = sbr.rel (0) target = $region9
    $region8: #{tpu_custom_call.1} parent=1 // pred_region
      _
    $region9: #{tpu_custom_call.1} parent=1 // pred_fallthru
      _
    // Predicated region
    $region10: #{tpu_custom_call.1} parent=1 // pred_check
      _
    $region11: #{tpu_custom_call.1} parent=1 // pred_check_branch
      %74 = sbr.rel (0) target = $region13
    $region12: #{tpu_custom_call.1} parent=1 // pred_region
      _
    $region13: #{tpu_custom_call.1} parent=1 // pred_fallthru
      _
    // Predicated region
    $region14: #{tpu_custom_call.1} parent=1 // pred_check
      _
    $region15: #{tpu_custom_call.1} parent=1 // pred_check_branch
      %76 = sbr.rel (0) target = $region17
    $region16: #{tpu_custom_call.1} parent=1 // pred_region
      _
    $region17: #{tpu_custom_call.1} parent=1 // pred_fallthru
      _
    // Predicated region
    $region18: #{tpu_custom_call.1} parent=1 // pred_check
      _
    $region19: #{tpu_custom_call.1} parent=1 // pred_check_branch
      %78 = sbr.rel (0) target = $region21
    $region20: #{tpu_custom_call.1} parent=1 // pred_region
      _
    $region21: #{tpu_custom_call.1} parent=1 // pred_fallthru
      _
    // Predicated region
    $region22: #{tpu_custom_call.1} parent=1 // pred_check
      _
    $region23: #{tpu_custom_call.1} parent=1 // pred_check_branch
      %80 = sbr.rel (0) target = $region25
    $region24: #{tpu_custom_call.1} parent=1 // pred_region
      _
    $region25: #{tpu_custom_call.1} parent=1 // pred_fallthru
      _
    // Predicated region
    $region26: #{tpu_custom_call.1} parent=1 // pred_check
      _
    $region27: #{tpu_custom_call.1} parent=1 // pred_check_branch
      %82 = sbr.rel (0) target = $region29
    $region28: #{tpu_custom_call.1} parent=1 // pred_region
      _
    $region29: #{tpu_custom_call.1} parent=1 // pred_fallthru
      _
    // Predicated region
    $region30: #{tpu_custom_call.1} parent=1 // pred_check
      _
    $region31: #{tpu_custom_call.1} parent=1 // pred_check_branch
      %84 = sbr.rel (0) target = $region33
    $region32: #{tpu_custom_call.1} parent=1 // pred_region
      _
    $region33: #{tpu_custom_call.1} parent=1 // pred_fallthru
      _
    // Predicated region
    $region34: #{tpu_custom_call.1} parent=1 // pred_check
      _
    $region35: #{tpu_custom_call.1} parent=1 // pred_check_branch
      %86 = sbr.rel (0) target = $region37
    $region36: #{tpu_custom_call.1} parent=1 // pred_region
      _
    $region37: #{tpu_custom_call.1} parent=1 // pred_fallthru
      _
    // Predicated region
    $region38: #{tpu_custom_call.1} parent=1 // pred_check
      _
    $region39: #{tpu_custom_call.1} parent=1 // pred_check_branch
      %88 = sbr.rel (0) target = $region41
    $region40: #{tpu_custom_call.1} parent=1 // pred_region
      _
    $region41: #{tpu_custom_call.1} parent=1 // pred_fallthru
      _
    // Predicated region
    $region42: #{tpu_custom_call.1} parent=1 // pred_check
      _
    $region43: #{tpu_custom_call.1} parent=1 // pred_check_branch
      %90 = sbr.rel (0) target = $region45
    $region44: #{tpu_custom_call.1} parent=1 // pred_region
      _
    $region45: #{tpu_custom_call.1} parent=1 // pred_fallthru
      _
    // Predicated region
    $region46: #{tpu_custom_call.1} parent=1 // pred_check
      _
    $region47: #{tpu_custom_call.1} parent=1 // pred_check_branch
      %92 = sbr.rel (0) target = $region49
    $region48: #{tpu_custom_call.1} parent=1 // pred_region
      _
    $region49: #{tpu_custom_call.1} parent=1 // pred_fallthru
      _
    // Predicated region
    $region50: #{tpu_custom_call.1} parent=1 // pred_check
      _
    $region51: #{tpu_custom_call.1} parent=1 // pred_check_branch
      %94 = sbr.rel (0) target = $region53
    $region52: #{tpu_custom_call.1} parent=1 // pred_region
      _
    $region53: #{tpu_custom_call.1} parent=1 // pred_fallthru
      _
    // Predicated region
    $region54: #{tpu_custom_call.1} parent=1 // pred_check
      _
    $region55: #{tpu_custom_call.1} parent=1 // pred_check_branch
      %96 = sbr.rel (0) target = $region57
    $region56: #{tpu_custom_call.1} parent=1 // pred_region
      _
    $region57: #{tpu_custom_call.1} parent=1 // pred_fallthru
      _
    // Predicated region
    $region58: #{tpu_custom_call.1} parent=1 // pred_check
      _
    $region59: #{tpu_custom_call.1} parent=1 // pred_check_branch
      %98 = sbr.rel (0) target = $region61
    $region60: #{tpu_custom_call.1} parent=1 // pred_region
      _
    $region61: #{tpu_custom_call.1} parent=1 // pred_fallthru
      _
    // Predicated region
    $region62: #{tpu_custom_call.1} parent=1 // pred_check
      _
    $region63: #{tpu_custom_call.1} parent=1 // pred_check_branch
      %100 = sbr.rel (0) target = $region65
    $region64: #{tpu_custom_call.1} parent=1 // pred_region
      _
    $region65: #{tpu_custom_call.1} parent=1 // pred_fallthru
      _
    // Predicated region
    $region66: #{tpu_custom_call.1} parent=1 // pred_check
      _
    $region67: #{tpu_custom_call.1} parent=1 // pred_check_branch
      %102 = sbr.rel (0) target = $region69
    $region68: #{tpu_custom_call.1} parent=1 // pred_region
      _
    $region69: #{tpu_custom_call.1} parent=1 // pred_fallthru
      _
    // Predicated region
    $region70: #{tpu_custom_call.1} parent=1 // pred_check
      _
    $region71: #{tpu_custom_call.1} parent=1 // pred_check_branch
      %104 = sbr.rel (0) target = $region73
    $region72: #{tpu_custom_call.1} parent=1 // pred_region
      _
    $region73: #{tpu_custom_call.1} parent=1 // pred_fallthru
      _
    // Predicated region
    $region74: #{tpu_custom_call.1} parent=1 // pred_check
      _
    $region75: #{tpu_custom_call.1} parent=1 // pred_check_branch
      %106 = sbr.rel (0) target = $region77
    $region76: #{tpu_custom_call.1} parent=1 // pred_region
      _
    $region77: #{tpu_custom_call.1} parent=1 // pred_fallthru
      _
    // Predicated region
    $region78: #{tpu_custom_call.1} parent=1 // pred_check
      _
    $region79: #{tpu_custom_call.1} parent=1 // pred_check_branch
      %108 = sbr.rel (0) target = $region81
    $region80: #{tpu_custom_call.1} parent=1 // pred_region
      _
    $region81: #{tpu_custom_call.1} parent=1 // pred_fallthru
      _
    // Predicated region
    $region82: #{tpu_custom_call.1} parent=1 // pred_check
      _
    $region83: #{tpu_custom_call.1} parent=1 // pred_check_branch
      %110 = sbr.rel (0) target = $region85
    $region84: #{tpu_custom_call.1} parent=1 // pred_region
      _
    $region85: #{tpu_custom_call.1} parent=1 // pred_fallthru
      _
    // Predicated region
    $region86: #{tpu_custom_call.1} parent=1 // pred_check
      _
    $region87: #{tpu_custom_call.1} parent=1 // pred_check_branch
      %112 = sbr.rel (0) target = $region89
    $region88: #{tpu_custom_call.1} parent=1 // pred_region
      _
    $region89: #{tpu_custom_call.1} parent=1 // pred_fallthru
      _
    // Predicated region
    $region90: #{tpu_custom_call.1} parent=1 // pred_check
      _
    $region91: #{tpu_custom_call.1} parent=1 // pred_check_branch
      %114 = sbr.rel (0) target = $region93
    $region92: #{tpu_custom_call.1} parent=1 // pred_region
      _
    $region93: #{tpu_custom_call.1} parent=1 // pred_fallthru
      _
    // Predicated region
    $region94: #{tpu_custom_call.1} parent=1 // pred_check
      _
    $region95: #{tpu_custom_call.1} parent=1 // pred_check_branch
      %116 = sbr.rel (0) target = $region97
    $region96: #{tpu_custom_call.1} parent=1 // pred_region
      _
    $region97: #{tpu_custom_call.1} parent=1 // pred_fallthru
      _
    // Predicated region
    $region98: #{tpu_custom_call.1} parent=1 // pred_check
      _
    $region99: #{tpu_custom_call.1} parent=1 // pred_check_branch
      %118 = sbr.rel (0) target = $region101
    $region100: #{tpu_custom_call.1} parent=1 // pred_region
      _
    $region101: #{tpu_custom_call.1} parent=1 // pred_fallthru
      _
    // Predicated region
    $region102: #{tpu_custom_call.1} parent=1 // pred_check
      _
    $region103: #{tpu_custom_call.1} parent=1 // pred_check_branch
      %120 = sbr.rel (0) target = $region105
    $region104: #{tpu_custom_call.1} parent=1 // pred_region
      _
    $region105: #{tpu_custom_call.1} parent=1 // pred_fallthru
      _
    // Predicated region
    $region106: #{tpu_custom_call.1} parent=1 // pred_check
      _
    $region107: #{tpu_custom_call.1} parent=1 // pred_check_branch
      %122 = sbr.rel (0) target = $region109
    $region108: #{tpu_custom_call.1} parent=1 // pred_region
      _
    $region109: #{tpu_custom_call.1} parent=1 // pred_fallthru
      _
    // Predicated region
    $region110: #{tpu_custom_call.1} parent=1 // pred_check
      _
    $region111: #{tpu_custom_call.1} parent=1 // pred_check_branch
      %124 = sbr.rel (0) target = $region113
    $region112: #{tpu_custom_call.1} parent=1 // pred_region
      _
    $region113: #{tpu_custom_call.1} parent=1 // pred_fallthru
      _
    // Predicated region
    $region114: #{tpu_custom_call.1} parent=1 // pred_check
      _
    $region115: #{tpu_custom_call.1} parent=1 // pred_check_branch
      %126 = sbr.rel (0) target = $region117
    $region116: #{tpu_custom_call.1} parent=1 // pred_region
      _
    $region117: #{tpu_custom_call.1} parent=1 // pred_fallthru
      _
    // Predicated region
    $region118: #{tpu_custom_call.1} parent=1 // pred_check
      _
    $region119: #{tpu_custom_call.1} parent=1 // pred_check_branch
      %128 = sbr.rel (0) target = $region121
    $region120: #{tpu_custom_call.1} parent=1 // pred_region
      _
    $region121: #{tpu_custom_call.1} parent=1 // pred_fallthru
      _
    // Predicated region
    $region122: #{tpu_custom_call.1} parent=1 // pred_check
      _
    $region123: #{tpu_custom_call.1} parent=1 // pred_check_branch
      %130 = sbr.rel (0) target = $region125
    $region124: #{tpu_custom_call.1} parent=1 // pred_region
      _
    $region125: #{tpu_custom_call.1} parent=1 // pred_fallthru
      _
    %v131 = vld [vmem:[%s1] sm:$0xff]
    %v132 = vld [vmem:[%s1 + $0x8] sm:$0xff]
    %v133 = vld [vmem:[%s1 + $0x10] sm:$0xff]
    %v134 = vld [vmem:[%s1 + $0x18] sm:$0xff]
    %v135 = vld [vmem:[%s1 + $0x20] sm:$0x3]
    %v136 = vld [vmem:[%s3] sm:$0xff]
    %v137 = vld [vmem:[%s3 + $0x8] sm:$0xff]
    %v138 = vld [vmem:[%s5] sm:$0xff]
    %v139 = vld [vmem:[%s5 + $0x8] sm:$0xff]
    %v140 = vld [vmem:[%s5 + $0x10] sm:$0xff]
    %v141 = vld [vmem:[%s5 + $0x18] sm:$0xff]
    %v142 = vld [vmem:[%s5 + $0x20] sm:$0x3]
    %vm143 = vcmask 130048
    %v145 = vsel %vm143, %v131, 0
    %v148 = vsel %vm143, %v132, 0
    %v151 = vsel %vm143, %v133, 0
    %v154 = vsel %vm143, %v134, 0
    %v157 = vsel %vm143, %v135, 0
    %159 = vmatprep.subr.mxu0 0.0
    %160 = vmatpush1.msra.mxu0 %v136
    %161 = vmatprep.subr.mxu0 0.0
    %162 = vmatpush1.msra.mxu0 %v137
    %163 = vmatprep.subr.mxu0 0.0
    %164 = vmatpush1.msra.mxu0 0.0
    %165 = vmatprep.subr.mxu0 0.0
    %166 = vmatpush1.msra.mxu0 0.0
    %167 = vmatprep.subr.mxu0 0.0
    %168 = vmatpush1.msra.mxu0 0.0
    %169 = vmatprep.subr.mxu0 0.0
    %170 = vmatpush1.msra.mxu0 0.0
    %171 = vmatprep.subr.mxu0 0.0
    %172 = vmatpush1.msra.mxu0 0.0
    %173 = vmatprep.subr.mxu0 0.0
    %174 = vmatpush1.msra.mxu0 0.0
    %175 = vmatprep.subr.mxu0 0.0
    %176 = vmatpush1.msra.mxu0 0.0
    %177 = vmatprep.subr.mxu0 0.0
    %178 = vmatpush1.msra.mxu0 0.0
    %179 = vmatprep.subr.mxu0 0.0
    %180 = vmatpush1.msra.mxu0 0.0
    %181 = vmatprep.subr.mxu0 0.0
    %182 = vmatpush1.msra.mxu0 0.0
    %183 = vmatprep.subr.mxu0 0.0
    %184 = vmatpush1.msra.mxu0 0.0
    %185 = vmatprep.subr.mxu0 0.0
    %186 = vmatpush1.msra.mxu0 0.0
    %187 = vmatprep.subr.mxu0 0.0
    %188 = vmatpush1.msra.mxu0 0.0
    %189 = vmatprep.subr.mxu0 0.0
    %190 = vmatpush1.msra.mxu0 0.0
    %191 = vmatprep.subr.mxu0 0.0
    %192 = vmatpush1.msra.mxu0 0.0
    %193 = vmatprep.subr.mxu0 0.0
    %194 = vmatpush1.msra.mxu0 0.0
    %195 = vmatprep.subr.mxu0 0.0
    %196 = vmatpush1.msra.mxu0 0.0
    %197 = vmatprep.subr.mxu0 0.0
    %198 = vmatpush1.msra.mxu0 0.0
    %199 = vmatprep.subr.mxu0 0.0
    %200 = vmatpush1.msra.mxu0 0.0
    %201 = vmatprep.subr.mxu0 0.0
    %202 = vmatpush1.msra.mxu0 0.0
    %203 = vmatprep.subr.mxu0 0.0
    %204 = vmatpush1.msra.mxu0 0.0
    %205 = vmatprep.subr.mxu0 0.0
    %206 = vmatpush1.msra.mxu0 0.0
    %207 = vmatprep.subr.mxu0 0.0
    %208 = vmatpush1.msra.mxu0 0.0
    %209 = vmatprep.subr.mxu0 0.0
    %210 = vmatpush1.msra.mxu0 0.0
    %211 = vmatprep.subr.mxu0 0.0
    %212 = vmatpush1.msra.mxu0 0.0
    %213 = vmatprep.subr.mxu0 0.0
    %214 = vmatpush1.msra.mxu0 0.0
    %215 = vmatprep.subr.mxu0 0.0
    %216 = vmatpush1.msra.mxu0 0.0
    %217 = vmatprep.subr.mxu0 0.0
    %218 = vmatpush1.msra.mxu0 0.0
    %219 = vmatprep.subr.mxu0 0.0
    %220 = vmatpush1.msra.mxu0 0.0
    %221 = vmatprep.subr.mxu0 0.0
    %222 = vmatpush1.msra.mxu0 0.0
    %223 = vmatprep.mubr.f32.mxu0 0.0
    %224 = vmatmul.mubr.f32.gmra.mrb[0].mxu0 %v145
    %v225 = vpop.f32.mrb[0].mxu0
    %v226 = vadd.f32 %v138, %v225
    %v227 = vpop.f32.mrb[0].mxu0
    %228 = vmatprep.mubr.f32.mxu0 0.0
    %229 = vmatmul.mubr.f32.gmra.mrb[0].mxu0 %v148
    %v230 = vpop.f32.mrb[0].mxu0
    %v231 = vadd.f32 %v139, %v230
    %v232 = vpop.f32.mrb[0].mxu0
    %233 = vmatprep.mubr.f32.mxu0 0.0
    %234 = vmatmul.mubr.f32.gmra.mrb[0].mxu0 %v151
    %v235 = vpop.f32.mrb[0].mxu0
    %v236 = vadd.f32 %v140, %v235
    %v237 = vpop.f32.mrb[0].mxu0
    %238 = vmatprep.mubr.f32.mxu0 0.0
    %239 = vmatmul.mubr.f32.gmra.mrb[0].mxu0 %v154
    %v240 = vpop.f32.mrb[0].mxu0
    %v241 = vadd.f32 %v141, %v240
    %v242 = vpop.f32.mrb[0].mxu0
    %243 = vmatprep.mubr.f32.mxu0 0.0
    %244 = vmatmul.mubr.f32.gmra.mrb[0].mxu0 %v157
    %v245 = vpop.f32.mrb[0].mxu0
    %v246 = vadd.f32 %v142, %v245
    %v247 = vpop.f32.mrb[0].mxu0
    %248 = vdwg.mxu0
    %v249 = vld [vmem:[%s7] sm:$0x1]
    %v250 = vld [vmem:[%s9] sm:$0x1]
    %vm251 = vcmask 261120
    %v252 = vsel %vm251, %v226, 0.0
    %253 = vadd.xlane.f32.xlu0 %v252
    %v254 = vpop.xlane.xlu0 %253
    %v255 = vsel %vm251, %v231, 0.0
    %256 = vadd.xlane.f32.xlu0 %v255
    %v257 = vpop.xlane.xlu0 %256
    %v258 = vsel %vm251, %v236, 0.0
    %259 = vadd.xlane.f32.xlu0 %v258
    %v260 = vpop.xlane.xlu0 %259
    %v261 = vsel %vm251, %v241, 0.0
    %262 = vadd.xlane.f32.xlu0 %v261
    %v263 = vpop.xlane.xlu0 %262
    %vm264 = vcmask 254976
    %v265 = vsel %vm264, %v246, 0.0
    %266 = vadd.xlane.f32.xlu0 %v265
    %v267 = vpop.xlane.xlu0 %266
    %v268 = vrcp.pop 32.0
    %v269 = vmul.f32 %v254, %v268
    %v270 = vmul.f32 %v257, %v268
    %v271 = vmul.f32 %v260, %v268
    %v272 = vmul.f32 %v263, %v268
    %v273 = vmul.f32 %v267, %v268
    %v274 = vsub.f32 %v226, %v269
    %v275 = vsub.f32 %v231, %v270
    %v276 = vsub.f32 %v236, %v271
    %v277 = vsub.f32 %v241, %v272
    %v278 = vsub.f32 %v246, %v273
    %v279 = vmul.f32 %v274, %v274
    %v280 = vmul.f32 %v275, %v275
    %v281 = vmul.f32 %v276, %v276
    %v282 = vmul.f32 %v277, %v277
    %v283 = vmul.f32 %v278, %v278
    %v284 = vsel %vm251, %v279, 0.0
    %285 = vadd.xlane.f32.xlu0 %v284
    %v286 = vpop.xlane.xlu0 %285
    %v287 = vsel %vm251, %v280, 0.0
    %288 = vadd.xlane.f32.xlu0 %v287
    %v289 = vpop.xlane.xlu0 %288
    %v290 = vsel %vm251, %v281, 0.0
    %291 = vadd.xlane.f32.xlu0 %v290
    %v292 = vpop.xlane.xlu0 %291
    %v293 = vsel %vm251, %v282, 0.0
    %294 = vadd.xlane.f32.xlu0 %v293
    %v295 = vpop.xlane.xlu0 %294
    %v296 = vsel %vm264, %v283, 0.0
    %297 = vadd.xlane.f32.xlu0 %v296
    %v298 = vpop.xlane.xlu0 %297
    %v299 = vmul.f32 %v286, %v268
    %v300 = vmul.f32 %v289, %v268
    %v301 = vmul.f32 %v292, %v268
    %v302 = vmul.f32 %v295, %v268
    %v303 = vmul.f32 %v298, %v268
    %v304 = vadd.f32 %v299, 1e-06
    %v305 = vadd.f32 %v300, 1e-06
    %v306 = vadd.f32 %v301, 1e-06
    %v307 = vadd.f32 %v302, 1e-06
    %v308 = vadd.f32 %v303, 1e-06
    %v309 = vrsqrt.pop %v304
    %v310 = vrsqrt.pop %v305
    %v311 = vrsqrt.pop %v306
    %v312 = vrsqrt.pop %v307
    %v313 = vrsqrt.pop %v308
    %v314 = vmul.f32 %v274, %v309
    %v315 = vmul.f32 %v275, %v310
    %v316 = vmul.f32 %v276, %v311
    %v317 = vmul.f32 %v277, %v312
    %v318 = vmul.f32 %v278, %v313
    %v320 = vlaneseq
    %v321 = vshrl.u32 %v320, 7
    %v322 = vsub.s32 0, %v321
    %v323 = vrot.slane %v249, %v322
    %v325 = vmul.f32 %v314, %v323
    %v326 = vmul.f32 %v315, %v323
    %v327 = vmul.f32 %v316, %v323
    %v328 = vmul.f32 %v317, %v323
    %v329 = vmul.f32 %v318, %v323
    %v331 = vlaneseq
    %v332 = vshrl.u32 %v331, 7
    %v333 = vsub.s32 0, %v332
    %v334 = vrot.slane %v250, %v333
    %v336 = vadd.f32 %v325, %v334
    %v337 = vadd.f32 %v326, %v334
    %v338 = vadd.f32 %v327, %v334
    %v339 = vadd.f32 %v328, %v334
    %v340 = vadd.f32 %v329, %v334
    %v341 = vld [vmem:[%s11] sm:$0xff]
    %v342 = vld [vmem:[%s11 + $0x8] sm:$0xff]
    %v343 = vld [vmem:[%s11 + $0x10] sm:$0xff]
    %v344 = vld [vmem:[%s11 + $0x18] sm:$0xff]
    %v345 = vld [vmem:[%s13] sm:$0x1]
    %v347 = vlaneseq
    %v348 = vshrl.u32 %v347, 7
    %v349 = vsub.s32 0, %v348
    %v350 = vrot.slane %v345, %v349
    %v353 = vsel %vm251, %v336, 0
    %v356 = vsel %vm251, %v337, 0
    %v359 = vsel %vm251, %v338, 0
    %v362 = vsel %vm251, %v339, 0
    %v365 = vsel %vm251, %v340, 0
    %367 = vmatprep.subr.mxu0 0.0
    %368 = vmatpush1.msra.mxu0 %v341
    %369 = vmatprep.subr.mxu0 0.0
    %370 = vmatpush1.msra.mxu0 %v342
    %371 = vmatprep.subr.mxu0 0.0
    %372 = vmatpush1.msra.mxu0 %v343
    %373 = vmatprep.subr.mxu0 0.0
    %374 = vmatpush1.msra.mxu0 %v344
    %375 = vmatprep.subr.mxu0 0.0
    %376 = vmatpush1.msra.mxu0 0.0
    %377 = vmatprep.subr.mxu0 0.0
    %378 = vmatpush1.msra.mxu0 0.0
    %379 = vmatprep.subr.mxu0 0.0
    %380 = vmatpush1.msra.mxu0 0.0
    %381 = vmatprep.subr.mxu0 0.0
    %382 = vmatpush1.msra.mxu0 0.0
    %383 = vmatprep.subr.mxu0 0.0
    %384 = vmatpush1.msra.mxu0 0.0
    %385 = vmatprep.subr.mxu0 0.0
    %386 = vmatpush1.msra.mxu0 0.0
    %387 = vmatprep.subr.mxu0 0.0
    %388 = vmatpush1.msra.mxu0 0.0
    %389 = vmatprep.subr.mxu0 0.0
    %390 = vmatpush1.msra.mxu0 0.0
    %391 = vmatprep.subr.mxu0 0.0
    %392 = vmatpush1.msra.mxu0 0.0
    %393 = vmatprep.subr.mxu0 0.0
    %394 = vmatpush1.msra.mxu0 0.0
    %395 = vmatprep.subr.mxu0 0.0
    %396 = vmatpush1.msra.mxu0 0.0
    %397 = vmatprep.subr.mxu0 0.0
    %398 = vmatpush1.msra.mxu0 0.0
    %399 = vmatprep.subr.mxu0 0.0
    %400 = vmatpush1.msra.mxu0 0.0
    %401 = vmatprep.subr.mxu0 0.0
    %402 = vmatpush1.msra.mxu0 0.0
    %403 = vmatprep.subr.mxu0 0.0
    %404 = vmatpush1.msra.mxu0 0.0
    %405 = vmatprep.subr.mxu0 0.0
    %406 = vmatpush1.msra.mxu0 0.0
    %407 = vmatprep.subr.mxu0 0.0
    %408 = vmatpush1.msra.mxu0 0.0
    %409 = vmatprep.subr.mxu0 0.0
    %410 = vmatpush1.msra.mxu0 0.0
    %411 = vmatprep.subr.mxu0 0.0
    %412 = vmatpush1.msra.mxu0 0.0
    %413 = vmatprep.subr.mxu0 0.0
    %414 = vmatpush1.msra.mxu0 0.0
    %415 = vmatprep.subr.mxu0 0.0
    %416 = vmatpush1.msra.mxu0 0.0
    %417 = vmatprep.subr.mxu0 0.0
    %418 = vmatpush1.msra.mxu0 0.0
    %419 = vmatprep.subr.mxu0 0.0
    %420 = vmatpush1.msra.mxu0 0.0
    %421 = vmatprep.subr.mxu0 0.0
    %422 = vmatpush1.msra.mxu0 0.0
    %423 = vmatprep.subr.mxu0 0.0
    %424 = vmatpush1.msra.mxu0 0.0
    %425 = vmatprep.subr.mxu0 0.0
    %426 = vmatpush1.msra.mxu0 0.0
    %427 = vmatprep.subr.mxu0 0.0
    %428 = vmatpush1.msra.mxu0 0.0
    %429 = vmatprep.subr.mxu0 0.0
    %430 = vmatpush1.msra.mxu0 0.0
    %431 = vmatprep.mubr.f32.mxu0 0.0
    %432 = vmatmul.mubr.f32.gmra.mrb[0].mxu0 %v353
    %v433 = vpop.f32.mrb[0].mxu0
    %v434 = vadd.f32 %v350, %v433
    %v435 = vpop.f32.mrb[0].mxu0
    %436 = vmatprep.mubr.f32.mxu0 0.0
    %437 = vmatmul.mubr.f32.gmra.mrb[0].mxu0 %v356
    %v438 = vpop.f32.mrb[0].mxu0
    %v439 = vadd.f32 %v350, %v438
    %v440 = vpop.f32.mrb[0].mxu0
    %441 = vmatprep.mubr.f32.mxu0 0.0
    %442 = vmatmul.mubr.f32.gmra.mrb[0].mxu0 %v359
    %v443 = vpop.f32.mrb[0].mxu0
    %v444 = vadd.f32 %v350, %v443
    %v445 = vpop.f32.mrb[0].mxu0
    %446 = vmatprep.mubr.f32.mxu0 0.0
    %447 = vmatmul.mubr.f32.gmra.mrb[0].mxu0 %v362
    %v448 = vpop.f32.mrb[0].mxu0
    %v449 = vadd.f32 %v350, %v448
    %v450 = vpop.f32.mrb[0].mxu0
    %451 = vmatprep.mubr.f32.mxu0 0.0
    %452 = vmatmul.mubr.f32.gmra.mrb[0].mxu0 %v365
    %v453 = vpop.f32.mrb[0].mxu0
    %v454 = vadd.f32 %v350, %v453
    %v455 = vpop.f32.mrb[0].mxu0
    %456 = vdwg.mxu0
    %460 = vrot.lane.b32.xlu0 %v434, 96
    %v461 = vpop.permute.xlu0 %460
    %462 = vrot.lane.b32.xlu0 %v439, 96
    %v463 = vpop.permute.xlu0 %462
    %464 = vrot.lane.b32.xlu0 %v444, 96
    %v465 = vpop.permute.xlu0 %464
    %v466 = vsel %vm143, %v434, 0
    %v468 = vsel %vm143, %v439, 0
    %v470 = vsel %vm143, %v444, 0
    %v472 = vsel %vm143, %v461, 0
    %v474 = vsel %vm143, %v463, 0
    %v476 = vsel %vm143, %v465, 0
    %478 = vmatprep.subr.mxu0 0.0
    %479 = vmatpush1.xpose.msra.mxu0 %v472
    %480 = vmatprep.subr.mxu0 0.0
    %481 = vmatpush1.xpose.msra.mxu0 %v474
    %482 = vmatprep.subr.mxu0 0.0
    %483 = vmatpush1.xpose.msra.mxu0 %v476
    %484 = vmatprep.subr.mxu0 0.0
    %485 = vmatpush1.xpose.msra.mxu0 0.0
    %486 = vmatprep.subr.mxu0 0.0
    %487 = vmatpush1.xpose.msra.mxu0 0.0
    %488 = vmatprep.subr.mxu0 0.0
    %489 = vmatpush1.xpose.msra.mxu0 0.0
    %490 = vmatprep.subr.mxu0 0.0
    %491 = vmatpush1.xpose.msra.mxu0 0.0
    %492 = vmatprep.subr.mxu0 0.0
    %493 = vmatpush1.xpose.msra.mxu0 0.0
    %494 = vmatprep.subr.mxu0 0.0
    %495 = vmatpush1.xpose.msra.mxu0 0.0
    %496 = vmatprep.subr.mxu0 0.0
    %497 = vmatpush1.xpose.msra.mxu0 0.0
    %498 = vmatprep.subr.mxu0 0.0
    %499 = vmatpush1.xpose.msra.mxu0 0.0
    %500 = vmatprep.subr.mxu0 0.0
    %501 = vmatpush1.xpose.msra.mxu0 0.0
    %502 = vmatprep.subr.mxu0 0.0
    %503 = vmatpush1.xpose.msra.mxu0 0.0
    %504 = vmatprep.subr.mxu0 0.0
    %505 = vmatpush1.xpose.msra.mxu0 0.0
    %506 = vmatprep.subr.mxu0 0.0
    %507 = vmatpush1.xpose.msra.mxu0 0.0
    %508 = vmatprep.subr.mxu0 0.0
    %509 = vmatpush1.xpose.msra.mxu0 0.0
    %510 = vmatprep.subr.mxu0 0.0
    %511 = vmatpush1.xpose.msra.mxu0 0.0
    %512 = vmatprep.subr.mxu0 0.0
    %513 = vmatpush1.xpose.msra.mxu0 0.0
    %514 = vmatprep.subr.mxu0 0.0
    %515 = vmatpush1.xpose.msra.mxu0 0.0
    %516 = vmatprep.subr.mxu0 0.0
    %517 = vmatpush1.xpose.msra.mxu0 0.0
    %518 = vmatprep.subr.mxu0 0.0
    %519 = vmatpush1.xpose.msra.mxu0 0.0
    %520 = vmatprep.subr.mxu0 0.0
    %521 = vmatpush1.xpose.msra.mxu0 0.0
    %522 = vmatprep.subr.mxu0 0.0
    %523 = vmatpush1.xpose.msra.mxu0 0.0
    %524 = vmatprep.subr.mxu0 0.0
    %525 = vmatpush1.xpose.msra.mxu0 0.0
    %526 = vmatprep.subr.mxu0 0.0
    %527 = vmatpush1.xpose.msra.mxu0 0.0
    %528 = vmatprep.subr.mxu0 0.0
    %529 = vmatpush1.xpose.msra.mxu0 0.0
    %530 = vmatprep.subr.mxu0 0.0
    %531 = vmatpush1.xpose.msra.mxu0 0.0
    %532 = vmatprep.subr.mxu0 0.0
    %533 = vmatpush1.xpose.msra.mxu0 0.0
    %534 = vmatprep.subr.mxu0 0.0
    %535 = vmatpush1.xpose.msra.mxu0 0.0
    %536 = vmatprep.subr.mxu0 0.0
    %537 = vmatpush1.xpose.msra.mxu0 0.0
    %538 = vmatprep.subr.mxu0 0.0
    %539 = vmatpush1.xpose.msra.mxu0 0.0
    %540 = vmatprep.subr.mxu0 0.0
    %541 = vmatpush1.xpose.msra.mxu0 0.0
    %542 = vmatprep.mubr.f32.mxu0 0.0
    %543 = vmatmul.mubr.f32.gmra.mrb[0].mxu0 %v466
    %v544 = vpop.f32.mrb[0].mxu0
    %v545 = vadd.f32 0.0, %v544
    %v546 = vpop.f32.mrb[0].mxu0
    %547 = vmatprep.mubr.f32.mxu0 0.0
    %548 = vmatmul.mubr.f32.gmra.mrb[0].mxu0 %v468
    %v549 = vpop.f32.mrb[0].mxu0
    %v550 = vadd.f32 0.0, %v549
    %v551 = vpop.f32.mrb[0].mxu0
    %552 = vmatprep.mubr.f32.mxu0 0.0
    %553 = vmatmul.mubr.f32.gmra.mrb[0].mxu0 %v470
    %v554 = vpop.f32.mrb[0].mxu0
    %v555 = vadd.f32 0.0, %v554
    %v556 = vpop.f32.mrb[0].mxu0
    %557 = vdwg.mxu0
    %v558 = vmul.f32 %v545, 0.25
    %v559 = vmul.f32 %v550, 0.25
    %v560 = vmul.f32 %v555, 0.25
    %vm561 = vcmask 138240
    %v562 = vsel %vm561, %v558, -inf
    %563 = vmax.xlane.f32.xlu0 %v562
    %v564 = vpop.xlane.xlu0 %563
    %v565 = vsel %vm561, %v559, -inf
    %566 = vmax.xlane.f32.xlu0 %v565
    %v567 = vpop.xlane.xlu0 %566
    %vm568 = vcmask 131072
    %v569 = vsel %vm568, %v560, -inf
    %570 = vmax.xlane.f32.xlu0 %v569
    %v571 = vpop.xlane.xlu0 %570
    %v572 = vsub.f32 %v558, %v564
    %v573 = vsub.f32 %v559, %v567
    %v574 = vsub.f32 %v560, %v571
    %v575 = vmul.f32 %v572, 1.442695
    %v576 = vpow.pop %v575
    %v577 = vmul.f32 %v573, 1.442695
    %v578 = vpow.pop %v577
    %v579 = vmul.f32 %v574, 1.442695
    %v580 = vpow.pop %v579
    %v581 = vsel %vm561, %v576, 0.0
    %582 = vadd.xlane.f32.xlu0 %v581
    %v583 = vpop.xlane.xlu0 %582
    %v584 = vsel %vm561, %v578, 0.0
    %585 = vadd.xlane.f32.xlu0 %v584
    %v586 = vpop.xlane.xlu0 %585
    %v587 = vsel %vm568, %v580, 0.0
    %588 = vadd.xlane.f32.xlu0 %v587
    %v589 = vpop.xlane.xlu0 %588
    %v590 = vrcp.pop %v583
    %v591 = vrcp.pop %v586
    %v592 = vrcp.pop %v589
    %v593 = vmul.f32 %v576, %v590
    %v594 = vmul.f32 %v578, %v591
    %v595 = vmul.f32 %v580, %v592
    %596 = vrot.lane.b32.xlu0 %v434, 64
    %v597 = vpop.permute.xlu0 %596
    %598 = vrot.lane.b32.xlu0 %v439, 64
    %v599 = vpop.permute.xlu0 %598
    %600 = vrot.lane.b32.xlu0 %v444, 64
    %v601 = vpop.permute.xlu0 %600
    %v605 = vsel %vm561, %v593, 0
    %v608 = vsel %vm561, %v594, 0
    %v611 = vsel %vm561, %v595, 0
    %vm613 = vcmask 1040384
    %v614 = vsel %vm613, %v601, 0
    %616 = vmatprep.subr.mxu0 0.0
    %617 = vmatpush1.msra.mxu0 %v597
    %618 = vmatprep.subr.mxu0 0.0
    %619 = vmatpush1.msra.mxu0 %v599
    %620 = vmatprep.subr.mxu0 0.0
    %621 = vmatpush1.msra.mxu0 %v614
    %622 = vmatprep.subr.mxu0 0.0
    %623 = vmatpush1.msra.mxu0 0.0
    %624 = vmatprep.subr.mxu0 0.0
    %625 = vmatpush1.msra.mxu0 0.0
    %626 = vmatprep.subr.mxu0 0.0
    %627 = vmatpush1.msra.mxu0 0.0
    %628 = vmatprep.subr.mxu0 0.0
    %629 = vmatpush1.msra.mxu0 0.0
    %630 = vmatprep.subr.mxu0 0.0
    %631 = vmatpush1.msra.mxu0 0.0
    %632 = vmatprep.subr.mxu0 0.0
    %633 = vmatpush1.msra.mxu0 0.0
    %634 = vmatprep.subr.mxu0 0.0
    %635 = vmatpush1.msra.mxu0 0.0
    %636 = vmatprep.subr.mxu0 0.0
    %637 = vmatpush1.msra.mxu0 0.0
    %638 = vmatprep.subr.mxu0 0.0
    %639 = vmatpush1.msra.mxu0 0.0
    %640 = vmatprep.subr.mxu0 0.0
    %641 = vmatpush1.msra.mxu0 0.0
    %642 = vmatprep.subr.mxu0 0.0
    %643 = vmatpush1.msra.mxu0 0.0
    %644 = vmatprep.subr.mxu0 0.0
    %645 = vmatpush1.msra.mxu0 0.0
    %646 = vmatprep.subr.mxu0 0.0
    %647 = vmatpush1.msra.mxu0 0.0
    %648 = vmatprep.subr.mxu0 0.0
    %649 = vmatpush1.msra.mxu0 0.0
    %650 = vmatprep.subr.mxu0 0.0
    %651 = vmatpush1.msra.mxu0 0.0
    %652 = vmatprep.subr.mxu0 0.0
    %653 = vmatpush1.msra.mxu0 0.0
    %654 = vmatprep.subr.mxu0 0.0
    %655 = vmatpush1.msra.mxu0 0.0
    %656 = vmatprep.subr.mxu0 0.0
    %657 = vmatpush1.msra.mxu0 0.0
    %658 = vmatprep.subr.mxu0 0.0
    %659 = vmatpush1.msra.mxu0 0.0
    %660 = vmatprep.subr.mxu0 0.0
    %661 = vmatpush1.msra.mxu0 0.0
    %662 = vmatprep.subr.mxu0 0.0
    %663 = vmatpush1.msra.mxu0 0.0
    %664 = vmatprep.subr.mxu0 0.0
    %665 = vmatpush1.msra.mxu0 0.0
    %666 = vmatprep.subr.mxu0 0.0
    %667 = vmatpush1.msra.mxu0 0.0
    %668 = vmatprep.subr.mxu0 0.0
    %669 = vmatpush1.msra.mxu0 0.0
    %670 = vmatprep.subr.mxu0 0.0
    %671 = vmatpush1.msra.mxu0 0.0
    %672 = vmatprep.subr.mxu0 0.0
    %673 = vmatpush1.msra.mxu0 0.0
    %674 = vmatprep.subr.mxu0 0.0
    %675 = vmatpush1.msra.mxu0 0.0
    %676 = vmatprep.subr.mxu0 0.0
    %677 = vmatpush1.msra.mxu0 0.0
    %678 = vmatprep.subr.mxu0 0.0
    %679 = vmatpush1.msra.mxu0 0.0
    %680 = vmatprep.mubr.f32.mxu0 0.0
    %681 = vmatmul.mubr.f32.gmra.mrb[0].mxu0 %v605
    %v682 = vpop.f32.mrb[0].mxu0
    %v683 = vadd.f32 0.0, %v682
    %v684 = vpop.f32.mrb[0].mxu0
    %685 = vmatprep.mubr.f32.mxu0 0.0
    %686 = vmatmul.mubr.f32.gmra.mrb[0].mxu0 %v608
    %v687 = vpop.f32.mrb[0].mxu0
    %v688 = vadd.f32 0.0, %v687
    %v689 = vpop.f32.mrb[0].mxu0
    %690 = vmatprep.mubr.f32.mxu0 0.0
    %691 = vmatmul.mubr.f32.gmra.mrb[0].mxu0 %v611
    %v692 = vpop.f32.mrb[0].mxu0
    %v693 = vadd.f32 0.0, %v692
    %v694 = vpop.f32.mrb[0].mxu0
    %695 = vdwg.mxu0
    %696 = vst.msk [vmem:[#allocation2] sm:$0xff] %vm143, %v683
    %697 = vst.msk [vmem:[#allocation2 + $0x8] sm:$0xff] %vm143, %v688
    %vm698 = vcmask 122880
    %699 = vst.msk [vmem:[#allocation2 + $0x10] sm:$0x1] %vm698, %v693
    %700 = vrot.lane.b32.xlu0 %v434, 112
    %v701 = vpop.permute.xlu0 %700
    %702 = vrot.lane.b32.xlu0 %v439, 112
    %v703 = vpop.permute.xlu0 %702
    %704 = vrot.lane.b32.xlu0 %v444, 112
    %v705 = vpop.permute.xlu0 %704
    %706 = vrot.lane.b32.xlu0 %v434, 80
    %v707 = vpop.permute.xlu0 %706
    %708 = vrot.lane.b32.xlu0 %v439, 80
    %v709 = vpop.permute.xlu0 %708
    %710 = vrot.lane.b32.xlu0 %v444, 80
    %v711 = vpop.permute.xlu0 %710
    %v712 = vsel %vm143, %v701, 0
    %v714 = vsel %vm143, %v703, 0
    %v716 = vsel %vm143, %v705, 0
    %v718 = vsel %vm143, %v707, 0
    %v720 = vsel %vm143, %v709, 0
    %v722 = vsel %vm143, %v711, 0
    %724 = vmatprep.subr.mxu0 0.0
    %725 = vmatpush1.xpose.msra.mxu0 %v718
    %726 = vmatprep.subr.mxu0 0.0
    %727 = vmatpush1.xpose.msra.mxu0 %v720
    %728 = vmatprep.subr.mxu0 0.0
    %729 = vmatpush1.xpose.msra.mxu0 %v722
    %730 = vmatprep.subr.mxu0 0.0
    %731 = vmatpush1.xpose.msra.mxu0 0.0
    %732 = vmatprep.subr.mxu0 0.0
    %733 = vmatpush1.xpose.msra.mxu0 0.0
    %734 = vmatprep.subr.mxu0 0.0
    %735 = vmatpush1.xpose.msra.mxu0 0.0
    %736 = vmatprep.subr.mxu0 0.0
    %737 = vmatpush1.xpose.msra.mxu0 0.0
    %738 = vmatprep.subr.mxu0 0.0
    %739 = vmatpush1.xpose.msra.mxu0 0.0
    %740 = vmatprep.subr.mxu0 0.0
    %741 = vmatpush1.xpose.msra.mxu0 0.0
    %742 = vmatprep.subr.mxu0 0.0
    %743 = vmatpush1.xpose.msra.mxu0 0.0
    %744 = vmatprep.subr.mxu0 0.0
    %745 = vmatpush1.xpose.msra.mxu0 0.0
    %746 = vmatprep.subr.mxu0 0.0
    %747 = vmatpush1.xpose.msra.mxu0 0.0
    %748 = vmatprep.subr.mxu0 0.0
    %749 = vmatpush1.xpose.msra.mxu0 0.0
    %750 = vmatprep.subr.mxu0 0.0
    %751 = vmatpush1.xpose.msra.mxu0 0.0
    %752 = vmatprep.subr.mxu0 0.0
    %753 = vmatpush1.xpose.msra.mxu0 0.0
    %754 = vmatprep.subr.mxu0 0.0
    %755 = vmatpush1.xpose.msra.mxu0 0.0
    %756 = vmatprep.subr.mxu0 0.0
    %757 = vmatpush1.xpose.msra.mxu0 0.0
    %758 = vmatprep.subr.mxu0 0.0
    %759 = vmatpush1.xpose.msra.mxu0 0.0
    %760 = vmatprep.subr.mxu0 0.0
    %761 = vmatpush1.xpose.msra.mxu0 0.0
    %762 = vmatprep.subr.mxu0 0.0
    %763 = vmatpush1.xpose.msra.mxu0 0.0
    %764 = vmatprep.subr.mxu0 0.0
    %765 = vmatpush1.xpose.msra.mxu0 0.0
    %766 = vmatprep.subr.mxu0 0.0
    %767 = vmatpush1.xpose.msra.mxu0 0.0
    %768 = vmatprep.subr.mxu0 0.0
    %769 = vmatpush1.xpose.msra.mxu0 0.0
    %770 = vmatprep.subr.mxu0 0.0
    %771 = vmatpush1.xpose.msra.mxu0 0.0
    %772 = vmatprep.subr.mxu0 0.0
    %773 = vmatpush1.xpose.msra.mxu0 0.0
    %774 = vmatprep.subr.mxu0 0.0
    %775 = vmatpush1.xpose.msra.mxu0 0.0
    %776 = vmatprep.subr.mxu0 0.0
    %777 = vmatpush1.xpose.msra.mxu0 0.0
    %778 = vmatprep.subr.mxu0 0.0
    %779 = vmatpush1.xpose.msra.mxu0 0.0
    %780 = vmatprep.subr.mxu0 0.0
    %781 = vmatpush1.xpose.msra.mxu0 0.0
    %782 = vmatprep.subr.mxu0 0.0
    %783 = vmatpush1.xpose.msra.mxu0 0.0
    %784 = vmatprep.subr.mxu0 0.0
    %785 = vmatpush1.xpose.msra.mxu0 0.0
    %786 = vmatprep.subr.mxu0 0.0
    %787 = vmatpush1.xpose.msra.mxu0 0.0
    %788 = vmatprep.mubr.f32.mxu0 0.0
    %789 = vmatmul.mubr.f32.gmra.mrb[0].mxu0 %v712
    %v790 = vpop.f32.mrb[0].mxu0
    %v791 = vadd.f32 0.0, %v790
    %v792 = vpop.f32.mrb[0].mxu0
    %793 = vmatprep.mubr.f32.mxu0 0.0
    %794 = vmatmul.mubr.f32.gmra.mrb[0].mxu0 %v714
    %v795 = vpop.f32.mrb[0].mxu0
    %v796 = vadd.f32 0.0, %v795
    %v797 = vpop.f32.mrb[0].mxu0
    %798 = vmatprep.mubr.f32.mxu0 0.0
    %799 = vmatmul.mubr.f32.gmra.mrb[0].mxu0 %v716
    %v800 = vpop.f32.mrb[0].mxu0
    %v801 = vadd.f32 0.0, %v800
    %v802 = vpop.f32.mrb[0].mxu0
    %803 = vdwg.mxu0
    %v804 = vmul.f32 %v791, 0.25
    %v805 = vmul.f32 %v796, 0.25
    %v806 = vmul.f32 %v801, 0.25
    %v807 = vsel %vm561, %v804, -inf
    %808 = vmax.xlane.f32.xlu0 %v807
    %v809 = vpop.xlane.xlu0 %808
    %v810 = vsel %vm561, %v805, -inf
    %811 = vmax.xlane.f32.xlu0 %v810
    %v812 = vpop.xlane.xlu0 %811
    %v813 = vsel %vm568, %v806, -inf
    %814 = vmax.xlane.f32.xlu0 %v813
    %v815 = vpop.xlane.xlu0 %814
    %v816 = vsub.f32 %v804, %v809
    %v817 = vsub.f32 %v805, %v812
    %v818 = vsub.f32 %v806, %v815
    %v819 = vmul.f32 %v816, 1.442695
    %v820 = vpow.pop %v819
    %v821 = vmul.f32 %v817, 1.442695
    %v822 = vpow.pop %v821
    %v823 = vmul.f32 %v818, 1.442695
    %v824 = vpow.pop %v823
    %v825 = vsel %vm561, %v820, 0.0
    %826 = vadd.xlane.f32.xlu0 %v825
    %v827 = vpop.xlane.xlu0 %826
    %v828 = vsel %vm561, %v822, 0.0
    %829 = vadd.xlane.f32.xlu0 %v828
    %v830 = vpop.xlane.xlu0 %829
    %v831 = vsel %vm568, %v824, 0.0
    %832 = vadd.xlane.f32.xlu0 %v831
    %v833 = vpop.xlane.xlu0 %832
    %v834 = vrcp.pop %v827
    %v835 = vrcp.pop %v830
    %v836 = vrcp.pop %v833
    %v837 = vmul.f32 %v820, %v834
    %v838 = vmul.f32 %v822, %v835
    %v839 = vmul.f32 %v824, %v836
    %840 = vrot.lane.b32.xlu0 %v434, 48
    %v841 = vpop.permute.xlu0 %840
    %842 = vrot.lane.b32.xlu0 %v439, 48
    %v843 = vpop.permute.xlu0 %842
    %844 = vrot.lane.b32.xlu0 %v444, 48
    %v845 = vpop.permute.xlu0 %844
    %v849 = vsel %vm561, %v837, 0
    %v852 = vsel %vm561, %v838, 0
    %v855 = vsel %vm561, %v839, 0
    %v857 = vsel %vm613, %v845, 0
    %859 = vmatprep.subr.mxu0 0.0
    %860 = vmatpush1.msra.mxu0 %v841
    %861 = vmatprep.subr.mxu0 0.0
    %862 = vmatpush1.msra.mxu0 %v843
    %863 = vmatprep.subr.mxu0 0.0
    %864 = vmatpush1.msra.mxu0 %v857
    %865 = vmatprep.subr.mxu0 0.0
    %866 = vmatpush1.msra.mxu0 0.0
    %867 = vmatprep.subr.mxu0 0.0
    %868 = vmatpush1.msra.mxu0 0.0
    %869 = vmatprep.subr.mxu0 0.0
    %870 = vmatpush1.msra.mxu0 0.0
    %871 = vmatprep.subr.mxu0 0.0
    %872 = vmatpush1.msra.mxu0 0.0
    %873 = vmatprep.subr.mxu0 0.0
    %874 = vmatpush1.msra.mxu0 0.0
    %875 = vmatprep.subr.mxu0 0.0
    %876 = vmatpush1.msra.mxu0 0.0
    %877 = vmatprep.subr.mxu0 0.0
    %878 = vmatpush1.msra.mxu0 0.0
    %879 = vmatprep.subr.mxu0 0.0
    %880 = vmatpush1.msra.mxu0 0.0
    %881 = vmatprep.subr.mxu0 0.0
    %882 = vmatpush1.msra.mxu0 0.0
    %883 = vmatprep.subr.mxu0 0.0
    %884 = vmatpush1.msra.mxu0 0.0
    %885 = vmatprep.subr.mxu0 0.0
    %886 = vmatpush1.msra.mxu0 0.0
    %887 = vmatprep.subr.mxu0 0.0
    %888 = vmatpush1.msra.mxu0 0.0
    %889 = vmatprep.subr.mxu0 0.0
    %890 = vmatpush1.msra.mxu0 0.0
    %891 = vmatprep.subr.mxu0 0.0
    %892 = vmatpush1.msra.mxu0 0.0
    %893 = vmatprep.subr.mxu0 0.0
    %894 = vmatpush1.msra.mxu0 0.0
    %895 = vmatprep.subr.mxu0 0.0
    %896 = vmatpush1.msra.mxu0 0.0
    %897 = vmatprep.subr.mxu0 0.0
    %898 = vmatpush1.msra.mxu0 0.0
    %899 = vmatprep.subr.mxu0 0.0
    %900 = vmatpush1.msra.mxu0 0.0
    %901 = vmatprep.subr.mxu0 0.0
    %902 = vmatpush1.msra.mxu0 0.0
    %903 = vmatprep.subr.mxu0 0.0
    %904 = vmatpush1.msra.mxu0 0.0
    %905 = vmatprep.subr.mxu0 0.0
    %906 = vmatpush1.msra.mxu0 0.0
    %907 = vmatprep.subr.mxu0 0.0
    %908 = vmatpush1.msra.mxu0 0.0
    %909 = vmatprep.subr.mxu0 0.0
    %910 = vmatpush1.msra.mxu0 0.0
    %911 = vmatprep.subr.mxu0 0.0
    %912 = vmatpush1.msra.mxu0 0.0
    %913 = vmatprep.subr.mxu0 0.0
    %914 = vmatpush1.msra.mxu0 0.0
    %915 = vmatprep.subr.mxu0 0.0
    %916 = vmatpush1.msra.mxu0 0.0
    %917 = vmatprep.subr.mxu0 0.0
    %918 = vmatpush1.msra.mxu0 0.0
    %919 = vmatprep.subr.mxu0 0.0
    %920 = vmatpush1.msra.mxu0 0.0
    %921 = vmatprep.subr.mxu0 0.0
    %922 = vmatpush1.msra.mxu0 0.0
    %923 = vmatprep.mubr.f32.mxu0 0.0
    %924 = vmatmul.mubr.f32.gmra.mrb[0].mxu0 %v849
    %v925 = vpop.f32.mrb[0].mxu0
    %v926 = vadd.f32 0.0, %v925
    %v927 = vpop.f32.mrb[0].mxu0
    %928 = vmatprep.mubr.f32.mxu0 0.0
    %929 = vmatmul.mubr.f32.gmra.mrb[0].mxu0 %v852
    %v930 = vpop.f32.mrb[0].mxu0
    %v931 = vadd.f32 0.0, %v930
    %v932 = vpop.f32.mrb[0].mxu0
    %933 = vmatprep.mubr.f32.mxu0 0.0
    %934 = vmatmul.mubr.f32.gmra.mrb[0].mxu0 %v855
    %v935 = vpop.f32.mrb[0].mxu0
    %v936 = vadd.f32 0.0, %v935
    %v937 = vpop.f32.mrb[0].mxu0
    %938 = vdwg.mxu0
    %942 = vrot.lane.b32.xlu0 %v926, 16
    %v943 = vpop.permute.xlu0 %942
    %944 = vrot.lane.b32.xlu0 %v931, 16
    %v945 = vpop.permute.xlu0 %944
    %946 = vrot.lane.b32.xlu0 %v936, 16
    %v947 = vpop.permute.xlu0 %946
    %vm951 = vcmask 261248
    %952 = vst.msk [vmem:[#allocation2] sm:$0xff] %vm951, %v943
    %953 = vst.msk [vmem:[#allocation2 + $0x8] sm:$0xff] %vm951, %v945
    %vm954 = vcmask 254080
    %955 = vst.msk [vmem:[#allocation2 + $0x10] sm:$0x1] %vm954, %v947
    %vm958 = vcmask 1046528
    %v959 = vrot.slane %v444, 1
    %v960 = vrot.slane %v449, 1
    %v961 = vsel %vm958, %v959, %v960
    %v962 = vrot.slane %v454, 1
    %v963 = vsel %vm958, %v960, %v962
    %964 = vrot.lane.b32.xlu0 %v961, 96
    %v965 = vpop.permute.xlu0 %964
    %966 = vrot.lane.b32.xlu0 %v963, 96
    %v967 = vpop.permute.xlu0 %966
    %968 = vrot.lane.b32.xlu0 %v962, 96
    %v969 = vpop.permute.xlu0 %968
    %v970 = vsel %vm143, %v961, 0
    %v972 = vsel %vm143, %v963, 0
    %v974 = vsel %vm143, %v962, 0
    %v976 = vsel %vm143, %v965, 0
    %v978 = vsel %vm143, %v967, 0
    %v980 = vsel %vm143, %v969, 0
    %982 = vmatprep.subr.mxu0 0.0
    %983 = vmatpush1.xpose.msra.mxu0 %v976
    %984 = vmatprep.subr.mxu0 0.0
    %985 = vmatpush1.xpose.msra.mxu0 %v978
    %986 = vmatprep.subr.mxu0 0.0
    %987 = vmatpush1.xpose.msra.mxu0 %v980
    %988 = vmatprep.subr.mxu0 0.0
    %989 = vmatpush1.xpose.msra.mxu0 0.0
    %990 = vmatprep.subr.mxu0 0.0
    %991 = vmatpush1.xpose.msra.mxu0 0.0
    %992 = vmatprep.subr.mxu0 0.0
    %993 = vmatpush1.xpose.msra.mxu0 0.0
    %994 = vmatprep.subr.mxu0 0.0
    %995 = vmatpush1.xpose.msra.mxu0 0.0
    %996 = vmatprep.subr.mxu0 0.0
    %997 = vmatpush1.xpose.msra.mxu0 0.0
    %998 = vmatprep.subr.mxu0 0.0
    %999 = vmatpush1.xpose.msra.mxu0 0.0
    %1000 = vmatprep.subr.mxu0 0.0
    %1001 = vmatpush1.xpose.msra.mxu0 0.0
    %1002 = vmatprep.subr.mxu0 0.0
    %1003 = vmatpush1.xpose.msra.mxu0 0.0
    %1004 = vmatprep.subr.mxu0 0.0
    %1005 = vmatpush1.xpose.msra.mxu0 0.0
    %1006 = vmatprep.subr.mxu0 0.0
    %1007 = vmatpush1.xpose.msra.mxu0 0.0
    %1008 = vmatprep.subr.mxu0 0.0
    %1009 = vmatpush1.xpose.msra.mxu0 0.0
    %1010 = vmatprep.subr.mxu0 0.0
    %1011 = vmatpush1.xpose.msra.mxu0 0.0
    %1012 = vmatprep.subr.mxu0 0.0
    %1013 = vmatpush1.xpose.msra.mxu0 0.0
    %1014 = vmatprep.subr.mxu0 0.0
    %1015 = vmatpush1.xpose.msra.mxu0 0.0
    %1016 = vmatprep.subr.mxu0 0.0
    %1017 = vmatpush1.xpose.msra.mxu0 0.0
    %1018 = vmatprep.subr.mxu0 0.0
    %1019 = vmatpush1.xpose.msra.mxu0 0.0
    %1020 = vmatprep.subr.mxu0 0.0
    %1021 = vmatpush1.xpose.msra.mxu0 0.0
    %1022 = vmatprep.subr.mxu0 0.0
    %1023 = vmatpush1.xpose.msra.mxu0 0.0
    %1024 = vmatprep.subr.mxu0 0.0
    %1025 = vmatpush1.xpose.msra.mxu0 0.0
    %1026 = vmatprep.subr.mxu0 0.0
    %1027 = vmatpush1.xpose.msra.mxu0 0.0
    %1028 = vmatprep.subr.mxu0 0.0
    %1029 = vmatpush1.xpose.msra.mxu0 0.0
    %1030 = vmatprep.subr.mxu0 0.0
    %1031 = vmatpush1.xpose.msra.mxu0 0.0
    %1032 = vmatprep.subr.mxu0 0.0
    %1033 = vmatpush1.xpose.msra.mxu0 0.0
    %1034 = vmatprep.subr.mxu0 0.0
    %1035 = vmatpush1.xpose.msra.mxu0 0.0
    %1036 = vmatprep.subr.mxu0 0.0
    %1037 = vmatpush1.xpose.msra.mxu0 0.0
    %1038 = vmatprep.subr.mxu0 0.0
    %1039 = vmatpush1.xpose.msra.mxu0 0.0
    %1040 = vmatprep.subr.mxu0 0.0
    %1041 = vmatpush1.xpose.msra.mxu0 0.0
    %1042 = vmatprep.subr.mxu0 0.0
    %1043 = vmatpush1.xpose.msra.mxu0 0.0
    %1044 = vmatprep.subr.mxu0 0.0
    %1045 = vmatpush1.xpose.msra.mxu0 0.0
    %1046 = vmatprep.mubr.f32.mxu0 0.0
    %1047 = vmatmul.mubr.f32.gmra.mrb[0].mxu0 %v970
    %v1048 = vpop.f32.mrb[0].mxu0
    %v1049 = vadd.f32 0.0, %v1048
    %v1050 = vpop.f32.mrb[0].mxu0
    %1051 = vmatprep.mubr.f32.mxu0 0.0
    %1052 = vmatmul.mubr.f32.gmra.mrb[0].mxu0 %v972
    %v1053 = vpop.f32.mrb[0].mxu0
    %v1054 = vadd.f32 0.0, %v1053
    %v1055 = vpop.f32.mrb[0].mxu0
    %1056 = vmatprep.mubr.f32.mxu0 0.0
    %1057 = vmatmul.mubr.f32.gmra.mrb[0].mxu0 %v974
    %v1058 = vpop.f32.mrb[0].mxu0
    %v1059 = vadd.f32 0.0, %v1058
    %v1060 = vpop.f32.mrb[0].mxu0
    %1061 = vdwg.mxu0
    %v1062 = vmul.f32 %v1049, 0.25
    %v1063 = vmul.f32 %v1054, 0.25
    %v1064 = vmul.f32 %v1059, 0.25
    %v1065 = vsel %vm561, %v1062, -inf
    %1066 = vmax.xlane.f32.xlu0 %v1065
    %v1067 = vpop.xlane.xlu0 %1066
    %v1068 = vsel %vm561, %v1063, -inf
    %1069 = vmax.xlane.f32.xlu0 %v1068
    %v1070 = vpop.xlane.xlu0 %1069
    %v1071 = vsel %vm568, %v1064, -inf
    %1072 = vmax.xlane.f32.xlu0 %v1071
    %v1073 = vpop.xlane.xlu0 %1072
    %v1074 = vsub.f32 %v1062, %v1067
    %v1075 = vsub.f32 %v1063, %v1070
    %v1076 = vsub.f32 %v1064, %v1073
    %v1077 = vmul.f32 %v1074, 1.442695
    %v1078 = vpow.pop %v1077
    %v1079 = vmul.f32 %v1075, 1.442695
    %v1080 = vpow.pop %v1079
    %v1081 = vmul.f32 %v1076, 1.442695
    %v1082 = vpow.pop %v1081
    %v1083 = vsel %vm561, %v1078, 0.0
    %1084 = vadd.xlane.f32.xlu0 %v1083
    %v1085 = vpop.xlane.xlu0 %1084
    %v1086 = vsel %vm561, %v1080, 0.0
    %1087 = vadd.xlane.f32.xlu0 %v1086
    %v1088 = vpop.xlane.xlu0 %1087
    %v1089 = vsel %vm568, %v1082, 0.0
    %1090 = vadd.xlane.f32.xlu0 %v1089
    %v1091 = vpop.xlane.xlu0 %1090
    %v1092 = vrcp.pop %v1085
    %v1093 = vrcp.pop %v1088
    %v1094 = vrcp.pop %v1091
    %v1095 = vmul.f32 %v1078, %v1092
    %v1096 = vmul.f32 %v1080, %v1093
    %v1097 = vmul.f32 %v1082, %v1094
    %1098 = vrot.lane.b32.xlu0 %v961, 64
    %v1099 = vpop.permute.xlu0 %1098
    %1100 = vrot.lane.b32.xlu0 %v963, 64
    %v1101 = vpop.permute.xlu0 %1100
    %1102 = vrot.lane.b32.xlu0 %v962, 64
    %v1103 = vpop.permute.xlu0 %1102
    %v1107 = vsel %vm561, %v1095, 0
    %v1110 = vsel %vm561, %v1096, 0
    %v1113 = vsel %vm561, %v1097, 0
    %v1115 = vsel %vm613, %v1103, 0
    %1117 = vmatprep.subr.mxu0 0.0
    %1118 = vmatpush1.msra.mxu0 %v1099
    %1119 = vmatprep.subr.mxu0 0.0
    %1120 = vmatpush1.msra.mxu0 %v1101
    %1121 = vmatprep.subr.mxu0 0.0
    %1122 = vmatpush1.msra.mxu0 %v1115
    %1123 = vmatprep.subr.mxu0 0.0
    %1124 = vmatpush1.msra.mxu0 0.0
    %1125 = vmatprep.subr.mxu0 0.0
    %1126 = vmatpush1.msra.mxu0 0.0
    %1127 = vmatprep.subr.mxu0 0.0
    %1128 = vmatpush1.msra.mxu0 0.0
    %1129 = vmatprep.subr.mxu0 0.0
    %1130 = vmatpush1.msra.mxu0 0.0
    %1131 = vmatprep.subr.mxu0 0.0
    %1132 = vmatpush1.msra.mxu0 0.0
    %1133 = vmatprep.subr.mxu0 0.0
    %1134 = vmatpush1.msra.mxu0 0.0
    %1135 = vmatprep.subr.mxu0 0.0
    %1136 = vmatpush1.msra.mxu0 0.0
    %1137 = vmatprep.subr.mxu0 0.0
    %1138 = vmatpush1.msra.mxu0 0.0
    %1139 = vmatprep.subr.mxu0 0.0
    %1140 = vmatpush1.msra.mxu0 0.0
    %1141 = vmatprep.subr.mxu0 0.0
    %1142 = vmatpush1.msra.mxu0 0.0
    %1143 = vmatprep.subr.mxu0 0.0
    %1144 = vmatpush1.msra.mxu0 0.0
    %1145 = vmatprep.subr.mxu0 0.0
    %1146 = vmatpush1.msra.mxu0 0.0
    %1147 = vmatprep.subr.mxu0 0.0
    %1148 = vmatpush1.msra.mxu0 0.0
    %1149 = vmatprep.subr.mxu0 0.0
    %1150 = vmatpush1.msra.mxu0 0.0
    %1151 = vmatprep.subr.mxu0 0.0
    %1152 = vmatpush1.msra.mxu0 0.0
    %1153 = vmatprep.subr.mxu0 0.0
    %1154 = vmatpush1.msra.mxu0 0.0
    %1155 = vmatprep.subr.mxu0 0.0
    %1156 = vmatpush1.msra.mxu0 0.0
    %1157 = vmatprep.subr.mxu0 0.0
    %1158 = vmatpush1.msra.mxu0 0.0
    %1159 = vmatprep.subr.mxu0 0.0
    %1160 = vmatpush1.msra.mxu0 0.0
    %1161 = vmatprep.subr.mxu0 0.0
    %1162 = vmatpush1.msra.mxu0 0.0
    %1163 = vmatprep.subr.mxu0 0.0
    %1164 = vmatpush1.msra.mxu0 0.0
    %1165 = vmatprep.subr.mxu0 0.0
    %1166 = vmatpush1.msra.mxu0 0.0
    %1167 = vmatprep.subr.mxu0 0.0
    %1168 = vmatpush1.msra.mxu0 0.0
    %1169 = vmatprep.subr.mxu0 0.0
    %1170 = vmatpush1.msra.mxu0 0.0
    %1171 = vmatprep.subr.mxu0 0.0
    %1172 = vmatpush1.msra.mxu0 0.0
    %1173 = vmatprep.subr.mxu0 0.0
    %1174 = vmatpush1.msra.mxu0 0.0
    %1175 = vmatprep.subr.mxu0 0.0
    %1176 = vmatpush1.msra.mxu0 0.0
    %1177 = vmatprep.subr.mxu0 0.0
    %1178 = vmatpush1.msra.mxu0 0.0
    %1179 = vmatprep.subr.mxu0 0.0
    %1180 = vmatpush1.msra.mxu0 0.0
    %1181 = vmatprep.mubr.f32.mxu0 0.0
    %1182 = vmatmul.mubr.f32.gmra.mrb[0].mxu0 %v1107
    %v1183 = vpop.f32.mrb[0].mxu0
    %v1184 = vadd.f32 0.0, %v1183
    %v1185 = vpop.f32.mrb[0].mxu0
    %1186 = vmatprep.mubr.f32.mxu0 0.0
    %1187 = vmatmul.mubr.f32.gmra.mrb[0].mxu0 %v1110
    %v1188 = vpop.f32.mrb[0].mxu0
    %v1189 = vadd.f32 0.0, %v1188
    %v1190 = vpop.f32.mrb[0].mxu0
    %1191 = vmatprep.mubr.f32.mxu0 0.0
    %1192 = vmatmul.mubr.f32.gmra.mrb[0].mxu0 %v1113
    %v1193 = vpop.f32.mrb[0].mxu0
    %v1194 = vadd.f32 0.0, %v1193
    %v1195 = vpop.f32.mrb[0].mxu0
    %1196 = vdwg.mxu0
    %1197 = vst.msk [vmem:[#allocation2 + $0x11] sm:$0xff] %vm143, %v1184
    %1198 = vst.msk [vmem:[#allocation2 + $0x19] sm:$0xff] %vm143, %v1189
    %1199 = vst.msk [vmem:[#allocation2 + $0x21] sm:$0x1] %vm698, %v1194
    %1200 = vrot.lane.b32.xlu0 %v961, 112
    %v1201 = vpop.permute.xlu0 %1200
    %1202 = vrot.lane.b32.xlu0 %v963, 112
    %v1203 = vpop.permute.xlu0 %1202
    %1204 = vrot.lane.b32.xlu0 %v962, 112
    %v1205 = vpop.permute.xlu0 %1204
    %1206 = vrot.lane.b32.xlu0 %v961, 80
    %v1207 = vpop.permute.xlu0 %1206
    %1208 = vrot.lane.b32.xlu0 %v963, 80
    %v1209 = vpop.permute.xlu0 %1208
    %1210 = vrot.lane.b32.xlu0 %v962, 80
    %v1211 = vpop.permute.xlu0 %1210
    %v1212 = vsel %vm143, %v1201, 0
    %v1214 = vsel %vm143, %v1203, 0
    %v1216 = vsel %vm143, %v1205, 0
    %v1218 = vsel %vm143, %v1207, 0
    %v1220 = vsel %vm143, %v1209, 0
    %v1222 = vsel %vm143, %v1211, 0
    %1224 = vmatprep.subr.mxu0 0.0
    %1225 = vmatpush1.xpose.msra.mxu0 %v1218
    %1226 = vmatprep.subr.mxu0 0.0
    %1227 = vmatpush1.xpose.msra.mxu0 %v1220
    %1228 = vmatprep.subr.mxu0 0.0
    %1229 = vmatpush1.xpose.msra.mxu0 %v1222
    %1230 = vmatprep.subr.mxu0 0.0
    %1231 = vmatpush1.xpose.msra.mxu0 0.0
    %1232 = vmatprep.subr.mxu0 0.0
    %1233 = vmatpush1.xpose.msra.mxu0 0.0
    %1234 = vmatprep.subr.mxu0 0.0
    %1235 = vmatpush1.xpose.msra.mxu0 0.0
    %1236 = vmatprep.subr.mxu0 0.0
    %1237 = vmatpush1.xpose.msra.mxu0 0.0
    %1238 = vmatprep.subr.mxu0 0.0
    %1239 = vmatpush1.xpose.msra.mxu0 0.0
    %1240 = vmatprep.subr.mxu0 0.0
    %1241 = vmatpush1.xpose.msra.mxu0 0.0
    %1242 = vmatprep.subr.mxu0 0.0
    %1243 = vmatpush1.xpose.msra.mxu0 0.0
    %1244 = vmatprep.subr.mxu0 0.0
    %1245 = vmatpush1.xpose.msra.mxu0 0.0
    %1246 = vmatprep.subr.mxu0 0.0
    %1247 = vmatpush1.xpose.msra.mxu0 0.0
    %1248 = vmatprep.subr.mxu0 0.0
    %1249 = vmatpush1.xpose.msra.mxu0 0.0
    %1250 = vmatprep.subr.mxu0 0.0
    %1251 = vmatpush1.xpose.msra.mxu0 0.0
    %1252 = vmatprep.subr.mxu0 0.0
    %1253 = vmatpush1.xpose.msra.mxu0 0.0
    %1254 = vmatprep.subr.mxu0 0.0
    %1255 = vmatpush1.xpose.msra.mxu0 0.0
    %1256 = vmatprep.subr.mxu0 0.0
    %1257 = vmatpush1.xpose.msra.mxu0 0.0
    %1258 = vmatprep.subr.mxu0 0.0
    %1259 = vmatpush1.xpose.msra.mxu0 0.0
    %1260 = vmatprep.subr.mxu0 0.0
    %1261 = vmatpush1.xpose.msra.mxu0 0.0
    %1262 = vmatprep.subr.mxu0 0.0
    %1263 = vmatpush1.xpose.msra.mxu0 0.0
    %1264 = vmatprep.subr.mxu0 0.0
    %1265 = vmatpush1.xpose.msra.mxu0 0.0
    %1266 = vmatprep.subr.mxu0 0.0
    %1267 = vmatpush1.xpose.msra.mxu0 0.0
    %1268 = vmatprep.subr.mxu0 0.0
    %1269 = vmatpush1.xpose.msra.mxu0 0.0
    %1270 = vmatprep.subr.mxu0 0.0
    %1271 = vmatpush1.xpose.msra.mxu0 0.0
    %1272 = vmatprep.subr.mxu0 0.0
    %1273 = vmatpush1.xpose.msra.mxu0 0.0
    %1274 = vmatprep.subr.mxu0 0.0
    %1275 = vmatpush1.xpose.msra.mxu0 0.0
    %1276 = vmatprep.subr.mxu0 0.0
    %1277 = vmatpush1.xpose.msra.mxu0 0.0
    %1278 = vmatprep.subr.mxu0 0.0
    %1279 = vmatpush1.xpose.msra.mxu0 0.0
    %1280 = vmatprep.subr.mxu0 0.0
    %1281 = vmatpush1.xpose.msra.mxu0 0.0
    %1282 = vmatprep.subr.mxu0 0.0
    %1283 = vmatpush1.xpose.msra.mxu0 0.0
    %1284 = vmatprep.subr.mxu0 0.0
    %1285 = vmatpush1.xpose.msra.mxu0 0.0
    %1286 = vmatprep.subr.mxu0 0.0
    %1287 = vmatpush1.xpose.msra.mxu0 0.0
    %1288 = vmatprep.mubr.f32.mxu0 0.0
    %1289 = vmatmul.mubr.f32.gmra.mrb[0].mxu0 %v1212
    %v1290 = vpop.f32.mrb[0].mxu0
    %v1291 = vadd.f32 0.0, %v1290
    %v1292 = vpop.f32.mrb[0].mxu0
    %1293 = vmatprep.mubr.f32.mxu0 0.0
    %1294 = vmatmul.mubr.f32.gmra.mrb[0].mxu0 %v1214
    %v1295 = vpop.f32.mrb[0].mxu0
    %v1296 = vadd.f32 0.0, %v1295
    %v1297 = vpop.f32.mrb[0].mxu0
    %1298 = vmatprep.mubr.f32.mxu0 0.0
    %1299 = vmatmul.mubr.f32.gmra.mrb[0].mxu0 %v1216
    %v1300 = vpop.f32.mrb[0].mxu0
    %v1301 = vadd.f32 0.0, %v1300
    %v1302 = vpop.f32.mrb[0].mxu0
    %1303 = vdwg.mxu0
    %v1304 = vmul.f32 %v1291, 0.25
    %v1305 = vmul.f32 %v1296, 0.25
    %v1306 = vmul.f32 %v1301, 0.25
    %v1307 = vsel %vm561, %v1304, -inf
    %1308 = vmax.xlane.f32.xlu0 %v1307
    %v1309 = vpop.xlane.xlu0 %1308
    %v1310 = vsel %vm561, %v1305, -inf
    %1311 = vmax.xlane.f32.xlu0 %v1310
    %v1312 = vpop.xlane.xlu0 %1311
    %v1313 = vsel %vm568, %v1306, -inf
    %1314 = vmax.xlane.f32.xlu0 %v1313
    %v1315 = vpop.xlane.xlu0 %1314
    %v1316 = vsub.f32 %v1304, %v1309
    %v1317 = vsub.f32 %v1305, %v1312
    %v1318 = vsub.f32 %v1306, %v1315
    %v1319 = vmul.f32 %v1316, 1.442695
    %v1320 = vpow.pop %v1319
    %v1321 = vmul.f32 %v1317, 1.442695
    %v1322 = vpow.pop %v1321
    %v1323 = vmul.f32 %v1318, 1.442695
    %v1324 = vpow.pop %v1323
    %v1325 = vsel %vm561, %v1320, 0.0
    %1326 = vadd.xlane.f32.xlu0 %v1325
    %v1327 = vpop.xlane.xlu0 %1326
    %v1328 = vsel %vm561, %v1322, 0.0
    %1329 = vadd.xlane.f32.xlu0 %v1328
    %v1330 = vpop.xlane.xlu0 %1329
    %v1331 = vsel %vm568, %v1324, 0.0
    %1332 = vadd.xlane.f32.xlu0 %v1331
    %v1333 = vpop.xlane.xlu0 %1332
    %v1334 = vrcp.pop %v1327
    %v1335 = vrcp.pop %v1330
    %v1336 = vrcp.pop %v1333
    %v1337 = vmul.f32 %v1320, %v1334
    %v1338 = vmul.f32 %v1322, %v1335
    %v1339 = vmul.f32 %v1324, %v1336
    %1340 = vrot.lane.b32.xlu0 %v961, 48
    %v1341 = vpop.permute.xlu0 %1340
    %1342 = vrot.lane.b32.xlu0 %v963, 48
    %v1343 = vpop.permute.xlu0 %1342
    %1344 = vrot.lane.b32.xlu0 %v962, 48
    %v1345 = vpop.permute.xlu0 %1344
    %v1349 = vsel %vm561, %v1337, 0
    %v1352 = vsel %vm561, %v1338, 0
    %v1355 = vsel %vm561, %v1339, 0
    %v1357 = vsel %vm613, %v1345, 0
    %1359 = vmatprep.subr.mxu0 0.0
    %1360 = vmatpush1.msra.mxu0 %v1341
    %1361 = vmatprep.subr.mxu0 0.0
    %1362 = vmatpush1.msra.mxu0 %v1343
    %1363 = vmatprep.subr.mxu0 0.0
    %1364 = vmatpush1.msra.mxu0 %v1357
    %1365 = vmatprep.subr.mxu0 0.0
    %1366 = vmatpush1.msra.mxu0 0.0
    %1367 = vmatprep.subr.mxu0 0.0
    %1368 = vmatpush1.msra.mxu0 0.0
    %1369 = vmatprep.subr.mxu0 0.0
    %1370 = vmatpush1.msra.mxu0 0.0
    %1371 = vmatprep.subr.mxu0 0.0
    %1372 = vmatpush1.msra.mxu0 0.0
    %1373 = vmatprep.subr.mxu0 0.0
    %1374 = vmatpush1.msra.mxu0 0.0
    %1375 = vmatprep.subr.mxu0 0.0
    %1376 = vmatpush1.msra.mxu0 0.0
    %1377 = vmatprep.subr.mxu0 0.0
    %1378 = vmatpush1.msra.mxu0 0.0
    %1379 = vmatprep.subr.mxu0 0.0
    %1380 = vmatpush1.msra.mxu0 0.0
    %1381 = vmatprep.subr.mxu0 0.0
    %1382 = vmatpush1.msra.mxu0 0.0
    %1383 = vmatprep.subr.mxu0 0.0
    %1384 = vmatpush1.msra.mxu0 0.0
    %1385 = vmatprep.subr.mxu0 0.0
    %1386 = vmatpush1.msra.mxu0 0.0
    %1387 = vmatprep.subr.mxu0 0.0
    %1388 = vmatpush1.msra.mxu0 0.0
    %1389 = vmatprep.subr.mxu0 0.0
    %1390 = vmatpush1.msra.mxu0 0.0
    %1391 = vmatprep.subr.mxu0 0.0
    %1392 = vmatpush1.msra.mxu0 0.0
    %1393 = vmatprep.subr.mxu0 0.0
    %1394 = vmatpush1.msra.mxu0 0.0
    %1395 = vmatprep.subr.mxu0 0.0
    %1396 = vmatpush1.msra.mxu0 0.0
    %1397 = vmatprep.subr.mxu0 0.0
    %1398 = vmatpush1.msra.mxu0 0.0
    %1399 = vmatprep.subr.mxu0 0.0
    %1400 = vmatpush1.msra.mxu0 0.0
    %1401 = vmatprep.subr.mxu0 0.0
    %1402 = vmatpush1.msra.mxu0 0.0
    %1403 = vmatprep.subr.mxu0 0.0
    %1404 = vmatpush1.msra.mxu0 0.0
    %1405 = vmatprep.subr.mxu0 0.0
    %1406 = vmatpush1.msra.mxu0 0.0
    %1407 = vmatprep.subr.mxu0 0.0
    %1408 = vmatpush1.msra.mxu0 0.0
    %1409 = vmatprep.subr.mxu0 0.0
    %1410 = vmatpush1.msra.mxu0 0.0
    %1411 = vmatprep.subr.mxu0 0.0
    %1412 = vmatpush1.msra.mxu0 0.0
    %1413 = vmatprep.subr.mxu0 0.0
    %1414 = vmatpush1.msra.mxu0 0.0
    %1415 = vmatprep.subr.mxu0 0.0
    %1416 = vmatpush1.msra.mxu0 0.0
    %1417 = vmatprep.subr.mxu0 0.0
    %1418 = vmatpush1.msra.mxu0 0.0
    %1419 = vmatprep.subr.mxu0 0.0
    %1420 = vmatpush1.msra.mxu0 0.0
    %1421 = vmatprep.subr.mxu0 0.0
    %1422 = vmatpush1.msra.mxu0 0.0
    %1423 = vmatprep.mubr.f32.mxu0 0.0
    %1424 = vmatmul.mubr.f32.gmra.mrb[0].mxu0 %v1349
    %v1425 = vpop.f32.mrb[0].mxu0
    %v1426 = vadd.f32 0.0, %v1425
    %v1427 = vpop.f32.mrb[0].mxu0
    %1428 = vmatprep.mubr.f32.mxu0 0.0
    %1429 = vmatmul.mubr.f32.gmra.mrb[0].mxu0 %v1352
    %v1430 = vpop.f32.mrb[0].mxu0
    %v1431 = vadd.f32 0.0, %v1430
    %v1432 = vpop.f32.mrb[0].mxu0
    %1433 = vmatprep.mubr.f32.mxu0 0.0
    %1434 = vmatmul.mubr.f32.gmra.mrb[0].mxu0 %v1355
    %v1435 = vpop.f32.mrb[0].mxu0
    %v1436 = vadd.f32 0.0, %v1435
    %v1437 = vpop.f32.mrb[0].mxu0
    %1438 = vdwg.mxu0
    %1442 = vrot.lane.b32.xlu0 %v1426, 16
    %v1443 = vpop.permute.xlu0 %1442
    %1444 = vrot.lane.b32.xlu0 %v1431, 16
    %v1445 = vpop.permute.xlu0 %1444
    %1446 = vrot.lane.b32.xlu0 %v1436, 16
    %v1447 = vpop.permute.xlu0 %1446
    %1451 = vst.msk [vmem:[#allocation2 + $0x11] sm:$0xff] %vm951, %v1443
    %1452 = vst.msk [vmem:[#allocation2 + $0x19] sm:$0xff] %vm951, %v1445
    %1453 = vst.msk [vmem:[#allocation2 + $0x21] sm:$0x1] %vm954, %v1447
    %v1454 = vld [vmem:[#allocation2] sm:$0xff]
    %v1455 = vld [vmem:[#allocation2 + $0x8] sm:$0xff]
    %v1456 = vld [vmem:[#allocation2 + $0x10] sm:$0xff]
    %v1457 = vld [vmem:[#allocation2 + $0x18] sm:$0xff]
    %v1458 = vld [vmem:[#allocation2 + $0x20] sm:$0x3]
    %v1459 = vld [vmem:[%s15] sm:$0xff]
    %v1460 = vld [vmem:[%s15 + $0x8] sm:$0xff]
    %v1461 = vld [vmem:[%s15 + $0x10] sm:$0xff]
    %v1462 = vld [vmem:[%s15 + $0x18] sm:$0xff]
    %v1463 = vld [vmem:[%s17] sm:$0x1]
    %v1465 = vlaneseq
    %v1466 = vshrl.u32 %v1465, 7
    %v1467 = vsub.s32 0, %v1466
    %v1468 = vrot.slane %v1463, %v1467
    %v1471 = vsel %vm251, %v1454, 0
    %v1474 = vsel %vm251, %v1455, 0
    %v1477 = vsel %vm251, %v1456, 0
    %v1480 = vsel %vm251, %v1457, 0
    %v1483 = vsel %vm251, %v1458, 0
    %1485 = vmatprep.subr.mxu0 0.0
    %1486 = vmatpush1.msra.mxu0 %v1459
    %1487 = vmatprep.subr.mxu0 0.0
    %1488 = vmatpush1.msra.mxu0 %v1460
    %1489 = vmatprep.subr.mxu0 0.0
    %1490 = vmatpush1.msra.mxu0 %v1461
    %1491 = vmatprep.subr.mxu0 0.0
    %1492 = vmatpush1.msra.mxu0 %v1462
    %1493 = vmatprep.subr.mxu0 0.0
    %1494 = vmatpush1.msra.mxu0 0.0
    %1495 = vmatprep.subr.mxu0 0.0
    %1496 = vmatpush1.msra.mxu0 0.0
    %1497 = vmatprep.subr.mxu0 0.0
    %1498 = vmatpush1.msra.mxu0 0.0
    %1499 = vmatprep.subr.mxu0 0.0
    %1500 = vmatpush1.msra.mxu0 0.0
    %1501 = vmatprep.subr.mxu0 0.0
    %1502 = vmatpush1.msra.mxu0 0.0
    %1503 = vmatprep.subr.mxu0 0.0
    %1504 = vmatpush1.msra.mxu0 0.0
    %1505 = vmatprep.subr.mxu0 0.0
    %1506 = vmatpush1.msra.mxu0 0.0
    %1507 = vmatprep.subr.mxu0 0.0
    %1508 = vmatpush1.msra.mxu0 0.0
    %1509 = vmatprep.subr.mxu0 0.0
    %1510 = vmatpush1.msra.mxu0 0.0
    %1511 = vmatprep.subr.mxu0 0.0
    %1512 = vmatpush1.msra.mxu0 0.0
    %1513 = vmatprep.subr.mxu0 0.0
    %1514 = vmatpush1.msra.mxu0 0.0
    %1515 = vmatprep.subr.mxu0 0.0
    %1516 = vmatpush1.msra.mxu0 0.0
    %1517 = vmatprep.subr.mxu0 0.0
    %1518 = vmatpush1.msra.mxu0 0.0
    %1519 = vmatprep.subr.mxu0 0.0
    %1520 = vmatpush1.msra.mxu0 0.0
    %1521 = vmatprep.subr.mxu0 0.0
    %1522 = vmatpush1.msra.mxu0 0.0
    %1523 = vmatprep.subr.mxu0 0.0
    %1524 = vmatpush1.msra.mxu0 0.0
    %1525 = vmatprep.subr.mxu0 0.0
    %1526 = vmatpush1.msra.mxu0 0.0
    %1527 = vmatprep.subr.mxu0 0.0
    %1528 = vmatpush1.msra.mxu0 0.0
    %1529 = vmatprep.subr.mxu0 0.0
    %1530 = vmatpush1.msra.mxu0 0.0
    %1531 = vmatprep.subr.mxu0 0.0
    %1532 = vmatpush1.msra.mxu0 0.0
    %1533 = vmatprep.subr.mxu0 0.0
    %1534 = vmatpush1.msra.mxu0 0.0
    %1535 = vmatprep.subr.mxu0 0.0
    %1536 = vmatpush1.msra.mxu0 0.0
    %1537 = vmatprep.subr.mxu0 0.0
    %1538 = vmatpush1.msra.mxu0 0.0
    %1539 = vmatprep.subr.mxu0 0.0
    %1540 = vmatpush1.msra.mxu0 0.0
    %1541 = vmatprep.subr.mxu0 0.0
    %1542 = vmatpush1.msra.mxu0 0.0
    %1543 = vmatprep.subr.mxu0 0.0
    %1544 = vmatpush1.msra.mxu0 0.0
    %1545 = vmatprep.subr.mxu0 0.0
    %1546 = vmatpush1.msra.mxu0 0.0
    %1547 = vmatprep.subr.mxu0 0.0
    %1548 = vmatpush1.msra.mxu0 0.0
    %1549 = vmatprep.mubr.f32.mxu0 0.0
    %1550 = vmatmul.mubr.f32.gmra.mrb[0].mxu0 %v1471
    %v1551 = vpop.f32.mrb[0].mxu0
    %v1552 = vadd.f32 %v1468, %v1551
    %v1553 = vpop.f32.mrb[0].mxu0
    %1554 = vmatprep.mubr.f32.mxu0 0.0
    %1555 = vmatmul.mubr.f32.gmra.mrb[0].mxu0 %v1474
    %v1556 = vpop.f32.mrb[0].mxu0
    %v1557 = vadd.f32 %v1468, %v1556
    %v1558 = vpop.f32.mrb[0].mxu0
    %1559 = vmatprep.mubr.f32.mxu0 0.0
    %1560 = vmatmul.mubr.f32.gmra.mrb[0].mxu0 %v1477
    %v1561 = vpop.f32.mrb[0].mxu0
    %v1562 = vadd.f32 %v1468, %v1561
    %v1563 = vpop.f32.mrb[0].mxu0
    %1564 = vmatprep.mubr.f32.mxu0 0.0
    %1565 = vmatmul.mubr.f32.gmra.mrb[0].mxu0 %v1480
    %v1566 = vpop.f32.mrb[0].mxu0
    %v1567 = vadd.f32 %v1468, %v1566
    %v1568 = vpop.f32.mrb[0].mxu0
    %1569 = vmatprep.mubr.f32.mxu0 0.0
    %1570 = vmatmul.mubr.f32.gmra.mrb[0].mxu0 %v1483
    %v1571 = vpop.f32.mrb[0].mxu0
    %v1572 = vadd.f32 %v1468, %v1571
    %v1573 = vpop.f32.mrb[0].mxu0
    %1574 = vdwg.mxu0
    %v1575 = vadd.f32 %v226, %v1552
    %v1576 = vadd.f32 %v231, %v1557
    %v1577 = vadd.f32 %v236, %v1562
    %v1578 = vadd.f32 %v241, %v1567
    %v1579 = vadd.f32 %v246, %v1572
    %v1580 = vld [vmem:[%s19] sm:$0x1]
    %v1581 = vld [vmem:[%s21] sm:$0x1]
    %v1582 = vsel %vm251, %v1575, 0.0
    %1583 = vadd.xlane.f32.xlu0 %v1582
    %v1584 = vpop.xlane.xlu0 %1583
    %v1585 = vsel %vm251, %v1576, 0.0
    %1586 = vadd.xlane.f32.xlu0 %v1585
    %v1587 = vpop.xlane.xlu0 %1586
    %v1588 = vsel %vm251, %v1577, 0.0
    %1589 = vadd.xlane.f32.xlu0 %v1588
    %v1590 = vpop.xlane.xlu0 %1589
    %v1591 = vsel %vm251, %v1578, 0.0
    %1592 = vadd.xlane.f32.xlu0 %v1591
    %v1593 = vpop.xlane.xlu0 %1592
    %v1594 = vsel %vm264, %v1579, 0.0
    %1595 = vadd.xlane.f32.xlu0 %v1594
    %v1596 = vpop.xlane.xlu0 %1595
    %v1597 = vmul.f32 %v1584, %v268
    %v1598 = vmul.f32 %v1587, %v268
    %v1599 = vmul.f32 %v1590, %v268
    %v1600 = vmul.f32 %v1593, %v268
    %v1601 = vmul.f32 %v1596, %v268
    %v1602 = vsub.f32 %v1575, %v1597
    %v1603 = vsub.f32 %v1576, %v1598
    %v1604 = vsub.f32 %v1577, %v1599
    %v1605 = vsub.f32 %v1578, %v1600
    %v1606 = vsub.f32 %v1579, %v1601
    %v1607 = vmul.f32 %v1602, %v1602
    %v1608 = vmul.f32 %v1603, %v1603
    %v1609 = vmul.f32 %v1604, %v1604
    %v1610 = vmul.f32 %v1605, %v1605
    %v1611 = vmul.f32 %v1606, %v1606
    %v1612 = vsel %vm251, %v1607, 0.0
    %1613 = vadd.xlane.f32.xlu0 %v1612
    %v1614 = vpop.xlane.xlu0 %1613
    %v1615 = vsel %vm251, %v1608, 0.0
    %1616 = vadd.xlane.f32.xlu0 %v1615
    %v1617 = vpop.xlane.xlu0 %1616
    %v1618 = vsel %vm251, %v1609, 0.0
    %1619 = vadd.xlane.f32.xlu0 %v1618
    %v1620 = vpop.xlane.xlu0 %1619
    %v1621 = vsel %vm251, %v1610, 0.0
    %1622 = vadd.xlane.f32.xlu0 %v1621
    %v1623 = vpop.xlane.xlu0 %1622
    %v1624 = vsel %vm264, %v1611, 0.0
    %1625 = vadd.xlane.f32.xlu0 %v1624
    %v1626 = vpop.xlane.xlu0 %1625
    %v1627 = vmul.f32 %v1614, %v268
    %v1628 = vmul.f32 %v1617, %v268
    %v1629 = vmul.f32 %v1620, %v268
    %v1630 = vmul.f32 %v1623, %v268
    %v1631 = vmul.f32 %v1626, %v268
    %v1632 = vadd.f32 %v1627, 1e-06
    %v1633 = vadd.f32 %v1628, 1e-06
    %v1634 = vadd.f32 %v1629, 1e-06
    %v1635 = vadd.f32 %v1630, 1e-06
    %v1636 = vadd.f32 %v1631, 1e-06
    %v1637 = vrsqrt.pop %v1632
    %v1638 = vrsqrt.pop %v1633
    %v1639 = vrsqrt.pop %v1634
    %v1640 = vrsqrt.pop %v1635
    %v1641 = vrsqrt.pop %v1636
    %v1642 = vmul.f32 %v1602, %v1637
    %v1643 = vmul.f32 %v1603, %v1638
    %v1644 = vmul.f32 %v1604, %v1639
    %v1645 = vmul.f32 %v1605, %v1640
    %v1646 = vmul.f32 %v1606, %v1641
    %v1648 = vlaneseq
    %v1649 = vshrl.u32 %v1648, 7
    %v1650 = vsub.s32 0, %v1649
    %v1651 = vrot.slane %v1580, %v1650
    %v1653 = vmul.f32 %v1642, %v1651
    %v1654 = vmul.f32 %v1643, %v1651
    %v1655 = vmul.f32 %v1644, %v1651
    %v1656 = vmul.f32 %v1645, %v1651
    %v1657 = vmul.f32 %v1646, %v1651
    %v1659 = vlaneseq
    %v1660 = vshrl.u32 %v1659, 7
    %v1661 = vsub.s32 0, %v1660
    %v1662 = vrot.slane %v1581, %v1661
    %v1664 = vadd.f32 %v1653, %v1662
    %v1665 = vadd.f32 %v1654, %v1662
    %v1666 = vadd.f32 %v1655, %v1662
    %v1667 = vadd.f32 %v1656, %v1662
    %v1668 = vadd.f32 %v1657, %v1662
    %v1669 = vld [vmem:[%s23] sm:$0xff]
    %v1670 = vld [vmem:[%s23 + $0x8] sm:$0xff]
    %v1671 = vld [vmem:[%s23 + $0x10] sm:$0xff]
    %v1672 = vld [vmem:[%s23 + $0x18] sm:$0xff]
    %v1673 = vld [vmem:[%s25] sm:$0x1]
    %v1675 = vlaneseq
    %v1676 = vshrl.u32 %v1675, 7
    %v1677 = vsub.s32 0, %v1676
    %v1678 = vrot.slane %v1673, %v1677
    %v1681 = vsel %vm251, %v1664, 0
    %v1684 = vsel %vm251, %v1665, 0
    %v1687 = vsel %vm251, %v1666, 0
    %v1690 = vsel %vm251, %v1667, 0
    %v1693 = vsel %vm251, %v1668, 0
    %1695 = vmatprep.subr.mxu0 0.0
    %1696 = vmatpush1.msra.mxu0 %v1669
    %1697 = vmatprep.subr.mxu0 0.0
    %1698 = vmatpush1.msra.mxu0 %v1670
    %1699 = vmatprep.subr.mxu0 0.0
    %1700 = vmatpush1.msra.mxu0 %v1671
    %1701 = vmatprep.subr.mxu0 0.0
    %1702 = vmatpush1.msra.mxu0 %v1672
    %1703 = vmatprep.subr.mxu0 0.0
    %1704 = vmatpush1.msra.mxu0 0.0
    %1705 = vmatprep.subr.mxu0 0.0
    %1706 = vmatpush1.msra.mxu0 0.0
    %1707 = vmatprep.subr.mxu0 0.0
    %1708 = vmatpush1.msra.mxu0 0.0
    %1709 = vmatprep.subr.mxu0 0.0
    %1710 = vmatpush1.msra.mxu0 0.0
    %1711 = vmatprep.subr.mxu0 0.0
    %1712 = vmatpush1.msra.mxu0 0.0
    %1713 = vmatprep.subr.mxu0 0.0
    %1714 = vmatpush1.msra.mxu0 0.0
    %1715 = vmatprep.subr.mxu0 0.0
    %1716 = vmatpush1.msra.mxu0 0.0
    %1717 = vmatprep.subr.mxu0 0.0
    %1718 = vmatpush1.msra.mxu0 0.0
    %1719 = vmatprep.subr.mxu0 0.0
    %1720 = vmatpush1.msra.mxu0 0.0
    %1721 = vmatprep.subr.mxu0 0.0
    %1722 = vmatpush1.msra.mxu0 0.0
    %1723 = vmatprep.subr.mxu0 0.0
    %1724 = vmatpush1.msra.mxu0 0.0
    %1725 = vmatprep.subr.mxu0 0.0
    %1726 = vmatpush1.msra.mxu0 0.0
    %1727 = vmatprep.subr.mxu0 0.0
    %1728 = vmatpush1.msra.mxu0 0.0
    %1729 = vmatprep.subr.mxu0 0.0
    %1730 = vmatpush1.msra.mxu0 0.0
    %1731 = vmatprep.subr.mxu0 0.0
    %1732 = vmatpush1.msra.mxu0 0.0
    %1733 = vmatprep.subr.mxu0 0.0
    %1734 = vmatpush1.msra.mxu0 0.0
    %1735 = vmatprep.subr.mxu0 0.0
    %1736 = vmatpush1.msra.mxu0 0.0
    %1737 = vmatprep.subr.mxu0 0.0
    %1738 = vmatpush1.msra.mxu0 0.0
    %1739 = vmatprep.subr.mxu0 0.0
    %1740 = vmatpush1.msra.mxu0 0.0
    %1741 = vmatprep.subr.mxu0 0.0
    %1742 = vmatpush1.msra.mxu0 0.0
    %1743 = vmatprep.subr.mxu0 0.0
    %1744 = vmatpush1.msra.mxu0 0.0
    %1745 = vmatprep.subr.mxu0 0.0
    %1746 = vmatpush1.msra.mxu0 0.0
    %1747 = vmatprep.subr.mxu0 0.0
    %1748 = vmatpush1.msra.mxu0 0.0
    %1749 = vmatprep.subr.mxu0 0.0
    %1750 = vmatpush1.msra.mxu0 0.0
    %1751 = vmatprep.subr.mxu0 0.0
    %1752 = vmatpush1.msra.mxu0 0.0
    %1753 = vmatprep.subr.mxu0 0.0
    %1754 = vmatpush1.msra.mxu0 0.0
    %1755 = vmatprep.subr.mxu0 0.0
    %1756 = vmatpush1.msra.mxu0 0.0
    %1757 = vmatprep.subr.mxu0 0.0
    %1758 = vmatpush1.msra.mxu0 0.0
    %1759 = vmatprep.mubr.f32.mxu0 0.0
    %1760 = vmatmul.mubr.f32.gmra.mrb[0].mxu0 %v1681
    %v1761 = vpop.f32.mrb[0].mxu0
    %v1762 = vadd.f32 %v1678, %v1761
    %v1763 = vpop.f32.mrb[0].mxu0
    %1764 = vmatprep.mubr.f32.mxu0 0.0
    %1765 = vmatmul.mubr.f32.gmra.mrb[0].mxu0 %v1684
    %v1766 = vpop.f32.mrb[0].mxu0
    %v1767 = vadd.f32 %v1678, %v1766
    %v1768 = vpop.f32.mrb[0].mxu0
    %1769 = vmatprep.mubr.f32.mxu0 0.0
    %1770 = vmatmul.mubr.f32.gmra.mrb[0].mxu0 %v1687
    %v1771 = vpop.f32.mrb[0].mxu0
    %v1772 = vadd.f32 %v1678, %v1771
    %v1773 = vpop.f32.mrb[0].mxu0
    %1774 = vmatprep.mubr.f32.mxu0 0.0
    %1775 = vmatmul.mubr.f32.gmra.mrb[0].mxu0 %v1690
    %v1776 = vpop.f32.mrb[0].mxu0
    %v1777 = vadd.f32 %v1678, %v1776
    %v1778 = vpop.f32.mrb[0].mxu0
    %1779 = vmatprep.mubr.f32.mxu0 0.0
    %1780 = vmatmul.mubr.f32.gmra.mrb[0].mxu0 %v1693
    %v1781 = vpop.f32.mrb[0].mxu0
    %v1782 = vadd.f32 %v1678, %v1781
    %v1783 = vpop.f32.mrb[0].mxu0
    %1784 = vdwg.mxu0
    %v1785 = vmul.f32 %v1762, 0.5
    %v1786 = vmul.f32 %v1767, 0.5
    %v1787 = vmul.f32 %v1772, 0.5
    %v1788 = vmul.f32 %v1777, 0.5
    %v1789 = vmul.f32 %v1782, 0.5
    %v1790 = vmul.f32 %v1762, 0.70710677
    %v1791 = vmul.f32 %v1767, 0.70710677
    %v1792 = vmul.f32 %v1772, 0.70710677
    %v1793 = vmul.f32 %v1777, 0.70710677
    %v1794 = vmul.f32 %v1782, 0.70710677
    %v1795 = vand.u32 2147483647, %v1790
    %v1796 = vand.u32 2147483647, %v1791
    %v1797 = vand.u32 2147483647, %v1792
    %v1798 = vand.u32 2147483647, %v1793
    %v1799 = vand.u32 2147483647, %v1794
    %v1800 = vmul.f32 %v1795, 0.3275911
    %v1801 = vmul.f32 %v1796, 0.3275911
    %v1802 = vmul.f32 %v1797, 0.3275911
    %v1803 = vmul.f32 %v1798, 0.3275911
    %v1804 = vmul.f32 %v1799, 0.3275911
    %v1805 = vadd.f32 %v1800, 1.0
    %v1806 = vadd.f32 %v1801, 1.0
    %v1807 = vadd.f32 %v1802, 1.0
    %v1808 = vadd.f32 %v1803, 1.0
    %v1809 = vadd.f32 %v1804, 1.0
    %v1810 = vrcp.pop %v1805
    %v1811 = vmul.f32 1.0, %v1810
    %v1812 = vrcp.pop %v1806
    %v1813 = vmul.f32 1.0, %v1812
    %v1814 = vrcp.pop %v1807
    %v1815 = vmul.f32 1.0, %v1814
    %v1816 = vrcp.pop %v1808
    %v1817 = vmul.f32 1.0, %v1816
    %v1818 = vrcp.pop %v1809
    %v1819 = vmul.f32 1.0, %v1818
    %v1820 = vmul.f32 %v1811, 1.0614054
    %v1821 = vmul.f32 %v1813, 1.0614054
    %v1822 = vmul.f32 %v1815, 1.0614054
    %v1823 = vmul.f32 %v1817, 1.0614054
    %v1824 = vmul.f32 %v1819, 1.0614054
    %v1825 = vadd.f32 %v1820, -1.4531521
    %v1826 = vadd.f32 %v1821, -1.4531521
    %v1827 = vadd.f32 %v1822, -1.4531521
    %v1828 = vadd.f32 %v1823, -1.4531521
    %v1829 = vadd.f32 %v1824, -1.4531521
    %v1830 = vmul.f32 %v1825, %v1811
    %v1831 = vmul.f32 %v1826, %v1813
    %v1832 = vmul.f32 %v1827, %v1815
    %v1833 = vmul.f32 %v1828, %v1817
    %v1834 = vmul.f32 %v1829, %v1819
    %v1835 = vadd.f32 %v1830, 1.4214138
    %v1836 = vadd.f32 %v1831, 1.4214138
    %v1837 = vadd.f32 %v1832, 1.4214138
    %v1838 = vadd.f32 %v1833, 1.4214138
    %v1839 = vadd.f32 %v1834, 1.4214138
    %v1840 = vmul.f32 %v1835, %v1811
    %v1841 = vmul.f32 %v1836, %v1813
    %v1842 = vmul.f32 %v1837, %v1815
    %v1843 = vmul.f32 %v1838, %v1817
    %v1844 = vmul.f32 %v1839, %v1819
    %v1845 = vadd.f32 %v1840, -0.28449672
    %v1846 = vadd.f32 %v1841, -0.28449672
    %v1847 = vadd.f32 %v1842, -0.28449672
    %v1848 = vadd.f32 %v1843, -0.28449672
    %v1849 = vadd.f32 %v1844, -0.28449672
    %v1850 = vmul.f32 %v1845, %v1811
    %v1851 = vmul.f32 %v1846, %v1813
    %v1852 = vmul.f32 %v1847, %v1815
    %v1853 = vmul.f32 %v1848, %v1817
    %v1854 = vmul.f32 %v1849, %v1819
    %v1855 = vadd.f32 %v1850, 0.2548296
    %v1856 = vadd.f32 %v1851, 0.2548296
    %v1857 = vadd.f32 %v1852, 0.2548296
    %v1858 = vadd.f32 %v1853, 0.2548296
    %v1859 = vadd.f32 %v1854, 0.2548296
    %v1860 = vmul.f32 %v1855, %v1811
    %v1861 = vmul.f32 %v1856, %v1813
    %v1862 = vmul.f32 %v1857, %v1815
    %v1863 = vmul.f32 %v1858, %v1817
    %v1864 = vmul.f32 %v1859, %v1819
    %v1865 = vsub.f32 0.0, %v1795
    %v1866 = vsub.f32 0.0, %v1796
    %v1867 = vsub.f32 0.0, %v1797
    %v1868 = vsub.f32 0.0, %v1798
    %v1869 = vsub.f32 0.0, %v1799
    %v1870 = vmul.f32 %v1865, %v1795
    %v1871 = vmul.f32 %v1866, %v1796
    %v1872 = vmul.f32 %v1867, %v1797
    %v1873 = vmul.f32 %v1868, %v1798
    %v1874 = vmul.f32 %v1869, %v1799
    %v1875 = vmul.f32 %v1870, 1.442695
    %v1876 = vpow.pop %v1875
    %v1877 = vmul.f32 %v1871, 1.442695
    %v1878 = vpow.pop %v1877
    %v1879 = vmul.f32 %v1872, 1.442695
    %v1880 = vpow.pop %v1879
    %v1881 = vmul.f32 %v1873, 1.442695
    %v1882 = vpow.pop %v1881
    %v1883 = vmul.f32 %v1874, 1.442695
    %v1884 = vpow.pop %v1883
    %v1885 = vmul.f32 %v1860, %v1876
    %v1886 = vmul.f32 %v1861, %v1878
    %v1887 = vmul.f32 %v1862, %v1880
    %v1888 = vmul.f32 %v1863, %v1882
    %v1889 = vmul.f32 %v1864, %v1884
    %v1890 = vsub.f32 1.0, %v1885
    %v1891 = vsub.f32 1.0, %v1886
    %v1892 = vsub.f32 1.0, %v1887
    %v1893 = vsub.f32 1.0, %v1888
    %v1894 = vsub.f32 1.0, %v1889
    %vm1895 = vcmp.ge.f32.partialorder %v1790, 0.0
    %vm1896 = vcmp.ge.f32.partialorder %v1791, 0.0
    %vm1897 = vcmp.ge.f32.partialorder %v1792, 0.0
    %vm1898 = vcmp.ge.f32.partialorder %v1793, 0.0
    %vm1899 = vcmp.ge.f32.partialorder %v1794, 0.0
    %v1900 = vsub.f32 0.0, %v1890
    %v1901 = vsub.f32 0.0, %v1891
    %v1902 = vsub.f32 0.0, %v1892
    %v1903 = vsub.f32 0.0, %v1893
    %v1904 = vsub.f32 0.0, %v1894
    %v1905 = vsel %vm1895, %v1890, %v1900
    %v1906 = vsel %vm1896, %v1891, %v1901
    %v1907 = vsel %vm1897, %v1892, %v1902
    %v1908 = vsel %vm1898, %v1893, %v1903
    %v1909 = vsel %vm1899, %v1894, %v1904
    %v1910 = vadd.f32 %v1905, 1.0
    %v1911 = vadd.f32 %v1906, 1.0
    %v1912 = vadd.f32 %v1907, 1.0
    %v1913 = vadd.f32 %v1908, 1.0
    %v1914 = vadd.f32 %v1909, 1.0
    %v1915 = vmul.f32 %v1785, %v1910
    %v1916 = vmul.f32 %v1786, %v1911
    %v1917 = vmul.f32 %v1787, %v1912
    %v1918 = vmul.f32 %v1788, %v1913
    %v1919 = vmul.f32 %v1789, %v1914
    %v1920 = vld [vmem:[%s27] sm:$0xff]
    %v1921 = vld [vmem:[%s27 + $0x8] sm:$0xff]
    %v1922 = vld [vmem:[%s27 + $0x10] sm:$0xff]
    %v1923 = vld [vmem:[%s27 + $0x18] sm:$0xff]
    %v1924 = vld [vmem:[%s27 + $0x20] sm:$0xff]
    %v1925 = vld [vmem:[%s27 + $0x28] sm:$0xff]
    %v1926 = vld [vmem:[%s27 + $0x30] sm:$0xff]
    %v1927 = vld [vmem:[%s27 + $0x38] sm:$0xff]
    %v1928 = vld [vmem:[%s29] sm:$0x1]
    %v1930 = vlaneseq
    %v1931 = vshrl.u32 %v1930, 7
    %v1932 = vsub.s32 0, %v1931
    %v1933 = vrot.slane %v1928, %v1932
    %vm1935 = vcmask 523264
    %v1937 = vsel %vm1935, %v1915, 0
    %v1940 = vsel %vm1935, %v1916, 0
    %v1943 = vsel %vm1935, %v1917, 0
    %v1946 = vsel %vm1935, %v1918, 0
    %v1949 = vsel %vm1935, %v1919, 0
    %1951 = vmatprep.subr.mxu0 0.0
    %1952 = vmatpush1.msra.mxu0 %v1920
    %1953 = vmatprep.subr.mxu0 0.0
    %1954 = vmatpush1.msra.mxu0 %v1921
    %1955 = vmatprep.subr.mxu0 0.0
    %1956 = vmatpush1.msra.mxu0 %v1922
    %1957 = vmatprep.subr.mxu0 0.0
    %1958 = vmatpush1.msra.mxu0 %v1923
    %1959 = vmatprep.subr.mxu0 0.0
    %1960 = vmatpush1.msra.mxu0 %v1924
    %1961 = vmatprep.subr.mxu0 0.0
    %1962 = vmatpush1.msra.mxu0 %v1925
    %1963 = vmatprep.subr.mxu0 0.0
    %1964 = vmatpush1.msra.mxu0 %v1926
    %1965 = vmatprep.subr.mxu0 0.0
    %1966 = vmatpush1.msra.mxu0 %v1927
    %1967 = vmatprep.subr.mxu0 0.0
    %1968 = vmatpush1.msra.mxu0 0.0
    %1969 = vmatprep.subr.mxu0 0.0
    %1970 = vmatpush1.msra.mxu0 0.0
    %1971 = vmatprep.subr.mxu0 0.0
    %1972 = vmatpush1.msra.mxu0 0.0
    %1973 = vmatprep.subr.mxu0 0.0
    %1974 = vmatpush1.msra.mxu0 0.0
    %1975 = vmatprep.subr.mxu0 0.0
    %1976 = vmatpush1.msra.mxu0 0.0
    %1977 = vmatprep.subr.mxu0 0.0
    %1978 = vmatpush1.msra.mxu0 0.0
    %1979 = vmatprep.subr.mxu0 0.0
    %1980 = vmatpush1.msra.mxu0 0.0
    %1981 = vmatprep.subr.mxu0 0.0
    %1982 = vmatpush1.msra.mxu0 0.0
    %1983 = vmatprep.subr.mxu0 0.0
    %1984 = vmatpush1.msra.mxu0 0.0
    %1985 = vmatprep.subr.mxu0 0.0
    %1986 = vmatpush1.msra.mxu0 0.0
    %1987 = vmatprep.subr.mxu0 0.0
    %1988 = vmatpush1.msra.mxu0 0.0
    %1989 = vmatprep.subr.mxu0 0.0
    %1990 = vmatpush1.msra.mxu0 0.0
    %1991 = vmatprep.subr.mxu0 0.0
    %1992 = vmatpush1.msra.mxu0 0.0
    %1993 = vmatprep.subr.mxu0 0.0
    %1994 = vmatpush1.msra.mxu0 0.0
    %1995 = vmatprep.subr.mxu0 0.0
    %1996 = vmatpush1.msra.mxu0 0.0
    %1997 = vmatprep.subr.mxu0 0.0
    %1998 = vmatpush1.msra.mxu0 0.0
    %1999 = vmatprep.subr.mxu0 0.0
    %2000 = vmatpush1.msra.mxu0 0.0
    %2001 = vmatprep.subr.mxu0 0.0
    %2002 = vmatpush1.msra.mxu0 0.0
    %2003 = vmatprep.subr.mxu0 0.0
    %2004 = vmatpush1.msra.mxu0 0.0
    %2005 = vmatprep.subr.mxu0 0.0
    %2006 = vmatpush1.msra.mxu0 0.0
    %2007 = vmatprep.subr.mxu0 0.0
    %2008 = vmatpush1.msra.mxu0 0.0
    %2009 = vmatprep.subr.mxu0 0.0
    %2010 = vmatpush1.msra.mxu0 0.0
    %2011 = vmatprep.subr.mxu0 0.0
    %2012 = vmatpush1.msra.mxu0 0.0
    %2013 = vmatprep.subr.mxu0 0.0
    %2014 = vmatpush1.msra.mxu0 0.0
    %2015 = vmatprep.mubr.f32.mxu0 0.0
    %2016 = vmatmul.mubr.f32.gmra.mrb[0].mxu0 %v1937
    %v2017 = vpop.f32.mrb[0].mxu0
    %v2018 = vadd.f32 %v1933, %v2017
    %v2019 = vpop.f32.mrb[0].mxu0
    %2020 = vmatprep.mubr.f32.mxu0 0.0
    %2021 = vmatmul.mubr.f32.gmra.mrb[0].mxu0 %v1940
    %v2022 = vpop.f32.mrb[0].mxu0
    %v2023 = vadd.f32 %v1933, %v2022
    %v2024 = vpop.f32.mrb[0].mxu0
    %2025 = vmatprep.mubr.f32.mxu0 0.0
    %2026 = vmatmul.mubr.f32.gmra.mrb[0].mxu0 %v1943
    %v2027 = vpop.f32.mrb[0].mxu0
    %v2028 = vadd.f32 %v1933, %v2027
    %v2029 = vpop.f32.mrb[0].mxu0
    %2030 = vmatprep.mubr.f32.mxu0 0.0
    %2031 = vmatmul.mubr.f32.gmra.mrb[0].mxu0 %v1946
    %v2032 = vpop.f32.mrb[0].mxu0
    %v2033 = vadd.f32 %v1933, %v2032
    %v2034 = vpop.f32.mrb[0].mxu0
    %2035 = vmatprep.mubr.f32.mxu0 0.0
    %2036 = vmatmul.mubr.f32.gmra.mrb[0].mxu0 %v1949
    %v2037 = vpop.f32.mrb[0].mxu0
    %v2038 = vadd.f32 %v1933, %v2037
    %v2039 = vpop.f32.mrb[0].mxu0
    %2040 = vdwg.mxu0
    %v2041 = vadd.f32 %v1575, %v2018
    %v2042 = vadd.f32 %v1576, %v2023
    %v2043 = vadd.f32 %v1577, %v2028
    %v2044 = vadd.f32 %v1578, %v2033
    %v2045 = vadd.f32 %v1579, %v2038
    %v2046 = vld [vmem:[%s31] sm:$0x1]
    %v2047 = vld [vmem:[%s33] sm:$0x1]
    %v2048 = vsel %vm251, %v2041, 0.0
    %2049 = vadd.xlane.f32.xlu0 %v2048
    %v2050 = vpop.xlane.xlu0 %2049
    %v2051 = vsel %vm251, %v2042, 0.0
    %2052 = vadd.xlane.f32.xlu0 %v2051
    %v2053 = vpop.xlane.xlu0 %2052
    %v2054 = vsel %vm251, %v2043, 0.0
    %2055 = vadd.xlane.f32.xlu0 %v2054
    %v2056 = vpop.xlane.xlu0 %2055
    %v2057 = vsel %vm251, %v2044, 0.0
    %2058 = vadd.xlane.f32.xlu0 %v2057
    %v2059 = vpop.xlane.xlu0 %2058
    %v2060 = vsel %vm264, %v2045, 0.0
    %2061 = vadd.xlane.f32.xlu0 %v2060
    %v2062 = vpop.xlane.xlu0 %2061
    %v2063 = vmul.f32 %v2050, %v268
    %v2064 = vmul.f32 %v2053, %v268
    %v2065 = vmul.f32 %v2056, %v268
    %v2066 = vmul.f32 %v2059, %v268
    %v2067 = vmul.f32 %v2062, %v268
    %v2068 = vsub.f32 %v2041, %v2063
    %v2069 = vsub.f32 %v2042, %v2064
    %v2070 = vsub.f32 %v2043, %v2065
    %v2071 = vsub.f32 %v2044, %v2066
    %v2072 = vsub.f32 %v2045, %v2067
    %v2073 = vmul.f32 %v2068, %v2068
    %v2074 = vmul.f32 %v2069, %v2069
    %v2075 = vmul.f32 %v2070, %v2070
    %v2076 = vmul.f32 %v2071, %v2071
    %v2077 = vmul.f32 %v2072, %v2072
    %v2078 = vsel %vm251, %v2073, 0.0
    %2079 = vadd.xlane.f32.xlu0 %v2078
    %v2080 = vpop.xlane.xlu0 %2079
    %v2081 = vsel %vm251, %v2074, 0.0
    %2082 = vadd.xlane.f32.xlu0 %v2081
    %v2083 = vpop.xlane.xlu0 %2082
    %v2084 = vsel %vm251, %v2075, 0.0
    %2085 = vadd.xlane.f32.xlu0 %v2084
    %v2086 = vpop.xlane.xlu0 %2085
    %v2087 = vsel %vm251, %v2076, 0.0
    %2088 = vadd.xlane.f32.xlu0 %v2087
    %v2089 = vpop.xlane.xlu0 %2088
    %v2090 = vsel %vm264, %v2077, 0.0
    %2091 = vadd.xlane.f32.xlu0 %v2090
    %v2092 = vpop.xlane.xlu0 %2091
    %v2093 = vmul.f32 %v2080, %v268
    %v2094 = vmul.f32 %v2083, %v268
    %v2095 = vmul.f32 %v2086, %v268
    %v2096 = vmul.f32 %v2089, %v268
    %v2097 = vmul.f32 %v2092, %v268
    %v2098 = vadd.f32 %v2093, 1e-06
    %v2099 = vadd.f32 %v2094, 1e-06
    %v2100 = vadd.f32 %v2095, 1e-06
    %v2101 = vadd.f32 %v2096, 1e-06
    %v2102 = vadd.f32 %v2097, 1e-06
    %v2103 = vrsqrt.pop %v2098
    %v2104 = vrsqrt.pop %v2099
    %v2105 = vrsqrt.pop %v2100
    %v2106 = vrsqrt.pop %v2101
    %v2107 = vrsqrt.pop %v2102
    %v2108 = vmul.f32 %v2068, %v2103
    %v2109 = vmul.f32 %v2069, %v2104
    %v2110 = vmul.f32 %v2070, %v2105
    %v2111 = vmul.f32 %v2071, %v2106
    %v2112 = vmul.f32 %v2072, %v2107
    %v2114 = vlaneseq
    %v2115 = vshrl.u32 %v2114, 7
    %v2116 = vsub.s32 0, %v2115
    %v2117 = vrot.slane %v2046, %v2116
    %v2119 = vmul.f32 %v2108, %v2117
    %v2120 = vmul.f32 %v2109, %v2117
    %v2121 = vmul.f32 %v2110, %v2117
    %v2122 = vmul.f32 %v2111, %v2117
    %v2123 = vmul.f32 %v2112, %v2117
    %v2125 = vlaneseq
    %v2126 = vshrl.u32 %v2125, 7
    %v2127 = vsub.s32 0, %v2126
    %v2128 = vrot.slane %v2047, %v2127
    %v2130 = vadd.f32 %v2119, %v2128
    %v2131 = vadd.f32 %v2120, %v2128
    %v2132 = vadd.f32 %v2121, %v2128
    %v2133 = vadd.f32 %v2122, %v2128
    %v2134 = vadd.f32 %v2123, %v2128
    %v2135 = vld [vmem:[%s35] sm:$0xff]
    %v2136 = vld [vmem:[%s35 + $0x8] sm:$0xff]
    %v2137 = vld [vmem:[%s35 + $0x10] sm:$0xff]
    %v2138 = vld [vmem:[%s35 + $0x18] sm:$0xff]
    %v2139 = vld [vmem:[%s37] sm:$0x1]
    %v2141 = vlaneseq
    %v2142 = vshrl.u32 %v2141, 7
    %v2143 = vsub.s32 0, %v2142
    %v2144 = vrot.slane %v2139, %v2143
    %v2147 = vsel %vm251, %v2130, 0
    %v2150 = vsel %vm251, %v2131, 0
    %v2153 = vsel %vm251, %v2132, 0
    %v2156 = vsel %vm251, %v2133, 0
    %v2159 = vsel %vm251, %v2134, 0
    %2161 = vmatprep.subr.mxu0 0.0
    %2162 = vmatpush1.msra.mxu0 %v2135
    %2163 = vmatprep.subr.mxu0 0.0
    %2164 = vmatpush1.msra.mxu0 %v2136
    %2165 = vmatprep.subr.mxu0 0.0
    %2166 = vmatpush1.msra.mxu0 %v2137
    %2167 = vmatprep.subr.mxu0 0.0
    %2168 = vmatpush1.msra.mxu0 %v2138
    %2169 = vmatprep.subr.mxu0 0.0
    %2170 = vmatpush1.msra.mxu0 0.0
    %2171 = vmatprep.subr.mxu0 0.0
    %2172 = vmatpush1.msra.mxu0 0.0
    %2173 = vmatprep.subr.mxu0 0.0
    %2174 = vmatpush1.msra.mxu0 0.0
    %2175 = vmatprep.subr.mxu0 0.0
    %2176 = vmatpush1.msra.mxu0 0.0
    %2177 = vmatprep.subr.mxu0 0.0
    %2178 = vmatpush1.msra.mxu0 0.0
    %2179 = vmatprep.subr.mxu0 0.0
    %2180 = vmatpush1.msra.mxu0 0.0
    %2181 = vmatprep.subr.mxu0 0.0
    %2182 = vmatpush1.msra.mxu0 0.0
    %2183 = vmatprep.subr.mxu0 0.0
    %2184 = vmatpush1.msra.mxu0 0.0
    %2185 = vmatprep.subr.mxu0 0.0
    %2186 = vmatpush1.msra.mxu0 0.0
    %2187 = vmatprep.subr.mxu0 0.0
    %2188 = vmatpush1.msra.mxu0 0.0
    %2189 = vmatprep.subr.mxu0 0.0
    %2190 = vmatpush1.msra.mxu0 0.0
    %2191 = vmatprep.subr.mxu0 0.0
    %2192 = vmatpush1.msra.mxu0 0.0
    %2193 = vmatprep.subr.mxu0 0.0
    %2194 = vmatpush1.msra.mxu0 0.0
    %2195 = vmatprep.subr.mxu0 0.0
    %2196 = vmatpush1.msra.mxu0 0.0
    %2197 = vmatprep.subr.mxu0 0.0
    %2198 = vmatpush1.msra.mxu0 0.0
    %2199 = vmatprep.subr.mxu0 0.0
    %2200 = vmatpush1.msra.mxu0 0.0
    %2201 = vmatprep.subr.mxu0 0.0
    %2202 = vmatpush1.msra.mxu0 0.0
    %2203 = vmatprep.subr.mxu0 0.0
    %2204 = vmatpush1.msra.mxu0 0.0
    %2205 = vmatprep.subr.mxu0 0.0
    %2206 = vmatpush1.msra.mxu0 0.0
    %2207 = vmatprep.subr.mxu0 0.0
    %2208 = vmatpush1.msra.mxu0 0.0
    %2209 = vmatprep.subr.mxu0 0.0
    %2210 = vmatpush1.msra.mxu0 0.0
    %2211 = vmatprep.subr.mxu0 0.0
    %2212 = vmatpush1.msra.mxu0 0.0
    %2213 = vmatprep.subr.mxu0 0.0
    %2214 = vmatpush1.msra.mxu0 0.0
    %2215 = vmatprep.subr.mxu0 0.0
    %2216 = vmatpush1.msra.mxu0 0.0
    %2217 = vmatprep.subr.mxu0 0.0
    %2218 = vmatpush1.msra.mxu0 0.0
    %2219 = vmatprep.subr.mxu0 0.0
    %2220 = vmatpush1.msra.mxu0 0.0
    %2221 = vmatprep.subr.mxu0 0.0
    %2222 = vmatpush1.msra.mxu0 0.0
    %2223 = vmatprep.subr.mxu0 0.0
    %2224 = vmatpush1.msra.mxu0 0.0
    %2225 = vmatprep.mubr.f32.mxu0 0.0
    %2226 = vmatmul.mubr.f32.gmra.mrb[0].mxu0 %v2147
    %v2227 = vpop.f32.mrb[0].mxu0
    %v2228 = vadd.f32 %v2144, %v2227
    %v2229 = vpop.f32.mrb[0].mxu0
    %2230 = vmatprep.mubr.f32.mxu0 0.0
    %2231 = vmatmul.mubr.f32.gmra.mrb[0].mxu0 %v2150
    %v2232 = vpop.f32.mrb[0].mxu0
    %v2233 = vadd.f32 %v2144, %v2232
    %v2234 = vpop.f32.mrb[0].mxu0
    %2235 = vmatprep.mubr.f32.mxu0 0.0
    %2236 = vmatmul.mubr.f32.gmra.mrb[0].mxu0 %v2153
    %v2237 = vpop.f32.mrb[0].mxu0
    %v2238 = vadd.f32 %v2144, %v2237
    %v2239 = vpop.f32.mrb[0].mxu0
    %2240 = vmatprep.mubr.f32.mxu0 0.0
    %2241 = vmatmul.mubr.f32.gmra.mrb[0].mxu0 %v2156
    %v2242 = vpop.f32.mrb[0].mxu0
    %v2243 = vadd.f32 %v2144, %v2242
    %v2244 = vpop.f32.mrb[0].mxu0
    %2245 = vmatprep.mubr.f32.mxu0 0.0
    %2246 = vmatmul.mubr.f32.gmra.mrb[0].mxu0 %v2159
    %v2247 = vpop.f32.mrb[0].mxu0
    %v2248 = vadd.f32 %v2144, %v2247
    %v2249 = vpop.f32.mrb[0].mxu0
    %2250 = vdwg.mxu0
    %2254 = vrot.lane.b32.xlu0 %v2228, 96
    %v2255 = vpop.permute.xlu0 %2254
    %2256 = vrot.lane.b32.xlu0 %v2233, 96
    %v2257 = vpop.permute.xlu0 %2256
    %2258 = vrot.lane.b32.xlu0 %v2238, 96
    %v2259 = vpop.permute.xlu0 %2258
    %v2260 = vsel %vm143, %v2228, 0
    %v2262 = vsel %vm143, %v2233, 0
    %v2264 = vsel %vm143, %v2238, 0
    %v2266 = vsel %vm143, %v2255, 0
    %v2268 = vsel %vm143, %v2257, 0
    %v2270 = vsel %vm143, %v2259, 0
    %2272 = vmatprep.subr.mxu0 0.0
    %2273 = vmatpush1.xpose.msra.mxu0 %v2266
    %2274 = vmatprep.subr.mxu0 0.0
    %2275 = vmatpush1.xpose.msra.mxu0 %v2268
    %2276 = vmatprep.subr.mxu0 0.0
    %2277 = vmatpush1.xpose.msra.mxu0 %v2270
    %2278 = vmatprep.subr.mxu0 0.0
    %2279 = vmatpush1.xpose.msra.mxu0 0.0
    %2280 = vmatprep.subr.mxu0 0.0
    %2281 = vmatpush1.xpose.msra.mxu0 0.0
    %2282 = vmatprep.subr.mxu0 0.0
    %2283 = vmatpush1.xpose.msra.mxu0 0.0
    %2284 = vmatprep.subr.mxu0 0.0
    %2285 = vmatpush1.xpose.msra.mxu0 0.0
    %2286 = vmatprep.subr.mxu0 0.0
    %2287 = vmatpush1.xpose.msra.mxu0 0.0
    %2288 = vmatprep.subr.mxu0 0.0
    %2289 = vmatpush1.xpose.msra.mxu0 0.0
    %2290 = vmatprep.subr.mxu0 0.0
    %2291 = vmatpush1.xpose.msra.mxu0 0.0
    %2292 = vmatprep.subr.mxu0 0.0
    %2293 = vmatpush1.xpose.msra.mxu0 0.0
    %2294 = vmatprep.subr.mxu0 0.0
    %2295 = vmatpush1.xpose.msra.mxu0 0.0
    %2296 = vmatprep.subr.mxu0 0.0
    %2297 = vmatpush1.xpose.msra.mxu0 0.0
    %2298 = vmatprep.subr.mxu0 0.0
    %2299 = vmatpush1.xpose.msra.mxu0 0.0
    %2300 = vmatprep.subr.mxu0 0.0
    %2301 = vmatpush1.xpose.msra.mxu0 0.0
    %2302 = vmatprep.subr.mxu0 0.0
    %2303 = vmatpush1.xpose.msra.mxu0 0.0
    %2304 = vmatprep.subr.mxu0 0.0
    %2305 = vmatpush1.xpose.msra.mxu0 0.0
    %2306 = vmatprep.subr.mxu0 0.0
    %2307 = vmatpush1.xpose.msra.mxu0 0.0
    %2308 = vmatprep.subr.mxu0 0.0
    %2309 = vmatpush1.xpose.msra.mxu0 0.0
    %2310 = vmatprep.subr.mxu0 0.0
    %2311 = vmatpush1.xpose.msra.mxu0 0.0
    %2312 = vmatprep.subr.mxu0 0.0
    %2313 = vmatpush1.xpose.msra.mxu0 0.0
    %2314 = vmatprep.subr.mxu0 0.0
    %2315 = vmatpush1.xpose.msra.mxu0 0.0
    %2316 = vmatprep.subr.mxu0 0.0
    %2317 = vmatpush1.xpose.msra.mxu0 0.0
    %2318 = vmatprep.subr.mxu0 0.0
    %2319 = vmatpush1.xpose.msra.mxu0 0.0
    %2320 = vmatprep.subr.mxu0 0.0
    %2321 = vmatpush1.xpose.msra.mxu0 0.0
    %2322 = vmatprep.subr.mxu0 0.0
    %2323 = vmatpush1.xpose.msra.mxu0 0.0
    %2324 = vmatprep.subr.mxu0 0.0
    %2325 = vmatpush1.xpose.msra.mxu0 0.0
    %2326 = vmatprep.subr.mxu0 0.0
    %2327 = vmatpush1.xpose.msra.mxu0 0.0
    %2328 = vmatprep.subr.mxu0 0.0
    %2329 = vmatpush1.xpose.msra.mxu0 0.0
    %2330 = vmatprep.subr.mxu0 0.0
    %2331 = vmatpush1.xpose.msra.mxu0 0.0
    %2332 = vmatprep.subr.mxu0 0.0
    %2333 = vmatpush1.xpose.msra.mxu0 0.0
    %2334 = vmatprep.subr.mxu0 0.0
    %2335 = vmatpush1.xpose.msra.mxu0 0.0
    %2336 = vmatprep.mubr.f32.mxu0 0.0
    %2337 = vmatmul.mubr.f32.gmra.mrb[0].mxu0 %v2260
    %v2338 = vpop.f32.mrb[0].mxu0
    %v2339 = vadd.f32 0.0, %v2338
    %v2340 = vpop.f32.mrb[0].mxu0
    %2341 = vmatprep.mubr.f32.mxu0 0.0
    %2342 = vmatmul.mubr.f32.gmra.mrb[0].mxu0 %v2262
    %v2343 = vpop.f32.mrb[0].mxu0
    %v2344 = vadd.f32 0.0, %v2343
    %v2345 = vpop.f32.mrb[0].mxu0
    %2346 = vmatprep.mubr.f32.mxu0 0.0
    %2347 = vmatmul.mubr.f32.gmra.mrb[0].mxu0 %v2264
    %v2348 = vpop.f32.mrb[0].mxu0
    %v2349 = vadd.f32 0.0, %v2348
    %v2350 = vpop.f32.mrb[0].mxu0
    %2351 = vdwg.mxu0
    %v2352 = vmul.f32 %v2339, 0.25
    %v2353 = vmul.f32 %v2344, 0.25
    %v2354 = vmul.f32 %v2349, 0.25
    %v2355 = vsel %vm561, %v2352, -inf
    %2356 = vmax.xlane.f32.xlu0 %v2355
    %v2357 = vpop.xlane.xlu0 %2356
    %v2358 = vsel %vm561, %v2353, -inf
    %2359 = vmax.xlane.f32.xlu0 %v2358
    %v2360 = vpop.xlane.xlu0 %2359
    %v2361 = vsel %vm568, %v2354, -inf
    %2362 = vmax.xlane.f32.xlu0 %v2361
    %v2363 = vpop.xlane.xlu0 %2362
    %v2364 = vsub.f32 %v2352, %v2357
    %v2365 = vsub.f32 %v2353, %v2360
    %v2366 = vsub.f32 %v2354, %v2363
    %v2367 = vmul.f32 %v2364, 1.442695
    %v2368 = vpow.pop %v2367
    %v2369 = vmul.f32 %v2365, 1.442695
    %v2370 = vpow.pop %v2369
    %v2371 = vmul.f32 %v2366, 1.442695
    %v2372 = vpow.pop %v2371
    %v2373 = vsel %vm561, %v2368, 0.0
    %2374 = vadd.xlane.f32.xlu0 %v2373
    %v2375 = vpop.xlane.xlu0 %2374
    %v2376 = vsel %vm561, %v2370, 0.0
    %2377 = vadd.xlane.f32.xlu0 %v2376
    %v2378 = vpop.xlane.xlu0 %2377
    %v2379 = vsel %vm568, %v2372, 0.0
    %2380 = vadd.xlane.f32.xlu0 %v2379
    %v2381 = vpop.xlane.xlu0 %2380
    %v2382 = vrcp.pop %v2375
    %v2383 = vrcp.pop %v2378
    %v2384 = vrcp.pop %v2381
    %v2385 = vmul.f32 %v2368, %v2382
    %v2386 = vmul.f32 %v2370, %v2383
    %v2387 = vmul.f32 %v2372, %v2384
    %2388 = vrot.lane.b32.xlu0 %v2228, 64
    %v2389 = vpop.permute.xlu0 %2388
    %2390 = vrot.lane.b32.xlu0 %v2233, 64
    %v2391 = vpop.permute.xlu0 %2390
    %2392 = vrot.lane.b32.xlu0 %v2238, 64
    %v2393 = vpop.permute.xlu0 %2392
    %v2397 = vsel %vm561, %v2385, 0
    %v2400 = vsel %vm561, %v2386, 0
    %v2403 = vsel %vm561, %v2387, 0
    %v2405 = vsel %vm613, %v2393, 0
    %2407 = vmatprep.subr.mxu0 0.0
    %2408 = vmatpush1.msra.mxu0 %v2389
    %2409 = vmatprep.subr.mxu0 0.0
    %2410 = vmatpush1.msra.mxu0 %v2391
    %2411 = vmatprep.subr.mxu0 0.0
    %2412 = vmatpush1.msra.mxu0 %v2405
    %2413 = vmatprep.subr.mxu0 0.0
    %2414 = vmatpush1.msra.mxu0 0.0
    %2415 = vmatprep.subr.mxu0 0.0
    %2416 = vmatpush1.msra.mxu0 0.0
    %2417 = vmatprep.subr.mxu0 0.0
    %2418 = vmatpush1.msra.mxu0 0.0
    %2419 = vmatprep.subr.mxu0 0.0
    %2420 = vmatpush1.msra.mxu0 0.0
    %2421 = vmatprep.subr.mxu0 0.0
    %2422 = vmatpush1.msra.mxu0 0.0
    %2423 = vmatprep.subr.mxu0 0.0
    %2424 = vmatpush1.msra.mxu0 0.0
    %2425 = vmatprep.subr.mxu0 0.0
    %2426 = vmatpush1.msra.mxu0 0.0
    %2427 = vmatprep.subr.mxu0 0.0
    %2428 = vmatpush1.msra.mxu0 0.0
    %2429 = vmatprep.subr.mxu0 0.0
    %2430 = vmatpush1.msra.mxu0 0.0
    %2431 = vmatprep.subr.mxu0 0.0
    %2432 = vmatpush1.msra.mxu0 0.0
    %2433 = vmatprep.subr.mxu0 0.0
    %2434 = vmatpush1.msra.mxu0 0.0
    %2435 = vmatprep.subr.mxu0 0.0
    %2436 = vmatpush1.msra.mxu0 0.0
    %2437 = vmatprep.subr.mxu0 0.0
    %2438 = vmatpush1.msra.mxu0 0.0
    %2439 = vmatprep.subr.mxu0 0.0
    %2440 = vmatpush1.msra.mxu0 0.0
    %2441 = vmatprep.subr.mxu0 0.0
    %2442 = vmatpush1.msra.mxu0 0.0
    %2443 = vmatprep.subr.mxu0 0.0
    %2444 = vmatpush1.msra.mxu0 0.0
    %2445 = vmatprep.subr.mxu0 0.0
    %2446 = vmatpush1.msra.mxu0 0.0
    %2447 = vmatprep.subr.mxu0 0.0
    %2448 = vmatpush1.msra.mxu0 0.0
    %2449 = vmatprep.subr.mxu0 0.0
    %2450 = vmatpush1.msra.mxu0 0.0
    %2451 = vmatprep.subr.mxu0 0.0
    %2452 = vmatpush1.msra.mxu0 0.0
    %2453 = vmatprep.subr.mxu0 0.0
    %2454 = vmatpush1.msra.mxu0 0.0
    %2455 = vmatprep.subr.mxu0 0.0
    %2456 = vmatpush1.msra.mxu0 0.0
    %2457 = vmatprep.subr.mxu0 0.0
    %2458 = vmatpush1.msra.mxu0 0.0
    %2459 = vmatprep.subr.mxu0 0.0
    %2460 = vmatpush1.msra.mxu0 0.0
    %2461 = vmatprep.subr.mxu0 0.0
    %2462 = vmatpush1.msra.mxu0 0.0
    %2463 = vmatprep.subr.mxu0 0.0
    %2464 = vmatpush1.msra.mxu0 0.0
    %2465 = vmatprep.subr.mxu0 0.0
    %2466 = vmatpush1.msra.mxu0 0.0
    %2467 = vmatprep.subr.mxu0 0.0
    %2468 = vmatpush1.msra.mxu0 0.0
    %2469 = vmatprep.subr.mxu0 0.0
    %2470 = vmatpush1.msra.mxu0 0.0
    %2471 = vmatprep.mubr.f32.mxu0 0.0
    %2472 = vmatmul.mubr.f32.gmra.mrb[0].mxu0 %v2397
    %v2473 = vpop.f32.mrb[0].mxu0
    %v2474 = vadd.f32 0.0, %v2473
    %v2475 = vpop.f32.mrb[0].mxu0
    %2476 = vmatprep.mubr.f32.mxu0 0.0
    %2477 = vmatmul.mubr.f32.gmra.mrb[0].mxu0 %v2400
    %v2478 = vpop.f32.mrb[0].mxu0
    %v2479 = vadd.f32 0.0, %v2478
    %v2480 = vpop.f32.mrb[0].mxu0
    %2481 = vmatprep.mubr.f32.mxu0 0.0
    %2482 = vmatmul.mubr.f32.gmra.mrb[0].mxu0 %v2403
    %v2483 = vpop.f32.mrb[0].mxu0
    %v2484 = vadd.f32 0.0, %v2483
    %v2485 = vpop.f32.mrb[0].mxu0
    %2486 = vdwg.mxu0
    %2487 = vst.msk [vmem:[#allocation2] sm:$0xff] %vm143, %v2474
    %2488 = vst.msk [vmem:[#allocation2 + $0x8] sm:$0xff] %vm143, %v2479
    %2489 = vst.msk [vmem:[#allocation2 + $0x10] sm:$0x1] %vm698, %v2484
    %2490 = vrot.lane.b32.xlu0 %v2228, 112
    %v2491 = vpop.permute.xlu0 %2490
    %2492 = vrot.lane.b32.xlu0 %v2233, 112
    %v2493 = vpop.permute.xlu0 %2492
    %2494 = vrot.lane.b32.xlu0 %v2238, 112
    %v2495 = vpop.permute.xlu0 %2494
    %2496 = vrot.lane.b32.xlu0 %v2228, 80
    %v2497 = vpop.permute.xlu0 %2496
    %2498 = vrot.lane.b32.xlu0 %v2233, 80
    %v2499 = vpop.permute.xlu0 %2498
    %2500 = vrot.lane.b32.xlu0 %v2238, 80
    %v2501 = vpop.permute.xlu0 %2500
    %v2502 = vsel %vm143, %v2491, 0
    %v2504 = vsel %vm143, %v2493, 0
    %v2506 = vsel %vm143, %v2495, 0
    %v2508 = vsel %vm143, %v2497, 0
    %v2510 = vsel %vm143, %v2499, 0
    %v2512 = vsel %vm143, %v2501, 0
    %2514 = vmatprep.subr.mxu0 0.0
    %2515 = vmatpush1.xpose.msra.mxu0 %v2508
    %2516 = vmatprep.subr.mxu0 0.0
    %2517 = vmatpush1.xpose.msra.mxu0 %v2510
    %2518 = vmatprep.subr.mxu0 0.0
    %2519 = vmatpush1.xpose.msra.mxu0 %v2512
    %2520 = vmatprep.subr.mxu0 0.0
    %2521 = vmatpush1.xpose.msra.mxu0 0.0
    %2522 = vmatprep.subr.mxu0 0.0
    %2523 = vmatpush1.xpose.msra.mxu0 0.0
    %2524 = vmatprep.subr.mxu0 0.0
    %2525 = vmatpush1.xpose.msra.mxu0 0.0
    %2526 = vmatprep.subr.mxu0 0.0
    %2527 = vmatpush1.xpose.msra.mxu0 0.0
    %2528 = vmatprep.subr.mxu0 0.0
    %2529 = vmatpush1.xpose.msra.mxu0 0.0
    %2530 = vmatprep.subr.mxu0 0.0
    %2531 = vmatpush1.xpose.msra.mxu0 0.0
    %2532 = vmatprep.subr.mxu0 0.0
    %2533 = vmatpush1.xpose.msra.mxu0 0.0
    %2534 = vmatprep.subr.mxu0 0.0
    %2535 = vmatpush1.xpose.msra.mxu0 0.0
    %2536 = vmatprep.subr.mxu0 0.0
    %2537 = vmatpush1.xpose.msra.mxu0 0.0
    %2538 = vmatprep.subr.mxu0 0.0
    %2539 = vmatpush1.xpose.msra.mxu0 0.0
    %2540 = vmatprep.subr.mxu0 0.0
    %2541 = vmatpush1.xpose.msra.mxu0 0.0
    %2542 = vmatprep.subr.mxu0 0.0
    %2543 = vmatpush1.xpose.msra.mxu0 0.0
    %2544 = vmatprep.subr.mxu0 0.0
    %2545 = vmatpush1.xpose.msra.mxu0 0.0
    %2546 = vmatprep.subr.mxu0 0.0
    %2547 = vmatpush1.xpose.msra.mxu0 0.0
    %2548 = vmatprep.subr.mxu0 0.0
    %2549 = vmatpush1.xpose.msra.mxu0 0.0
    %2550 = vmatprep.subr.mxu0 0.0
    %2551 = vmatpush1.xpose.msra.mxu0 0.0
    %2552 = vmatprep.subr.mxu0 0.0
    %2553 = vmatpush1.xpose.msra.mxu0 0.0
    %2554 = vmatprep.subr.mxu0 0.0
    %2555 = vmatpush1.xpose.msra.mxu0 0.0
    %2556 = vmatprep.subr.mxu0 0.0
    %2557 = vmatpush1.xpose.msra.mxu0 0.0
    %2558 = vmatprep.subr.mxu0 0.0
    %2559 = vmatpush1.xpose.msra.mxu0 0.0
    %2560 = vmatprep.subr.mxu0 0.0
    %2561 = vmatpush1.xpose.msra.mxu0 0.0
    %2562 = vmatprep.subr.mxu0 0.0
    %2563 = vmatpush1.xpose.msra.mxu0 0.0
    %2564 = vmatprep.subr.mxu0 0.0
    %2565 = vmatpush1.xpose.msra.mxu0 0.0
    %2566 = vmatprep.subr.mxu0 0.0
    %2567 = vmatpush1.xpose.msra.mxu0 0.0
    %2568 = vmatprep.subr.mxu0 0.0
    %2569 = vmatpush1.xpose.msra.mxu0 0.0
    %2570 = vmatprep.subr.mxu0 0.0
    %2571 = vmatpush1.xpose.msra.mxu0 0.0
    %2572 = vmatprep.subr.mxu0 0.0
    %2573 = vmatpush1.xpose.msra.mxu0 0.0
    %2574 = vmatprep.subr.mxu0 0.0
    %2575 = vmatpush1.xpose.msra.mxu0 0.0
    %2576 = vmatprep.subr.mxu0 0.0
    %2577 = vmatpush1.xpose.msra.mxu0 0.0
    %2578 = vmatprep.mubr.f32.mxu0 0.0
    %2579 = vmatmul.mubr.f32.gmra.mrb[0].mxu0 %v2502
    %v2580 = vpop.f32.mrb[0].mxu0
    %v2581 = vadd.f32 0.0, %v2580
    %v2582 = vpop.f32.mrb[0].mxu0
    %2583 = vmatprep.mubr.f32.mxu0 0.0
    %2584 = vmatmul.mubr.f32.gmra.mrb[0].mxu0 %v2504
    %v2585 = vpop.f32.mrb[0].mxu0
    %v2586 = vadd.f32 0.0, %v2585
    %v2587 = vpop.f32.mrb[0].mxu0
    %2588 = vmatprep.mubr.f32.mxu0 0.0
    %2589 = vmatmul.mubr.f32.gmra.mrb[0].mxu0 %v2506
    %v2590 = vpop.f32.mrb[0].mxu0
    %v2591 = vadd.f32 0.0, %v2590
    %v2592 = vpop.f32.mrb[0].mxu0
    %2593 = vdwg.mxu0
    %v2594 = vmul.f32 %v2581, 0.25
    %v2595 = vmul.f32 %v2586, 0.25
    %v2596 = vmul.f32 %v2591, 0.25
    %v2597 = vsel %vm561, %v2594, -inf
    %2598 = vmax.xlane.f32.xlu0 %v2597
    %v2599 = vpop.xlane.xlu0 %2598
    %v2600 = vsel %vm561, %v2595, -inf
    %2601 = vmax.xlane.f32.xlu0 %v2600
    %v2602 = vpop.xlane.xlu0 %2601
    %v2603 = vsel %vm568, %v2596, -inf
    %2604 = vmax.xlane.f32.xlu0 %v2603
    %v2605 = vpop.xlane.xlu0 %2604
    %v2606 = vsub.f32 %v2594, %v2599
    %v2607 = vsub.f32 %v2595, %v2602
    %v2608 = vsub.f32 %v2596, %v2605
    %v2609 = vmul.f32 %v2606, 1.442695
    %v2610 = vpow.pop %v2609
    %v2611 = vmul.f32 %v2607, 1.442695
    %v2612 = vpow.pop %v2611
    %v2613 = vmul.f32 %v2608, 1.442695
    %v2614 = vpow.pop %v2613
    %v2615 = vsel %vm561, %v2610, 0.0
    %2616 = vadd.xlane.f32.xlu0 %v2615
    %v2617 = vpop.xlane.xlu0 %2616
    %v2618 = vsel %vm561, %v2612, 0.0
    %2619 = vadd.xlane.f32.xlu0 %v2618
    %v2620 = vpop.xlane.xlu0 %2619
    %v2621 = vsel %vm568, %v2614, 0.0
    %2622 = vadd.xlane.f32.xlu0 %v2621
    %v2623 = vpop.xlane.xlu0 %2622
    %v2624 = vrcp.pop %v2617
    %v2625 = vrcp.pop %v2620
    %v2626 = vrcp.pop %v2623
    %v2627 = vmul.f32 %v2610, %v2624
    %v2628 = vmul.f32 %v2612, %v2625
    %v2629 = vmul.f32 %v2614, %v2626
    %2630 = vrot.lane.b32.xlu0 %v2228, 48
    %v2631 = vpop.permute.xlu0 %2630
    %2632 = vrot.lane.b32.xlu0 %v2233, 48
    %v2633 = vpop.permute.xlu0 %2632
    %2634 = vrot.lane.b32.xlu0 %v2238, 48
    %v2635 = vpop.permute.xlu0 %2634
    %v2639 = vsel %vm561, %v2627, 0
    %v2642 = vsel %vm561, %v2628, 0
    %v2645 = vsel %vm561, %v2629, 0
    %v2647 = vsel %vm613, %v2635, 0
    %2649 = vmatprep.subr.mxu0 0.0
    %2650 = vmatpush1.msra.mxu0 %v2631
    %2651 = vmatprep.subr.mxu0 0.0
    %2652 = vmatpush1.msra.mxu0 %v2633
    %2653 = vmatprep.subr.mxu0 0.0
    %2654 = vmatpush1.msra.mxu0 %v2647
    %2655 = vmatprep.subr.mxu0 0.0
    %2656 = vmatpush1.msra.mxu0 0.0
    %2657 = vmatprep.subr.mxu0 0.0
    %2658 = vmatpush1.msra.mxu0 0.0
    %2659 = vmatprep.subr.mxu0 0.0
    %2660 = vmatpush1.msra.mxu0 0.0
    %2661 = vmatprep.subr.mxu0 0.0
    %2662 = vmatpush1.msra.mxu0 0.0
    %2663 = vmatprep.subr.mxu0 0.0
    %2664 = vmatpush1.msra.mxu0 0.0
    %2665 = vmatprep.subr.mxu0 0.0
    %2666 = vmatpush1.msra.mxu0 0.0
    %2667 = vmatprep.subr.mxu0 0.0
    %2668 = vmatpush1.msra.mxu0 0.0
    %2669 = vmatprep.subr.mxu0 0.0
    %2670 = vmatpush1.msra.mxu0 0.0
    %2671 = vmatprep.subr.mxu0 0.0
    %2672 = vmatpush1.msra.mxu0 0.0
    %2673 = vmatprep.subr.mxu0 0.0
    %2674 = vmatpush1.msra.mxu0 0.0
    %2675 = vmatprep.subr.mxu0 0.0
    %2676 = vmatpush1.msra.mxu0 0.0
    %2677 = vmatprep.subr.mxu0 0.0
    %2678 = vmatpush1.msra.mxu0 0.0
    %2679 = vmatprep.subr.mxu0 0.0
    %2680 = vmatpush1.msra.mxu0 0.0
    %2681 = vmatprep.subr.mxu0 0.0
    %2682 = vmatpush1.msra.mxu0 0.0
    %2683 = vmatprep.subr.mxu0 0.0
    %2684 = vmatpush1.msra.mxu0 0.0
    %2685 = vmatprep.subr.mxu0 0.0
    %2686 = vmatpush1.msra.mxu0 0.0
    %2687 = vmatprep.subr.mxu0 0.0
    %2688 = vmatpush1.msra.mxu0 0.0
    %2689 = vmatprep.subr.mxu0 0.0
    %2690 = vmatpush1.msra.mxu0 0.0
    %2691 = vmatprep.subr.mxu0 0.0
    %2692 = vmatpush1.msra.mxu0 0.0
    %2693 = vmatprep.subr.mxu0 0.0
    %2694 = vmatpush1.msra.mxu0 0.0
    %2695 = vmatprep.subr.mxu0 0.0
    %2696 = vmatpush1.msra.mxu0 0.0
    %2697 = vmatprep.subr.mxu0 0.0
    %2698 = vmatpush1.msra.mxu0 0.0
    %2699 = vmatprep.subr.mxu0 0.0
    %2700 = vmatpush1.msra.mxu0 0.0
    %2701 = vmatprep.subr.mxu0 0.0
    %2702 = vmatpush1.msra.mxu0 0.0
    %2703 = vmatprep.subr.mxu0 0.0
    %2704 = vmatpush1.msra.mxu0 0.0
    %2705 = vmatprep.subr.mxu0 0.0
    %2706 = vmatpush1.msra.mxu0 0.0
    %2707 = vmatprep.subr.mxu0 0.0
    %2708 = vmatpush1.msra.mxu0 0.0
    %2709 = vmatprep.subr.mxu0 0.0
    %2710 = vmatpush1.msra.mxu0 0.0
    %2711 = vmatprep.subr.mxu0 0.0
    %2712 = vmatpush1.msra.mxu0 0.0
    %2713 = vmatprep.mubr.f32.mxu0 0.0
    %2714 = vmatmul.mubr.f32.gmra.mrb[0].mxu0 %v2639
    %v2715 = vpop.f32.mrb[0].mxu0
    %v2716 = vadd.f32 0.0, %v2715
    %v2717 = vpop.f32.mrb[0].mxu0
    %2718 = vmatprep.mubr.f32.mxu0 0.0
    %2719 = vmatmul.mubr.f32.gmra.mrb[0].mxu0 %v2642
    %v2720 = vpop.f32.mrb[0].mxu0
    %v2721 = vadd.f32 0.0, %v2720
    %v2722 = vpop.f32.mrb[0].mxu0
    %2723 = vmatprep.mubr.f32.mxu0 0.0
    %2724 = vmatmul.mubr.f32.gmra.mrb[0].mxu0 %v2645
    %v2725 = vpop.f32.mrb[0].mxu0
    %v2726 = vadd.f32 0.0, %v2725
    %v2727 = vpop.f32.mrb[0].mxu0
    %2728 = vdwg.mxu0
    %2732 = vrot.lane.b32.xlu0 %v2716, 16
    %v2733 = vpop.permute.xlu0 %2732
    %2734 = vrot.lane.b32.xlu0 %v2721, 16
    %v2735 = vpop.permute.xlu0 %2734
    %2736 = vrot.lane.b32.xlu0 %v2726, 16
    %v2737 = vpop.permute.xlu0 %2736
    %2741 = vst.msk [vmem:[#allocation2] sm:$0xff] %vm951, %v2733
    %2742 = vst.msk [vmem:[#allocation2 + $0x8] sm:$0xff] %vm951, %v2735
    %2743 = vst.msk [vmem:[#allocation2 + $0x10] sm:$0x1] %vm954, %v2737
    %v2746 = vrot.slane %v2238, 1
    %v2747 = vrot.slane %v2243, 1
    %v2748 = vsel %vm958, %v2746, %v2747
    %v2749 = vrot.slane %v2248, 1
    %v2750 = vsel %vm958, %v2747, %v2749
    %2751 = vrot.lane.b32.xlu0 %v2748, 96
    %v2752 = vpop.permute.xlu0 %2751
    %2753 = vrot.lane.b32.xlu0 %v2750, 96
    %v2754 = vpop.permute.xlu0 %2753
    %2755 = vrot.lane.b32.xlu0 %v2749, 96
    %v2756 = vpop.permute.xlu0 %2755
    %v2757 = vsel %vm143, %v2748, 0
    %v2759 = vsel %vm143, %v2750, 0
    %v2761 = vsel %vm143, %v2749, 0
    %v2763 = vsel %vm143, %v2752, 0
    %v2765 = vsel %vm143, %v2754, 0
    %v2767 = vsel %vm143, %v2756, 0
    %2769 = vmatprep.subr.mxu0 0.0
    %2770 = vmatpush1.xpose.msra.mxu0 %v2763
    %2771 = vmatprep.subr.mxu0 0.0
    %2772 = vmatpush1.xpose.msra.mxu0 %v2765
    %2773 = vmatprep.subr.mxu0 0.0
    %2774 = vmatpush1.xpose.msra.mxu0 %v2767
    %2775 = vmatprep.subr.mxu0 0.0
    %2776 = vmatpush1.xpose.msra.mxu0 0.0
    %2777 = vmatprep.subr.mxu0 0.0
    %2778 = vmatpush1.xpose.msra.mxu0 0.0
    %2779 = vmatprep.subr.mxu0 0.0
    %2780 = vmatpush1.xpose.msra.mxu0 0.0
    %2781 = vmatprep.subr.mxu0 0.0
    %2782 = vmatpush1.xpose.msra.mxu0 0.0
    %2783 = vmatprep.subr.mxu0 0.0
    %2784 = vmatpush1.xpose.msra.mxu0 0.0
    %2785 = vmatprep.subr.mxu0 0.0
    %2786 = vmatpush1.xpose.msra.mxu0 0.0
    %2787 = vmatprep.subr.mxu0 0.0
    %2788 = vmatpush1.xpose.msra.mxu0 0.0
    %2789 = vmatprep.subr.mxu0 0.0
    %2790 = vmatpush1.xpose.msra.mxu0 0.0
    %2791 = vmatprep.subr.mxu0 0.0
    %2792 = vmatpush1.xpose.msra.mxu0 0.0
    %2793 = vmatprep.subr.mxu0 0.0
    %2794 = vmatpush1.xpose.msra.mxu0 0.0
    %2795 = vmatprep.subr.mxu0 0.0
    %2796 = vmatpush1.xpose.msra.mxu0 0.0
    %2797 = vmatprep.subr.mxu0 0.0
    %2798 = vmatpush1.xpose.msra.mxu0 0.0
    %2799 = vmatprep.subr.mxu0 0.0
    %2800 = vmatpush1.xpose.msra.mxu0 0.0
    %2801 = vmatprep.subr.mxu0 0.0
    %2802 = vmatpush1.xpose.msra.mxu0 0.0
    %2803 = vmatprep.subr.mxu0 0.0
    %2804 = vmatpush1.xpose.msra.mxu0 0.0
    %2805 = vmatprep.subr.mxu0 0.0
    %2806 = vmatpush1.xpose.msra.mxu0 0.0
    %2807 = vmatprep.subr.mxu0 0.0
    %2808 = vmatpush1.xpose.msra.mxu0 0.0
    %2809 = vmatprep.subr.mxu0 0.0
    %2810 = vmatpush1.xpose.msra.mxu0 0.0
    %2811 = vmatprep.subr.mxu0 0.0
    %2812 = vmatpush1.xpose.msra.mxu0 0.0
    %2813 = vmatprep.subr.mxu0 0.0
    %2814 = vmatpush1.xpose.msra.mxu0 0.0
    %2815 = vmatprep.subr.mxu0 0.0
    %2816 = vmatpush1.xpose.msra.mxu0 0.0
    %2817 = vmatprep.subr.mxu0 0.0
    %2818 = vmatpush1.xpose.msra.mxu0 0.0
    %2819 = vmatprep.subr.mxu0 0.0
    %2820 = vmatpush1.xpose.msra.mxu0 0.0
    %2821 = vmatprep.subr.mxu0 0.0
    %2822 = vmatpush1.xpose.msra.mxu0 0.0
    %2823 = vmatprep.subr.mxu0 0.0
    %2824 = vmatpush1.xpose.msra.mxu0 0.0
    %2825 = vmatprep.subr.mxu0 0.0
    %2826 = vmatpush1.xpose.msra.mxu0 0.0
    %2827 = vmatprep.subr.mxu0 0.0
    %2828 = vmatpush1.xpose.msra.mxu0 0.0
    %2829 = vmatprep.subr.mxu0 0.0
    %2830 = vmatpush1.xpose.msra.mxu0 0.0
    %2831 = vmatprep.subr.mxu0 0.0
    %2832 = vmatpush1.xpose.msra.mxu0 0.0
    %2833 = vmatprep.mubr.f32.mxu0 0.0
    %2834 = vmatmul.mubr.f32.gmra.mrb[0].mxu0 %v2757
    %v2835 = vpop.f32.mrb[0].mxu0
    %v2836 = vadd.f32 0.0, %v2835
    %v2837 = vpop.f32.mrb[0].mxu0
    %2838 = vmatprep.mubr.f32.mxu0 0.0
    %2839 = vmatmul.mubr.f32.gmra.mrb[0].mxu0 %v2759
    %v2840 = vpop.f32.mrb[0].mxu0
    %v2841 = vadd.f32 0.0, %v2840
    %v2842 = vpop.f32.mrb[0].mxu0
    %2843 = vmatprep.mubr.f32.mxu0 0.0
    %2844 = vmatmul.mubr.f32.gmra.mrb[0].mxu0 %v2761
    %v2845 = vpop.f32.mrb[0].mxu0
    %v2846 = vadd.f32 0.0, %v2845
    %v2847 = vpop.f32.mrb[0].mxu0
    %2848 = vdwg.mxu0
    %v2849 = vmul.f32 %v2836, 0.25
    %v2850 = vmul.f32 %v2841, 0.25
    %v2851 = vmul.f32 %v2846, 0.25
    %v2852 = vsel %vm561, %v2849, -inf
    %2853 = vmax.xlane.f32.xlu0 %v2852
    %v2854 = vpop.xlane.xlu0 %2853
    %v2855 = vsel %vm561, %v2850, -inf
    %2856 = vmax.xlane.f32.xlu0 %v2855
    %v2857 = vpop.xlane.xlu0 %2856
    %v2858 = vsel %vm568, %v2851, -inf
    %2859 = vmax.xlane.f32.xlu0 %v2858
    %v2860 = vpop.xlane.xlu0 %2859
    %v2861 = vsub.f32 %v2849, %v2854
    %v2862 = vsub.f32 %v2850, %v2857
    %v2863 = vsub.f32 %v2851, %v2860
    %v2864 = vmul.f32 %v2861, 1.442695
    %v2865 = vpow.pop %v2864
    %v2866 = vmul.f32 %v2862, 1.442695
    %v2867 = vpow.pop %v2866
    %v2868 = vmul.f32 %v2863, 1.442695
    %v2869 = vpow.pop %v2868
    %v2870 = vsel %vm561, %v2865, 0.0
    %2871 = vadd.xlane.f32.xlu0 %v2870
    %v2872 = vpop.xlane.xlu0 %2871
    %v2873 = vsel %vm561, %v2867, 0.0
    %2874 = vadd.xlane.f32.xlu0 %v2873
    %v2875 = vpop.xlane.xlu0 %2874
    %v2876 = vsel %vm568, %v2869, 0.0
    %2877 = vadd.xlane.f32.xlu0 %v2876
    %v2878 = vpop.xlane.xlu0 %2877
    %v2879 = vrcp.pop %v2872
    %v2880 = vrcp.pop %v2875
    %v2881 = vrcp.pop %v2878
    %v2882 = vmul.f32 %v2865, %v2879
    %v2883 = vmul.f32 %v2867, %v2880
    %v2884 = vmul.f32 %v2869, %v2881
    %2885 = vrot.lane.b32.xlu0 %v2748, 64
    %v2886 = vpop.permute.xlu0 %2885
    %2887 = vrot.lane.b32.xlu0 %v2750, 64
    %v2888 = vpop.permute.xlu0 %2887
    %2889 = vrot.lane.b32.xlu0 %v2749, 64
    %v2890 = vpop.permute.xlu0 %2889
    %v2894 = vsel %vm561, %v2882, 0
    %v2897 = vsel %vm561, %v2883, 0
    %v2900 = vsel %vm561, %v2884, 0
    %v2902 = vsel %vm613, %v2890, 0
    %2904 = vmatprep.subr.mxu0 0.0
    %2905 = vmatpush1.msra.mxu0 %v2886
    %2906 = vmatprep.subr.mxu0 0.0
    %2907 = vmatpush1.msra.mxu0 %v2888
    %2908 = vmatprep.subr.mxu0 0.0
    %2909 = vmatpush1.msra.mxu0 %v2902
    %2910 = vmatprep.subr.mxu0 0.0
    %2911 = vmatpush1.msra.mxu0 0.0
    %2912 = vmatprep.subr.mxu0 0.0
    %2913 = vmatpush1.msra.mxu0 0.0
    %2914 = vmatprep.subr.mxu0 0.0
    %2915 = vmatpush1.msra.mxu0 0.0
    %2916 = vmatprep.subr.mxu0 0.0
    %2917 = vmatpush1.msra.mxu0 0.0
    %2918 = vmatprep.subr.mxu0 0.0
    %2919 = vmatpush1.msra.mxu0 0.0
    %2920 = vmatprep.subr.mxu0 0.0
    %2921 = vmatpush1.msra.mxu0 0.0
    %2922 = vmatprep.subr.mxu0 0.0
    %2923 = vmatpush1.msra.mxu0 0.0
    %2924 = vmatprep.subr.mxu0 0.0
    %2925 = vmatpush1.msra.mxu0 0.0
    %2926 = vmatprep.subr.mxu0 0.0
    %2927 = vmatpush1.msra.mxu0 0.0
    %2928 = vmatprep.subr.mxu0 0.0
    %2929 = vmatpush1.msra.mxu0 0.0
    %2930 = vmatprep.subr.mxu0 0.0
    %2931 = vmatpush1.msra.mxu0 0.0
    %2932 = vmatprep.subr.mxu0 0.0
    %2933 = vmatpush1.msra.mxu0 0.0
    %2934 = vmatprep.subr.mxu0 0.0
    %2935 = vmatpush1.msra.mxu0 0.0
    %2936 = vmatprep.subr.mxu0 0.0
    %2937 = vmatpush1.msra.mxu0 0.0
    %2938 = vmatprep.subr.mxu0 0.0
    %2939 = vmatpush1.msra.mxu0 0.0
    %2940 = vmatprep.subr.mxu0 0.0
    %2941 = vmatpush1.msra.mxu0 0.0
    %2942 = vmatprep.subr.mxu0 0.0
    %2943 = vmatpush1.msra.mxu0 0.0
    %2944 = vmatprep.subr.mxu0 0.0
    %2945 = vmatpush1.msra.mxu0 0.0
    %2946 = vmatprep.subr.mxu0 0.0
    %2947 = vmatpush1.msra.mxu0 0.0
    %2948 = vmatprep.subr.mxu0 0.0
    %2949 = vmatpush1.msra.mxu0 0.0
    %2950 = vmatprep.subr.mxu0 0.0
    %2951 = vmatpush1.msra.mxu0 0.0
    %2952 = vmatprep.subr.mxu0 0.0
    %2953 = vmatpush1.msra.mxu0 0.0
    %2954 = vmatprep.subr.mxu0 0.0
    %2955 = vmatpush1.msra.mxu0 0.0
    %2956 = vmatprep.subr.mxu0 0.0
    %2957 = vmatpush1.msra.mxu0 0.0
    %2958 = vmatprep.subr.mxu0 0.0
    %2959 = vmatpush1.msra.mxu0 0.0
    %2960 = vmatprep.subr.mxu0 0.0
    %2961 = vmatpush1.msra.mxu0 0.0
    %2962 = vmatprep.subr.mxu0 0.0
    %2963 = vmatpush1.msra.mxu0 0.0
    %2964 = vmatprep.subr.mxu0 0.0
    %2965 = vmatpush1.msra.mxu0 0.0
    %2966 = vmatprep.subr.mxu0 0.0
    %2967 = vmatpush1.msra.mxu0 0.0
    %2968 = vmatprep.mubr.f32.mxu0 0.0
    %2969 = vmatmul.mubr.f32.gmra.mrb[0].mxu0 %v2894
    %v2970 = vpop.f32.mrb[0].mxu0
    %v2971 = vadd.f32 0.0, %v2970
    %v2972 = vpop.f32.mrb[0].mxu0
    %2973 = vmatprep.mubr.f32.mxu0 0.0
    %2974 = vmatmul.mubr.f32.gmra.mrb[0].mxu0 %v2897
    %v2975 = vpop.f32.mrb[0].mxu0
    %v2976 = vadd.f32 0.0, %v2975
    %v2977 = vpop.f32.mrb[0].mxu0
    %2978 = vmatprep.mubr.f32.mxu0 0.0
    %2979 = vmatmul.mubr.f32.gmra.mrb[0].mxu0 %v2900
    %v2980 = vpop.f32.mrb[0].mxu0
    %v2981 = vadd.f32 0.0, %v2980
    %v2982 = vpop.f32.mrb[0].mxu0
    %2983 = vdwg.mxu0
    %2984 = vst.msk [vmem:[#allocation2 + $0x11] sm:$0xff] %vm143, %v2971
    %2985 = vst.msk [vmem:[#allocation2 + $0x19] sm:$0xff] %vm143, %v2976
    %2986 = vst.msk [vmem:[#allocation2 + $0x21] sm:$0x1] %vm698, %v2981
    %2987 = vrot.lane.b32.xlu0 %v2748, 112
    %v2988 = vpop.permute.xlu0 %2987
    %2989 = vrot.lane.b32.xlu0 %v2750, 112
    %v2990 = vpop.permute.xlu0 %2989
    %2991 = vrot.lane.b32.xlu0 %v2749, 112
    %v2992 = vpop.permute.xlu0 %2991
    %2993 = vrot.lane.b32.xlu0 %v2748, 80
    %v2994 = vpop.permute.xlu0 %2993
    %2995 = vrot.lane.b32.xlu0 %v2750, 80
    %v2996 = vpop.permute.xlu0 %2995
    %2997 = vrot.lane.b32.xlu0 %v2749, 80
    %v2998 = vpop.permute.xlu0 %2997
    %v2999 = vsel %vm143, %v2988, 0
    %v3001 = vsel %vm143, %v2990, 0
    %v3003 = vsel %vm143, %v2992, 0
    %v3005 = vsel %vm143, %v2994, 0
    %v3007 = vsel %vm143, %v2996, 0
    %v3009 = vsel %vm143, %v2998, 0
    %3011 = vmatprep.subr.mxu0 0.0
    %3012 = vmatpush1.xpose.msra.mxu0 %v3005
    %3013 = vmatprep.subr.mxu0 0.0
    %3014 = vmatpush1.xpose.msra.mxu0 %v3007
    %3015 = vmatprep.subr.mxu0 0.0
    %3016 = vmatpush1.xpose.msra.mxu0 %v3009
    %3017 = vmatprep.subr.mxu0 0.0
    %3018 = vmatpush1.xpose.msra.mxu0 0.0
    %3019 = vmatprep.subr.mxu0 0.0
    %3020 = vmatpush1.xpose.msra.mxu0 0.0
    %3021 = vmatprep.subr.mxu0 0.0
    %3022 = vmatpush1.xpose.msra.mxu0 0.0
    %3023 = vmatprep.subr.mxu0 0.0
    %3024 = vmatpush1.xpose.msra.mxu0 0.0
    %3025 = vmatprep.subr.mxu0 0.0
    %3026 = vmatpush1.xpose.msra.mxu0 0.0
    %3027 = vmatprep.subr.mxu0 0.0
    %3028 = vmatpush1.xpose.msra.mxu0 0.0
    %3029 = vmatprep.subr.mxu0 0.0
    %3030 = vmatpush1.xpose.msra.mxu0 0.0
    %3031 = vmatprep.subr.mxu0 0.0
    %3032 = vmatpush1.xpose.msra.mxu0 0.0
    %3033 = vmatprep.subr.mxu0 0.0
    %3034 = vmatpush1.xpose.msra.mxu0 0.0
    %3035 = vmatprep.subr.mxu0 0.0
    %3036 = vmatpush1.xpose.msra.mxu0 0.0
    %3037 = vmatprep.subr.mxu0 0.0
    %3038 = vmatpush1.xpose.msra.mxu0 0.0
    %3039 = vmatprep.subr.mxu0 0.0
    %3040 = vmatpush1.xpose.msra.mxu0 0.0
    %3041 = vmatprep.subr.mxu0 0.0
    %3042 = vmatpush1.xpose.msra.mxu0 0.0
    %3043 = vmatprep.subr.mxu0 0.0
    %3044 = vmatpush1.xpose.msra.mxu0 0.0
    %3045 = vmatprep.subr.mxu0 0.0
    %3046 = vmatpush1.xpose.msra.mxu0 0.0
    %3047 = vmatprep.subr.mxu0 0.0
    %3048 = vmatpush1.xpose.msra.mxu0 0.0
    %3049 = vmatprep.subr.mxu0 0.0
    %3050 = vmatpush1.xpose.msra.mxu0 0.0
    %3051 = vmatprep.subr.mxu0 0.0
    %3052 = vmatpush1.xpose.msra.mxu0 0.0
    %3053 = vmatprep.subr.mxu0 0.0
    %3054 = vmatpush1.xpose.msra.mxu0 0.0
    %3055 = vmatprep.subr.mxu0 0.0
    %3056 = vmatpush1.xpose.msra.mxu0 0.0
    %3057 = vmatprep.subr.mxu0 0.0
    %3058 = vmatpush1.xpose.msra.mxu0 0.0
    %3059 = vmatprep.subr.mxu0 0.0
    %3060 = vmatpush1.xpose.msra.mxu0 0.0
    %3061 = vmatprep.subr.mxu0 0.0
    %3062 = vmatpush1.xpose.msra.mxu0 0.0
    %3063 = vmatprep.subr.mxu0 0.0
    %3064 = vmatpush1.xpose.msra.mxu0 0.0
    %3065 = vmatprep.subr.mxu0 0.0
    %3066 = vmatpush1.xpose.msra.mxu0 0.0
    %3067 = vmatprep.subr.mxu0 0.0
    %3068 = vmatpush1.xpose.msra.mxu0 0.0
    %3069 = vmatprep.subr.mxu0 0.0
    %3070 = vmatpush1.xpose.msra.mxu0 0.0
    %3071 = vmatprep.subr.mxu0 0.0
    %3072 = vmatpush1.xpose.msra.mxu0 0.0
    %3073 = vmatprep.subr.mxu0 0.0
    %3074 = vmatpush1.xpose.msra.mxu0 0.0
    %3075 = vmatprep.mubr.f32.mxu0 0.0
    %3076 = vmatmul.mubr.f32.gmra.mrb[0].mxu0 %v2999
    %v3077 = vpop.f32.mrb[0].mxu0
    %v3078 = vadd.f32 0.0, %v3077
    %v3079 = vpop.f32.mrb[0].mxu0
    %3080 = vmatprep.mubr.f32.mxu0 0.0
    %3081 = vmatmul.mubr.f32.gmra.mrb[0].mxu0 %v3001
    %v3082 = vpop.f32.mrb[0].mxu0
    %v3083 = vadd.f32 0.0, %v3082
    %v3084 = vpop.f32.mrb[0].mxu0
    %3085 = vmatprep.mubr.f32.mxu0 0.0
    %3086 = vmatmul.mubr.f32.gmra.mrb[0].mxu0 %v3003
    %v3087 = vpop.f32.mrb[0].mxu0
    %v3088 = vadd.f32 0.0, %v3087
    %v3089 = vpop.f32.mrb[0].mxu0
    %3090 = vdwg.mxu0
    %v3091 = vmul.f32 %v3078, 0.25
    %v3092 = vmul.f32 %v3083, 0.25
    %v3093 = vmul.f32 %v3088, 0.25
    %v3094 = vsel %vm561, %v3091, -inf
    %3095 = vmax.xlane.f32.xlu0 %v3094
    %v3096 = vpop.xlane.xlu0 %3095
    %v3097 = vsel %vm561, %v3092, -inf
    %3098 = vmax.xlane.f32.xlu0 %v3097
    %v3099 = vpop.xlane.xlu0 %3098
    %v3100 = vsel %vm568, %v3093, -inf
    %3101 = vmax.xlane.f32.xlu0 %v3100
    %v3102 = vpop.xlane.xlu0 %3101
    %v3103 = vsub.f32 %v3091, %v3096
    %v3104 = vsub.f32 %v3092, %v3099
    %v3105 = vsub.f32 %v3093, %v3102
    %v3106 = vmul.f32 %v3103, 1.442695
    %v3107 = vpow.pop %v3106
    %v3108 = vmul.f32 %v3104, 1.442695
    %v3109 = vpow.pop %v3108
    %v3110 = vmul.f32 %v3105, 1.442695
    %v3111 = vpow.pop %v3110
    %v3112 = vsel %vm561, %v3107, 0.0
    %3113 = vadd.xlane.f32.xlu0 %v3112
    %v3114 = vpop.xlane.xlu0 %3113
    %v3115 = vsel %vm561, %v3109, 0.0
    %3116 = vadd.xlane.f32.xlu0 %v3115
    %v3117 = vpop.xlane.xlu0 %3116
    %v3118 = vsel %vm568, %v3111, 0.0
    %3119 = vadd.xlane.f32.xlu0 %v3118
    %v3120 = vpop.xlane.xlu0 %3119
    %v3121 = vrcp.pop %v3114
    %v3122 = vrcp.pop %v3117
    %v3123 = vrcp.pop %v3120
    %v3124 = vmul.f32 %v3107, %v3121
    %v3125 = vmul.f32 %v3109, %v3122
    %v3126 = vmul.f32 %v3111, %v3123
    %3127 = vrot.lane.b32.xlu0 %v2748, 48
    %v3128 = vpop.permute.xlu0 %3127
    %3129 = vrot.lane.b32.xlu0 %v2750, 48
    %v3130 = vpop.permute.xlu0 %3129
    %3131 = vrot.lane.b32.xlu0 %v2749, 48
    %v3132 = vpop.permute.xlu0 %3131
    %v3136 = vsel %vm561, %v3124, 0
    %v3139 = vsel %vm561, %v3125, 0
    %v3142 = vsel %vm561, %v3126, 0
    %v3144 = vsel %vm613, %v3132, 0
    %3146 = vmatprep.subr.mxu0 0.0
    %3147 = vmatpush1.msra.mxu0 %v3128
    %3148 = vmatprep.subr.mxu0 0.0
    %3149 = vmatpush1.msra.mxu0 %v3130
    %3150 = vmatprep.subr.mxu0 0.0
    %3151 = vmatpush1.msra.mxu0 %v3144
    %3152 = vmatprep.subr.mxu0 0.0
    %3153 = vmatpush1.msra.mxu0 0.0
    %3154 = vmatprep.subr.mxu0 0.0
    %3155 = vmatpush1.msra.mxu0 0.0
    %3156 = vmatprep.subr.mxu0 0.0
    %3157 = vmatpush1.msra.mxu0 0.0
    %3158 = vmatprep.subr.mxu0 0.0
    %3159 = vmatpush1.msra.mxu0 0.0
    %3160 = vmatprep.subr.mxu0 0.0
    %3161 = vmatpush1.msra.mxu0 0.0
    %3162 = vmatprep.subr.mxu0 0.0
    %3163 = vmatpush1.msra.mxu0 0.0
    %3164 = vmatprep.subr.mxu0 0.0
    %3165 = vmatpush1.msra.mxu0 0.0
    %3166 = vmatprep.subr.mxu0 0.0
    %3167 = vmatpush1.msra.mxu0 0.0
    %3168 = vmatprep.subr.mxu0 0.0
    %3169 = vmatpush1.msra.mxu0 0.0
    %3170 = vmatprep.subr.mxu0 0.0
    %3171 = vmatpush1.msra.mxu0 0.0
    %3172 = vmatprep.subr.mxu0 0.0
    %3173 = vmatpush1.msra.mxu0 0.0
    %3174 = vmatprep.subr.mxu0 0.0
    %3175 = vmatpush1.msra.mxu0 0.0
    %3176 = vmatprep.subr.mxu0 0.0
    %3177 = vmatpush1.msra.mxu0 0.0
    %3178 = vmatprep.subr.mxu0 0.0
    %3179 = vmatpush1.msra.mxu0 0.0
    %3180 = vmatprep.subr.mxu0 0.0
    %3181 = vmatpush1.msra.mxu0 0.0
    %3182 = vmatprep.subr.mxu0 0.0
    %3183 = vmatpush1.msra.mxu0 0.0
    %3184 = vmatprep.subr.mxu0 0.0
    %3185 = vmatpush1.msra.mxu0 0.0
    %3186 = vmatprep.subr.mxu0 0.0
    %3187 = vmatpush1.msra.mxu0 0.0
    %3188 = vmatprep.subr.mxu0 0.0
    %3189 = vmatpush1.msra.mxu0 0.0
    %3190 = vmatprep.subr.mxu0 0.0
    %3191 = vmatpush1.msra.mxu0 0.0
    %3192 = vmatprep.subr.mxu0 0.0
    %3193 = vmatpush1.msra.mxu0 0.0
    %3194 = vmatprep.subr.mxu0 0.0
    %3195 = vmatpush1.msra.mxu0 0.0
    %3196 = vmatprep.subr.mxu0 0.0
    %3197 = vmatpush1.msra.mxu0 0.0
    %3198 = vmatprep.subr.mxu0 0.0
    %3199 = vmatpush1.msra.mxu0 0.0
    %3200 = vmatprep.subr.mxu0 0.0
    %3201 = vmatpush1.msra.mxu0 0.0
    %3202 = vmatprep.subr.mxu0 0.0
    %3203 = vmatpush1.msra.mxu0 0.0
    %3204 = vmatprep.subr.mxu0 0.0
    %3205 = vmatpush1.msra.mxu0 0.0
    %3206 = vmatprep.subr.mxu0 0.0
    %3207 = vmatpush1.msra.mxu0 0.0
    %3208 = vmatprep.subr.mxu0 0.0
    %3209 = vmatpush1.msra.mxu0 0.0
    %3210 = vmatprep.mubr.f32.mxu0 0.0
    %3211 = vmatmul.mubr.f32.gmra.mrb[0].mxu0 %v3136
    %v3212 = vpop.f32.mrb[0].mxu0
    %v3213 = vadd.f32 0.0, %v3212
    %v3214 = vpop.f32.mrb[0].mxu0
    %3215 = vmatprep.mubr.f32.mxu0 0.0
    %3216 = vmatmul.mubr.f32.gmra.mrb[0].mxu0 %v3139
    %v3217 = vpop.f32.mrb[0].mxu0
    %v3218 = vadd.f32 0.0, %v3217
    %v3219 = vpop.f32.mrb[0].mxu0
    %3220 = vmatprep.mubr.f32.mxu0 0.0
    %3221 = vmatmul.mubr.f32.gmra.mrb[0].mxu0 %v3142
    %v3222 = vpop.f32.mrb[0].mxu0
    %v3223 = vadd.f32 0.0, %v3222
    %v3224 = vpop.f32.mrb[0].mxu0
    %3225 = vdwg.mxu0
    %3229 = vrot.lane.b32.xlu0 %v3213, 16
    %v3230 = vpop.permute.xlu0 %3229
    %3231 = vrot.lane.b32.xlu0 %v3218, 16
    %v3232 = vpop.permute.xlu0 %3231
    %3233 = vrot.lane.b32.xlu0 %v3223, 16
    %v3234 = vpop.permute.xlu0 %3233
    %3238 = vst.msk [vmem:[#allocation2 + $0x11] sm:$0xff] %vm951, %v3230
    %3239 = vst.msk [vmem:[#allocation2 + $0x19] sm:$0xff] %vm951, %v3232
    %3240 = vst.msk [vmem:[#allocation2 + $0x21] sm:$0x1] %vm954, %v3234
    %v3241 = vld [vmem:[#allocation2] sm:$0xff]
    %v3242 = vld [vmem:[#allocation2 + $0x8] sm:$0xff]
    %v3243 = vld [vmem:[#allocation2 + $0x10] sm:$0xff]
    %v3244 = vld [vmem:[#allocation2 + $0x18] sm:$0xff]
    %v3245 = vld [vmem:[#allocation2 + $0x20] sm:$0x3]
    %v3246 = vld [vmem:[%s39] sm:$0xff]
    %v3247 = vld [vmem:[%s39 + $0x8] sm:$0xff]
    %v3248 = vld [vmem:[%s39 + $0x10] sm:$0xff]
    %v3249 = vld [vmem:[%s39 + $0x18] sm:$0xff]
    %v3250 = vld [vmem:[%s41] sm:$0x1]
    %v3252 = vlaneseq
    %v3253 = vshrl.u32 %v3252, 7
    %v3254 = vsub.s32 0, %v3253
    %v3255 = vrot.slane %v3250, %v3254
    %v3258 = vsel %vm251, %v3241, 0
    %v3261 = vsel %vm251, %v3242, 0
    %v3264 = vsel %vm251, %v3243, 0
    %v3267 = vsel %vm251, %v3244, 0
    %v3270 = vsel %vm251, %v3245, 0
    %3272 = vmatprep.subr.mxu0 0.0
    %3273 = vmatpush1.msra.mxu0 %v3246
    %3274 = vmatprep.subr.mxu0 0.0
    %3275 = vmatpush1.msra.mxu0 %v3247
    %3276 = vmatprep.subr.mxu0 0.0
    %3277 = vmatpush1.msra.mxu0 %v3248
    %3278 = vmatprep.subr.mxu0 0.0
    %3279 = vmatpush1.msra.mxu0 %v3249
    %3280 = vmatprep.subr.mxu0 0.0
    %3281 = vmatpush1.msra.mxu0 0.0
    %3282 = vmatprep.subr.mxu0 0.0
    %3283 = vmatpush1.msra.mxu0 0.0
    %3284 = vmatprep.subr.mxu0 0.0
    %3285 = vmatpush1.msra.mxu0 0.0
    %3286 = vmatprep.subr.mxu0 0.0
    %3287 = vmatpush1.msra.mxu0 0.0
    %3288 = vmatprep.subr.mxu0 0.0
    %3289 = vmatpush1.msra.mxu0 0.0
    %3290 = vmatprep.subr.mxu0 0.0
    %3291 = vmatpush1.msra.mxu0 0.0
    %3292 = vmatprep.subr.mxu0 0.0
    %3293 = vmatpush1.msra.mxu0 0.0
    %3294 = vmatprep.subr.mxu0 0.0
    %3295 = vmatpush1.msra.mxu0 0.0
    %3296 = vmatprep.subr.mxu0 0.0
    %3297 = vmatpush1.msra.mxu0 0.0
    %3298 = vmatprep.subr.mxu0 0.0
    %3299 = vmatpush1.msra.mxu0 0.0
    %3300 = vmatprep.subr.mxu0 0.0
    %3301 = vmatpush1.msra.mxu0 0.0
    %3302 = vmatprep.subr.mxu0 0.0
    %3303 = vmatpush1.msra.mxu0 0.0
    %3304 = vmatprep.subr.mxu0 0.0
    %3305 = vmatpush1.msra.mxu0 0.0
    %3306 = vmatprep.subr.mxu0 0.0
    %3307 = vmatpush1.msra.mxu0 0.0
    %3308 = vmatprep.subr.mxu0 0.0
    %3309 = vmatpush1.msra.mxu0 0.0
    %3310 = vmatprep.subr.mxu0 0.0
    %3311 = vmatpush1.msra.mxu0 0.0
    %3312 = vmatprep.subr.mxu0 0.0
    %3313 = vmatpush1.msra.mxu0 0.0
    %3314 = vmatprep.subr.mxu0 0.0
    %3315 = vmatpush1.msra.mxu0 0.0
    %3316 = vmatprep.subr.mxu0 0.0
    %3317 = vmatpush1.msra.mxu0 0.0
    %3318 = vmatprep.subr.mxu0 0.0
    %3319 = vmatpush1.msra.mxu0 0.0
    %3320 = vmatprep.subr.mxu0 0.0
    %3321 = vmatpush1.msra.mxu0 0.0
    %3322 = vmatprep.subr.mxu0 0.0
    %3323 = vmatpush1.msra.mxu0 0.0
    %3324 = vmatprep.subr.mxu0 0.0
    %3325 = vmatpush1.msra.mxu0 0.0
    %3326 = vmatprep.subr.mxu0 0.0
    %3327 = vmatpush1.msra.mxu0 0.0
    %3328 = vmatprep.subr.mxu0 0.0
    %3329 = vmatpush1.msra.mxu0 0.0
    %3330 = vmatprep.subr.mxu0 0.0
    %3331 = vmatpush1.msra.mxu0 0.0
    %3332 = vmatprep.subr.mxu0 0.0
    %3333 = vmatpush1.msra.mxu0 0.0
    %3334 = vmatprep.subr.mxu0 0.0
    %3335 = vmatpush1.msra.mxu0 0.0
    %3336 = vmatprep.mubr.f32.mxu0 0.0
    %3337 = vmatmul.mubr.f32.gmra.mrb[0].mxu0 %v3258
    %v3338 = vpop.f32.mrb[0].mxu0
    %v3339 = vadd.f32 %v3255, %v3338
    %v3340 = vpop.f32.mrb[0].mxu0
    %3341 = vmatprep.mubr.f32.mxu0 0.0
    %3342 = vmatmul.mubr.f32.gmra.mrb[0].mxu0 %v3261
    %v3343 = vpop.f32.mrb[0].mxu0
    %v3344 = vadd.f32 %v3255, %v3343
    %v3345 = vpop.f32.mrb[0].mxu0
    %3346 = vmatprep.mubr.f32.mxu0 0.0
    %3347 = vmatmul.mubr.f32.gmra.mrb[0].mxu0 %v3264
    %v3348 = vpop.f32.mrb[0].mxu0
    %v3349 = vadd.f32 %v3255, %v3348
    %v3350 = vpop.f32.mrb[0].mxu0
    %3351 = vmatprep.mubr.f32.mxu0 0.0
    %3352 = vmatmul.mubr.f32.gmra.mrb[0].mxu0 %v3267
    %v3353 = vpop.f32.mrb[0].mxu0
    %v3354 = vadd.f32 %v3255, %v3353
    %v3355 = vpop.f32.mrb[0].mxu0
    %3356 = vmatprep.mubr.f32.mxu0 0.0
    %3357 = vmatmul.mubr.f32.gmra.mrb[0].mxu0 %v3270
    %v3358 = vpop.f32.mrb[0].mxu0
    %v3359 = vadd.f32 %v3255, %v3358
    %v3360 = vpop.f32.mrb[0].mxu0
    %3361 = vdwg.mxu0
    %v3362 = vadd.f32 %v2041, %v3339
    %v3363 = vadd.f32 %v2042, %v3344
    %v3364 = vadd.f32 %v2043, %v3349
    %v3365 = vadd.f32 %v2044, %v3354
    %v3366 = vadd.f32 %v2045, %v3359
    %v3367 = vld [vmem:[%s43] sm:$0x1]
    %v3368 = vld [vmem:[%s45] sm:$0x1]
    %v3369 = vsel %vm251, %v3362, 0.0
    %3370 = vadd.xlane.f32.xlu0 %v3369
    %v3371 = vpop.xlane.xlu0 %3370
    %v3372 = vsel %vm251, %v3363, 0.0
    %3373 = vadd.xlane.f32.xlu0 %v3372
    %v3374 = vpop.xlane.xlu0 %3373
    %v3375 = vsel %vm251, %v3364, 0.0
    %3376 = vadd.xlane.f32.xlu0 %v3375
    %v3377 = vpop.xlane.xlu0 %3376
    %v3378 = vsel %vm251, %v3365, 0.0
    %3379 = vadd.xlane.f32.xlu0 %v3378
    %v3380 = vpop.xlane.xlu0 %3379
    %v3381 = vsel %vm264, %v3366, 0.0
    %3382 = vadd.xlane.f32.xlu0 %v3381
    %v3383 = vpop.xlane.xlu0 %3382
    %v3384 = vmul.f32 %v3371, %v268
    %v3385 = vmul.f32 %v3374, %v268
    %v3386 = vmul.f32 %v3377, %v268
    %v3387 = vmul.f32 %v3380, %v268
    %v3388 = vmul.f32 %v3383, %v268
    %v3389 = vsub.f32 %v3362, %v3384
    %v3390 = vsub.f32 %v3363, %v3385
    %v3391 = vsub.f32 %v3364, %v3386
    %v3392 = vsub.f32 %v3365, %v3387
    %v3393 = vsub.f32 %v3366, %v3388
    %v3394 = vmul.f32 %v3389, %v3389
    %v3395 = vmul.f32 %v3390, %v3390
    %v3396 = vmul.f32 %v3391, %v3391
    %v3397 = vmul.f32 %v3392, %v3392
    %v3398 = vmul.f32 %v3393, %v3393
    %v3399 = vsel %vm251, %v3394, 0.0
    %3400 = vadd.xlane.f32.xlu0 %v3399
    %v3401 = vpop.xlane.xlu0 %3400
    %v3402 = vsel %vm251, %v3395, 0.0
    %3403 = vadd.xlane.f32.xlu0 %v3402
    %v3404 = vpop.xlane.xlu0 %3403
    %v3405 = vsel %vm251, %v3396, 0.0
    %3406 = vadd.xlane.f32.xlu0 %v3405
    %v3407 = vpop.xlane.xlu0 %3406
    %v3408 = vsel %vm251, %v3397, 0.0
    %3409 = vadd.xlane.f32.xlu0 %v3408
    %v3410 = vpop.xlane.xlu0 %3409
    %v3411 = vsel %vm264, %v3398, 0.0
    %3412 = vadd.xlane.f32.xlu0 %v3411
    %v3413 = vpop.xlane.xlu0 %3412
    %v3414 = vmul.f32 %v3401, %v268
    %v3415 = vmul.f32 %v3404, %v268
    %v3416 = vmul.f32 %v3407, %v268
    %v3417 = vmul.f32 %v3410, %v268
    %v3418 = vmul.f32 %v3413, %v268
    %v3419 = vadd.f32 %v3414, 1e-06
    %v3420 = vadd.f32 %v3415, 1e-06
    %v3421 = vadd.f32 %v3416, 1e-06
    %v3422 = vadd.f32 %v3417, 1e-06
    %v3423 = vadd.f32 %v3418, 1e-06
    %v3424 = vrsqrt.pop %v3419
    %v3425 = vrsqrt.pop %v3420
    %v3426 = vrsqrt.pop %v3421
    %v3427 = vrsqrt.pop %v3422
    %v3428 = vrsqrt.pop %v3423
    %v3429 = vmul.f32 %v3389, %v3424
    %v3430 = vmul.f32 %v3390, %v3425
    %v3431 = vmul.f32 %v3391, %v3426
    %v3432 = vmul.f32 %v3392, %v3427
    %v3433 = vmul.f32 %v3393, %v3428
    %v3435 = vlaneseq
    %v3436 = vshrl.u32 %v3435, 7
    %v3437 = vsub.s32 0, %v3436
    %v3438 = vrot.slane %v3367, %v3437
    %v3440 = vmul.f32 %v3429, %v3438
    %v3441 = vmul.f32 %v3430, %v3438
    %v3442 = vmul.f32 %v3431, %v3438
    %v3443 = vmul.f32 %v3432, %v3438
    %v3444 = vmul.f32 %v3433, %v3438
    %v3446 = vlaneseq
    %v3447 = vshrl.u32 %v3446, 7
    %v3448 = vsub.s32 0, %v3447
    %v3449 = vrot.slane %v3368, %v3448
    %v3451 = vadd.f32 %v3440, %v3449
    %v3452 = vadd.f32 %v3441, %v3449
    %v3453 = vadd.f32 %v3442, %v3449
    %v3454 = vadd.f32 %v3443, %v3449
    %v3455 = vadd.f32 %v3444, %v3449
    %v3456 = vld [vmem:[%s47] sm:$0xff]
    %v3457 = vld [vmem:[%s47 + $0x8] sm:$0xff]
    %v3458 = vld [vmem:[%s47 + $0x10] sm:$0xff]
    %v3459 = vld [vmem:[%s47 + $0x18] sm:$0xff]
    %v3460 = vld [vmem:[%s49] sm:$0x1]
    %v3462 = vlaneseq
    %v3463 = vshrl.u32 %v3462, 7
    %v3464 = vsub.s32 0, %v3463
    %v3465 = vrot.slane %v3460, %v3464
    %v3468 = vsel %vm251, %v3451, 0
    %v3471 = vsel %vm251, %v3452, 0
    %v3474 = vsel %vm251, %v3453, 0
    %v3477 = vsel %vm251, %v3454, 0
    %v3480 = vsel %vm251, %v3455, 0
    %3482 = vmatprep.subr.mxu0 0.0
    %3483 = vmatpush1.msra.mxu0 %v3456
    %3484 = vmatprep.subr.mxu0 0.0
    %3485 = vmatpush1.msra.mxu0 %v3457
    %3486 = vmatprep.subr.mxu0 0.0
    %3487 = vmatpush1.msra.mxu0 %v3458
    %3488 = vmatprep.subr.mxu0 0.0
    %3489 = vmatpush1.msra.mxu0 %v3459
    %3490 = vmatprep.subr.mxu0 0.0
    %3491 = vmatpush1.msra.mxu0 0.0
    %3492 = vmatprep.subr.mxu0 0.0
    %3493 = vmatpush1.msra.mxu0 0.0
    %3494 = vmatprep.subr.mxu0 0.0
    %3495 = vmatpush1.msra.mxu0 0.0
    %3496 = vmatprep.subr.mxu0 0.0
    %3497 = vmatpush1.msra.mxu0 0.0
    %3498 = vmatprep.subr.mxu0 0.0
    %3499 = vmatpush1.msra.mxu0 0.0
    %3500 = vmatprep.subr.mxu0 0.0
    %3501 = vmatpush1.msra.mxu0 0.0
    %3502 = vmatprep.subr.mxu0 0.0
    %3503 = vmatpush1.msra.mxu0 0.0
    %3504 = vmatprep.subr.mxu0 0.0
    %3505 = vmatpush1.msra.mxu0 0.0
    %3506 = vmatprep.subr.mxu0 0.0
    %3507 = vmatpush1.msra.mxu0 0.0
    %3508 = vmatprep.subr.mxu0 0.0
    %3509 = vmatpush1.msra.mxu0 0.0
    %3510 = vmatprep.subr.mxu0 0.0
    %3511 = vmatpush1.msra.mxu0 0.0
    %3512 = vmatprep.subr.mxu0 0.0
    %3513 = vmatpush1.msra.mxu0 0.0
    %3514 = vmatprep.subr.mxu0 0.0
    %3515 = vmatpush1.msra.mxu0 0.0
    %3516 = vmatprep.subr.mxu0 0.0
    %3517 = vmatpush1.msra.mxu0 0.0
    %3518 = vmatprep.subr.mxu0 0.0
    %3519 = vmatpush1.msra.mxu0 0.0
    %3520 = vmatprep.subr.mxu0 0.0
    %3521 = vmatpush1.msra.mxu0 0.0
    %3522 = vmatprep.subr.mxu0 0.0
    %3523 = vmatpush1.msra.mxu0 0.0
    %3524 = vmatprep.subr.mxu0 0.0
    %3525 = vmatpush1.msra.mxu0 0.0
    %3526 = vmatprep.subr.mxu0 0.0
    %3527 = vmatpush1.msra.mxu0 0.0
    %3528 = vmatprep.subr.mxu0 0.0
    %3529 = vmatpush1.msra.mxu0 0.0
    %3530 = vmatprep.subr.mxu0 0.0
    %3531 = vmatpush1.msra.mxu0 0.0
    %3532 = vmatprep.subr.mxu0 0.0
    %3533 = vmatpush1.msra.mxu0 0.0
    %3534 = vmatprep.subr.mxu0 0.0
    %3535 = vmatpush1.msra.mxu0 0.0
    %3536 = vmatprep.subr.mxu0 0.0
    %3537 = vmatpush1.msra.mxu0 0.0
    %3538 = vmatprep.subr.mxu0 0.0
    %3539 = vmatpush1.msra.mxu0 0.0
    %3540 = vmatprep.subr.mxu0 0.0
    %3541 = vmatpush1.msra.mxu0 0.0
    %3542 = vmatprep.subr.mxu0 0.0
    %3543 = vmatpush1.msra.mxu0 0.0
    %3544 = vmatprep.subr.mxu0 0.0
    %3545 = vmatpush1.msra.mxu0 0.0
    %3546 = vmatprep.mubr.f32.mxu0 0.0
    %3547 = vmatmul.mubr.f32.gmra.mrb[0].mxu0 %v3468
    %v3548 = vpop.f32.mrb[0].mxu0
    %v3549 = vadd.f32 %v3465, %v3548
    %v3550 = vpop.f32.mrb[0].mxu0
    %3551 = vmatprep.mubr.f32.mxu0 0.0
    %3552 = vmatmul.mubr.f32.gmra.mrb[0].mxu0 %v3471
    %v3553 = vpop.f32.mrb[0].mxu0
    %v3554 = vadd.f32 %v3465, %v3553
    %v3555 = vpop.f32.mrb[0].mxu0
    %3556 = vmatprep.mubr.f32.mxu0 0.0
    %3557 = vmatmul.mubr.f32.gmra.mrb[0].mxu0 %v3474
    %v3558 = vpop.f32.mrb[0].mxu0
    %v3559 = vadd.f32 %v3465, %v3558
    %v3560 = vpop.f32.mrb[0].mxu0
    %3561 = vmatprep.mubr.f32.mxu0 0.0
    %3562 = vmatmul.mubr.f32.gmra.mrb[0].mxu0 %v3477
    %v3563 = vpop.f32.mrb[0].mxu0
    %v3564 = vadd.f32 %v3465, %v3563
    %v3565 = vpop.f32.mrb[0].mxu0
    %3566 = vmatprep.mubr.f32.mxu0 0.0
    %3567 = vmatmul.mubr.f32.gmra.mrb[0].mxu0 %v3480
    %v3568 = vpop.f32.mrb[0].mxu0
    %v3569 = vadd.f32 %v3465, %v3568
    %v3570 = vpop.f32.mrb[0].mxu0
    %3571 = vdwg.mxu0
    %v3572 = vmul.f32 %v3549, 0.5
    %v3573 = vmul.f32 %v3554, 0.5
    %v3574 = vmul.f32 %v3559, 0.5
    %v3575 = vmul.f32 %v3564, 0.5
    %v3576 = vmul.f32 %v3569, 0.5
    %v3577 = vmul.f32 %v3549, 0.70710677
    %v3578 = vmul.f32 %v3554, 0.70710677
    %v3579 = vmul.f32 %v3559, 0.70710677
    %v3580 = vmul.f32 %v3564, 0.70710677
    %v3581 = vmul.f32 %v3569, 0.70710677
    %v3582 = vand.u32 2147483647, %v3577
    %v3583 = vand.u32 2147483647, %v3578
    %v3584 = vand.u32 2147483647, %v3579
    %v3585 = vand.u32 2147483647, %v3580
    %v3586 = vand.u32 2147483647, %v3581
    %v3587 = vmul.f32 %v3582, 0.3275911
    %v3588 = vmul.f32 %v3583, 0.3275911
    %v3589 = vmul.f32 %v3584, 0.3275911
    %v3590 = vmul.f32 %v3585, 0.3275911
    %v3591 = vmul.f32 %v3586, 0.3275911
    %v3592 = vadd.f32 %v3587, 1.0
    %v3593 = vadd.f32 %v3588, 1.0
    %v3594 = vadd.f32 %v3589, 1.0
    %v3595 = vadd.f32 %v3590, 1.0
    %v3596 = vadd.f32 %v3591, 1.0
    %v3597 = vrcp.pop %v3592
    %v3598 = vmul.f32 1.0, %v3597
    %v3599 = vrcp.pop %v3593
    %v3600 = vmul.f32 1.0, %v3599
    %v3601 = vrcp.pop %v3594
    %v3602 = vmul.f32 1.0, %v3601
    %v3603 = vrcp.pop %v3595
    %v3604 = vmul.f32 1.0, %v3603
    %v3605 = vrcp.pop %v3596
    %v3606 = vmul.f32 1.0, %v3605
    %v3607 = vmul.f32 %v3598, 1.0614054
    %v3608 = vmul.f32 %v3600, 1.0614054
    %v3609 = vmul.f32 %v3602, 1.0614054
    %v3610 = vmul.f32 %v3604, 1.0614054
    %v3611 = vmul.f32 %v3606, 1.0614054
    %v3612 = vadd.f32 %v3607, -1.4531521
    %v3613 = vadd.f32 %v3608, -1.4531521
    %v3614 = vadd.f32 %v3609, -1.4531521
    %v3615 = vadd.f32 %v3610, -1.4531521
    %v3616 = vadd.f32 %v3611, -1.4531521
    %v3617 = vmul.f32 %v3612, %v3598
    %v3618 = vmul.f32 %v3613, %v3600
    %v3619 = vmul.f32 %v3614, %v3602
    %v3620 = vmul.f32 %v3615, %v3604
    %v3621 = vmul.f32 %v3616, %v3606
    %v3622 = vadd.f32 %v3617, 1.4214138
    %v3623 = vadd.f32 %v3618, 1.4214138
    %v3624 = vadd.f32 %v3619, 1.4214138
    %v3625 = vadd.f32 %v3620, 1.4214138
    %v3626 = vadd.f32 %v3621, 1.4214138
    %v3627 = vmul.f32 %v3622, %v3598
    %v3628 = vmul.f32 %v3623, %v3600
    %v3629 = vmul.f32 %v3624, %v3602
    %v3630 = vmul.f32 %v3625, %v3604
    %v3631 = vmul.f32 %v3626, %v3606
    %v3632 = vadd.f32 %v3627, -0.28449672
    %v3633 = vadd.f32 %v3628, -0.28449672
    %v3634 = vadd.f32 %v3629, -0.28449672
    %v3635 = vadd.f32 %v3630, -0.28449672
    %v3636 = vadd.f32 %v3631, -0.28449672
    %v3637 = vmul.f32 %v3632, %v3598
    %v3638 = vmul.f32 %v3633, %v3600
    %v3639 = vmul.f32 %v3634, %v3602
    %v3640 = vmul.f32 %v3635, %v3604
    %v3641 = vmul.f32 %v3636, %v3606
    %v3642 = vadd.f32 %v3637, 0.2548296
    %v3643 = vadd.f32 %v3638, 0.2548296
    %v3644 = vadd.f32 %v3639, 0.2548296
    %v3645 = vadd.f32 %v3640, 0.2548296
    %v3646 = vadd.f32 %v3641, 0.2548296
    %v3647 = vmul.f32 %v3642, %v3598
    %v3648 = vmul.f32 %v3643, %v3600
    %v3649 = vmul.f32 %v3644, %v3602
    %v3650 = vmul.f32 %v3645, %v3604
    %v3651 = vmul.f32 %v3646, %v3606
    %v3652 = vsub.f32 0.0, %v3582
    %v3653 = vsub.f32 0.0, %v3583
    %v3654 = vsub.f32 0.0, %v3584
    %v3655 = vsub.f32 0.0, %v3585
    %v3656 = vsub.f32 0.0, %v3586
    %v3657 = vmul.f32 %v3652, %v3582
    %v3658 = vmul.f32 %v3653, %v3583
    %v3659 = vmul.f32 %v3654, %v3584
    %v3660 = vmul.f32 %v3655, %v3585
    %v3661 = vmul.f32 %v3656, %v3586
    %v3662 = vmul.f32 %v3657, 1.442695
    %v3663 = vpow.pop %v3662
    %v3664 = vmul.f32 %v3658, 1.442695
    %v3665 = vpow.pop %v3664
    %v3666 = vmul.f32 %v3659, 1.442695
    %v3667 = vpow.pop %v3666
    %v3668 = vmul.f32 %v3660, 1.442695
    %v3669 = vpow.pop %v3668
    %v3670 = vmul.f32 %v3661, 1.442695
    %v3671 = vpow.pop %v3670
    %v3672 = vmul.f32 %v3647, %v3663
    %v3673 = vmul.f32 %v3648, %v3665
    %v3674 = vmul.f32 %v3649, %v3667
    %v3675 = vmul.f32 %v3650, %v3669
    %v3676 = vmul.f32 %v3651, %v3671
    %v3677 = vsub.f32 1.0, %v3672
    %v3678 = vsub.f32 1.0, %v3673
    %v3679 = vsub.f32 1.0, %v3674
    %v3680 = vsub.f32 1.0, %v3675
    %v3681 = vsub.f32 1.0, %v3676
    %vm3682 = vcmp.ge.f32.partialorder %v3577, 0.0
    %vm3683 = vcmp.ge.f32.partialorder %v3578, 0.0
    %vm3684 = vcmp.ge.f32.partialorder %v3579, 0.0
    %vm3685 = vcmp.ge.f32.partialorder %v3580, 0.0
    %vm3686 = vcmp.ge.f32.partialorder %v3581, 0.0
    %v3687 = vsub.f32 0.0, %v3677
    %v3688 = vsub.f32 0.0, %v3678
    %v3689 = vsub.f32 0.0, %v3679
    %v3690 = vsub.f32 0.0, %v3680
    %v3691 = vsub.f32 0.0, %v3681
    %v3692 = vsel %vm3682, %v3677, %v3687
    %v3693 = vsel %vm3683, %v3678, %v3688
    %v3694 = vsel %vm3684, %v3679, %v3689
    %v3695 = vsel %vm3685, %v3680, %v3690
    %v3696 = vsel %vm3686, %v3681, %v3691
    %v3697 = vadd.f32 %v3692, 1.0
    %v3698 = vadd.f32 %v3693, 1.0
    %v3699 = vadd.f32 %v3694, 1.0
    %v3700 = vadd.f32 %v3695, 1.0
    %v3701 = vadd.f32 %v3696, 1.0
    %v3702 = vmul.f32 %v3572, %v3697
    %v3703 = vmul.f32 %v3573, %v3698
    %v3704 = vmul.f32 %v3574, %v3699
    %v3705 = vmul.f32 %v3575, %v3700
    %v3706 = vmul.f32 %v3576, %v3701
    %v3707 = vld [vmem:[%s51] sm:$0xff]
    %v3708 = vld [vmem:[%s51 + $0x8] sm:$0xff]
    %v3709 = vld [vmem:[%s51 + $0x10] sm:$0xff]
    %v3710 = vld [vmem:[%s51 + $0x18] sm:$0xff]
    %v3711 = vld [vmem:[%s51 + $0x20] sm:$0xff]
    %v3712 = vld [vmem:[%s51 + $0x28] sm:$0xff]
    %v3713 = vld [vmem:[%s51 + $0x30] sm:$0xff]
    %v3714 = vld [vmem:[%s51 + $0x38] sm:$0xff]
    %v3715 = vld [vmem:[%s53] sm:$0x1]
    %v3717 = vlaneseq
    %v3718 = vshrl.u32 %v3717, 7
    %v3719 = vsub.s32 0, %v3718
    %v3720 = vrot.slane %v3715, %v3719
    %v3723 = vsel %vm1935, %v3702, 0
    %v3726 = vsel %vm1935, %v3703, 0
    %v3729 = vsel %vm1935, %v3704, 0
    %v3732 = vsel %vm1935, %v3705, 0
    %v3735 = vsel %vm1935, %v3706, 0
    %3737 = vmatprep.subr.mxu0 0.0
    %3738 = vmatpush1.msra.mxu0 %v3707
    %3739 = vmatprep.subr.mxu0 0.0
    %3740 = vmatpush1.msra.mxu0 %v3708
    %3741 = vmatprep.subr.mxu0 0.0
    %3742 = vmatpush1.msra.mxu0 %v3709
    %3743 = vmatprep.subr.mxu0 0.0
    %3744 = vmatpush1.msra.mxu0 %v3710
    %3745 = vmatprep.subr.mxu0 0.0
    %3746 = vmatpush1.msra.mxu0 %v3711
    %3747 = vmatprep.subr.mxu0 0.0
    %3748 = vmatpush1.msra.mxu0 %v3712
    %3749 = vmatprep.subr.mxu0 0.0
    %3750 = vmatpush1.msra.mxu0 %v3713
    %3751 = vmatprep.subr.mxu0 0.0
    %3752 = vmatpush1.msra.mxu0 %v3714
    %3753 = vmatprep.subr.mxu0 0.0
    %3754 = vmatpush1.msra.mxu0 0.0
    %3755 = vmatprep.subr.mxu0 0.0
    %3756 = vmatpush1.msra.mxu0 0.0
    %3757 = vmatprep.subr.mxu0 0.0
    %3758 = vmatpush1.msra.mxu0 0.0
    %3759 = vmatprep.subr.mxu0 0.0
    %3760 = vmatpush1.msra.mxu0 0.0
    %3761 = vmatprep.subr.mxu0 0.0
    %3762 = vmatpush1.msra.mxu0 0.0
    %3763 = vmatprep.subr.mxu0 0.0
    %3764 = vmatpush1.msra.mxu0 0.0
    %3765 = vmatprep.subr.mxu0 0.0
    %3766 = vmatpush1.msra.mxu0 0.0
    %3767 = vmatprep.subr.mxu0 0.0
    %3768 = vmatpush1.msra.mxu0 0.0
    %3769 = vmatprep.subr.mxu0 0.0
    %3770 = vmatpush1.msra.mxu0 0.0
    %3771 = vmatprep.subr.mxu0 0.0
    %3772 = vmatpush1.msra.mxu0 0.0
    %3773 = vmatprep.subr.mxu0 0.0
    %3774 = vmatpush1.msra.mxu0 0.0
    %3775 = vmatprep.subr.mxu0 0.0
    %3776 = vmatpush1.msra.mxu0 0.0
    %3777 = vmatprep.subr.mxu0 0.0
    %3778 = vmatpush1.msra.mxu0 0.0
    %3779 = vmatprep.subr.mxu0 0.0
    %3780 = vmatpush1.msra.mxu0 0.0
    %3781 = vmatprep.subr.mxu0 0.0
    %3782 = vmatpush1.msra.mxu0 0.0
    %3783 = vmatprep.subr.mxu0 0.0
    %3784 = vmatpush1.msra.mxu0 0.0
    %3785 = vmatprep.subr.mxu0 0.0
    %3786 = vmatpush1.msra.mxu0 0.0
    %3787 = vmatprep.subr.mxu0 0.0
    %3788 = vmatpush1.msra.mxu0 0.0
    %3789 = vmatprep.subr.mxu0 0.0
    %3790 = vmatpush1.msra.mxu0 0.0
    %3791 = vmatprep.subr.mxu0 0.0
    %3792 = vmatpush1.msra.mxu0 0.0
    %3793 = vmatprep.subr.mxu0 0.0
    %3794 = vmatpush1.msra.mxu0 0.0
    %3795 = vmatprep.subr.mxu0 0.0
    %3796 = vmatpush1.msra.mxu0 0.0
    %3797 = vmatprep.subr.mxu0 0.0
    %3798 = vmatpush1.msra.mxu0 0.0
    %3799 = vmatprep.subr.mxu0 0.0
    %3800 = vmatpush1.msra.mxu0 0.0
    %3801 = vmatprep.mubr.f32.mxu0 0.0
    %3802 = vmatmul.mubr.f32.gmra.mrb[0].mxu0 %v3723
    %v3803 = vpop.f32.mrb[0].mxu0
    %v3804 = vadd.f32 %v3720, %v3803
    %v3805 = vpop.f32.mrb[0].mxu0
    %3806 = vmatprep.mubr.f32.mxu0 0.0
    %3807 = vmatmul.mubr.f32.gmra.mrb[0].mxu0 %v3726
    %v3808 = vpop.f32.mrb[0].mxu0
    %v3809 = vpop.f32.mrb[0].mxu0
    %3810 = vmatprep.mubr.f32.mxu0 0.0
    %3811 = vmatmul.mubr.f32.gmra.mrb[0].mxu0 %v3729
    %v3812 = vpop.f32.mrb[0].mxu0
    %v3813 = vadd.f32 %v3720, %v3812
    %v3814 = vpop.f32.mrb[0].mxu0
    %3815 = vmatprep.mubr.f32.mxu0 0.0
    %3816 = vmatmul.mubr.f32.gmra.mrb[0].mxu0 %v3732
    %v3817 = vpop.f32.mrb[0].mxu0
    %v3818 = vpop.f32.mrb[0].mxu0
    %3819 = vmatprep.mubr.f32.mxu0 0.0
    %3820 = vmatmul.mubr.f32.gmra.mrb[0].mxu0 %v3735
    %v3821 = vpop.f32.mrb[0].mxu0
    %v3822 = vpop.f32.mrb[0].mxu0
    %3823 = vdwg.mxu0
    %v3824 = vadd.f32 %v3362, %v3804
    %v3825 = vadd.f32 %v3364, %v3813
    %v3826 = vld [vmem:[%s55] sm:$0x1]
    %v3827 = vld [vmem:[%s57] sm:$0x1]
    %vm3828 = vcmask 253952
    %v3829 = vsel %vm3828, %v3824, 0.0
    %3830 = vadd.xlane.f32.xlu0 %v3829
    %v3831 = vpop.xlane.xlu0 %3830
    %v3832 = vmul.f32 %v3831, %v268
    %v3833 = vsub.f32 %v3824, %v3832
    %v3834 = vmul.f32 %v3833, %v3833
    %v3835 = vsel %vm3828, %v3834, 0.0
    %3836 = vadd.xlane.f32.xlu0 %v3835
    %v3837 = vpop.xlane.xlu0 %3836
    %v3838 = vmul.f32 %v3837, %v268
    %v3839 = vadd.f32 %v3838, 1e-06
    %v3840 = vrsqrt.pop %v3839
    %v3841 = vmul.f32 %v3833, %v3840
    %v3842 = vmul.f32 %v3841, %v3826
    %v3843 = vadd.f32 %v3842, %v3827
    %v3844 = vld [vmem:[%s59] sm:$0xff]
    %v3845 = vld [vmem:[%s59 + $0x8] sm:$0xff]
    %v3846 = vld [vmem:[%s59 + $0x10] sm:$0xff]
    %v3847 = vld [vmem:[%s59 + $0x18] sm:$0xff]
    %v3848 = vld [vmem:[%s61] sm:$0x1]
    %v3850 = vsel %vm251, %v3843, 0
    %3852 = vmatprep.subr.mxu0 0.0
    %3853 = vmatpush1.msra.mxu0 %v3844
    %3854 = vmatprep.subr.mxu0 0.0
    %3855 = vmatpush1.msra.mxu0 %v3845
    %3856 = vmatprep.subr.mxu0 0.0
    %3857 = vmatpush1.msra.mxu0 %v3846
    %3858 = vmatprep.subr.mxu0 0.0
    %3859 = vmatpush1.msra.mxu0 %v3847
    %3860 = vmatprep.subr.mxu0 0.0
    %3861 = vmatpush1.msra.mxu0 0.0
    %3862 = vmatprep.subr.mxu0 0.0
    %3863 = vmatpush1.msra.mxu0 0.0
    %3864 = vmatprep.subr.mxu0 0.0
    %3865 = vmatpush1.msra.mxu0 0.0
    %3866 = vmatprep.subr.mxu0 0.0
    %3867 = vmatpush1.msra.mxu0 0.0
    %3868 = vmatprep.subr.mxu0 0.0
    %3869 = vmatpush1.msra.mxu0 0.0
    %3870 = vmatprep.subr.mxu0 0.0
    %3871 = vmatpush1.msra.mxu0 0.0
    %3872 = vmatprep.subr.mxu0 0.0
    %3873 = vmatpush1.msra.mxu0 0.0
    %3874 = vmatprep.subr.mxu0 0.0
    %3875 = vmatpush1.msra.mxu0 0.0
    %3876 = vmatprep.subr.mxu0 0.0
    %3877 = vmatpush1.msra.mxu0 0.0
    %3878 = vmatprep.subr.mxu0 0.0
    %3879 = vmatpush1.msra.mxu0 0.0
    %3880 = vmatprep.subr.mxu0 0.0
    %3881 = vmatpush1.msra.mxu0 0.0
    %3882 = vmatprep.subr.mxu0 0.0
    %3883 = vmatpush1.msra.mxu0 0.0
    %3884 = vmatprep.subr.mxu0 0.0
    %3885 = vmatpush1.msra.mxu0 0.0
    %3886 = vmatprep.subr.mxu0 0.0
    %3887 = vmatpush1.msra.mxu0 0.0
    %3888 = vmatprep.subr.mxu0 0.0
    %3889 = vmatpush1.msra.mxu0 0.0
    %3890 = vmatprep.subr.mxu0 0.0
    %3891 = vmatpush1.msra.mxu0 0.0
    %3892 = vmatprep.subr.mxu0 0.0
    %3893 = vmatpush1.msra.mxu0 0.0
    %3894 = vmatprep.subr.mxu0 0.0
    %3895 = vmatpush1.msra.mxu0 0.0
    %3896 = vmatprep.subr.mxu0 0.0
    %3897 = vmatpush1.msra.mxu0 0.0
    %3898 = vmatprep.subr.mxu0 0.0
    %3899 = vmatpush1.msra.mxu0 0.0
    %3900 = vmatprep.subr.mxu0 0.0
    %3901 = vmatpush1.msra.mxu0 0.0
    %3902 = vmatprep.subr.mxu0 0.0
    %3903 = vmatpush1.msra.mxu0 0.0
    %3904 = vmatprep.subr.mxu0 0.0
    %3905 = vmatpush1.msra.mxu0 0.0
    %3906 = vmatprep.subr.mxu0 0.0
    %3907 = vmatpush1.msra.mxu0 0.0
    %3908 = vmatprep.subr.mxu0 0.0
    %3909 = vmatpush1.msra.mxu0 0.0
    %3910 = vmatprep.subr.mxu0 0.0
    %3911 = vmatpush1.msra.mxu0 0.0
    %3912 = vmatprep.subr.mxu0 0.0
    %3913 = vmatpush1.msra.mxu0 0.0
    %3914 = vmatprep.subr.mxu0 0.0
    %3915 = vmatpush1.msra.mxu0 0.0
    %3916 = vmatprep.mubr.f32.mxu0 0.0
    %3917 = vmatmul.mubr.f32.gmra.mrb[0].mxu0 %v3850
    %v3918 = vpop.f32.mrb[0].mxu0
    %v3919 = vadd.f32 %v3848, %v3918
    %v3920 = vpop.f32.mrb[0].mxu0
    %3921 = vdwg.mxu0
    %vm3922 = vcmask 73728
    %3923 = vst.msk [vmem:[#allocation3] sm:$0x1] %vm3922, %v3919
    %v3924 = vld [vmem:[%s55] sm:$0x1]
    %v3925 = vld [vmem:[%s57] sm:$0x1]
    %vm3926 = vcmask 254977
    %v3927 = vsel %vm3926, %v3825, 0.0
    %3928 = vadd.xlane.f32.xlu0 %v3927
    %v3929 = vpop.xlane.xlu0 %3928
    %v3930 = vmul.f32 %v3929, %v268
    %v3931 = vsub.f32 %v3825, %v3930
    %v3932 = vmul.f32 %v3931, %v3931
    %v3933 = vsel %vm3926, %v3932, 0.0
    %3934 = vadd.xlane.f32.xlu0 %v3933
    %v3935 = vpop.xlane.xlu0 %3934
    %v3936 = vmul.f32 %v3935, %v268
    %v3937 = vadd.f32 %v3936, 1e-06
    %v3938 = vrsqrt.pop %v3937
    %v3939 = vmul.f32 %v3931, %v3938
    %v3941 = vlaneseq
    %v3942 = vshrl.u32 %v3941, 7
    %v3943 = vsub.s32 0, %v3942
    %v3944 = vrot.slane %v3924, %v3943
    %v3946 = vmul.f32 %v3939, %v3944
    %v3948 = vlaneseq
    %v3949 = vshrl.u32 %v3948, 7
    %v3950 = vsub.s32 0, %v3949
    %v3951 = vrot.slane %v3925, %v3950
    %v3953 = vadd.f32 %v3946, %v3951
    %v3954 = vld [vmem:[%s59] sm:$0xff]
    %v3955 = vld [vmem:[%s59 + $0x8] sm:$0xff]
    %v3956 = vld [vmem:[%s59 + $0x10] sm:$0xff]
    %v3957 = vld [vmem:[%s59 + $0x18] sm:$0xff]
    %v3958 = vld [vmem:[%s61] sm:$0x1]
    %v3960 = vrot.slane %v3953, 1
    %v3961 = vsel %vm251, %v3960, 0
    %3963 = vmatprep.subr.mxu0 0.0
    %3964 = vmatpush1.msra.mxu0 %v3954
    %3965 = vmatprep.subr.mxu0 0.0
    %3966 = vmatpush1.msra.mxu0 %v3955
    %3967 = vmatprep.subr.mxu0 0.0
    %3968 = vmatpush1.msra.mxu0 %v3956
    %3969 = vmatprep.subr.mxu0 0.0
    %3970 = vmatpush1.msra.mxu0 %v3957
    %3971 = vmatprep.subr.mxu0 0.0
    %3972 = vmatpush1.msra.mxu0 0.0
    %3973 = vmatprep.subr.mxu0 0.0
    %3974 = vmatpush1.msra.mxu0 0.0
    %3975 = vmatprep.subr.mxu0 0.0
    %3976 = vmatpush1.msra.mxu0 0.0
    %3977 = vmatprep.subr.mxu0 0.0
    %3978 = vmatpush1.msra.mxu0 0.0
    %3979 = vmatprep.subr.mxu0 0.0
    %3980 = vmatpush1.msra.mxu0 0.0
    %3981 = vmatprep.subr.mxu0 0.0
    %3982 = vmatpush1.msra.mxu0 0.0
    %3983 = vmatprep.subr.mxu0 0.0
    %3984 = vmatpush1.msra.mxu0 0.0
    %3985 = vmatprep.subr.mxu0 0.0
    %3986 = vmatpush1.msra.mxu0 0.0
    %3987 = vmatprep.subr.mxu0 0.0
    %3988 = vmatpush1.msra.mxu0 0.0
    %3989 = vmatprep.subr.mxu0 0.0
    %3990 = vmatpush1.msra.mxu0 0.0
    %3991 = vmatprep.subr.mxu0 0.0
    %3992 = vmatpush1.msra.mxu0 0.0
    %3993 = vmatprep.subr.mxu0 0.0
    %3994 = vmatpush1.msra.mxu0 0.0
    %3995 = vmatprep.subr.mxu0 0.0
    %3996 = vmatpush1.msra.mxu0 0.0
    %3997 = vmatprep.subr.mxu0 0.0
    %3998 = vmatpush1.msra.mxu0 0.0
    %3999 = vmatprep.subr.mxu0 0.0
    %4000 = vmatpush1.msra.mxu0 0.0
    %4001 = vmatprep.subr.mxu0 0.0
    %4002 = vmatpush1.msra.mxu0 0.0
    %4003 = vmatprep.subr.mxu0 0.0
    %4004 = vmatpush1.msra.mxu0 0.0
    %4005 = vmatprep.subr.mxu0 0.0
    %4006 = vmatpush1.msra.mxu0 0.0
    %4007 = vmatprep.subr.mxu0 0.0
    %4008 = vmatpush1.msra.mxu0 0.0
    %4009 = vmatprep.subr.mxu0 0.0
    %4010 = vmatpush1.msra.mxu0 0.0
    %4011 = vmatprep.subr.mxu0 0.0
    %4012 = vmatpush1.msra.mxu0 0.0
    %4013 = vmatprep.subr.mxu0 0.0
    %4014 = vmatpush1.msra.mxu0 0.0
    %4015 = vmatprep.subr.mxu0 0.0
    %4016 = vmatpush1.msra.mxu0 0.0
    %4017 = vmatprep.subr.mxu0 0.0
    %4018 = vmatpush1.msra.mxu0 0.0
    %4019 = vmatprep.subr.mxu0 0.0
    %4020 = vmatpush1.msra.mxu0 0.0
    %4021 = vmatprep.subr.mxu0 0.0
    %4022 = vmatpush1.msra.mxu0 0.0
    %4023 = vmatprep.subr.mxu0 0.0
    %4024 = vmatpush1.msra.mxu0 0.0
    %4025 = vmatprep.subr.mxu0 0.0
    %4026 = vmatpush1.msra.mxu0 0.0
    %4027 = vmatprep.mubr.f32.mxu0 0.0
    %4028 = vmatmul.mubr.f32.gmra.mrb[0].mxu0 %v3961
    %v4029 = vpop.f32.mrb[0].mxu0
    %v4030 = vadd.f32 %v3958, %v4029
    %v4031 = vpop.f32.mrb[0].mxu0
    %4032 = vdwg.mxu0
    %4033 = vst.msk [vmem:[#allocation3 + $0x1] sm:$0x1] %vm3922, %v4030
    // Predicated region
    $region126: #{tpu_custom_call.1} parent=1 // pred_check
      _
    $region127: #{tpu_custom_call.1} parent=1 // pred_check_branch
      %4035 = sbr.rel (0) target = $region129
    $region128: #{tpu_custom_call.1} parent=1 // pred_region
      %s4037 = ssub.s32 32, 32
      %4038 = vsyncadd [#allocation4], %s4037
      %s4040 = sshll.u32 [#allocation3], 4
      %s4041 = int_to_ptr.vmem [resolvable:$true] %s4040
      %4043 = dma.vmem_to_hbm [thread:$0]  %s4041, 32, %s63, [#allocation4]
    $region129: #{tpu_custom_call.1} parent=1 // pred_fallthru
      _
    // Predicated region
    $region130: #{tpu_custom_call.1} parent=1 // pred_check
      _
    $region131: #{tpu_custom_call.1} parent=1 // pred_check_branch
      %4045 = sbr.rel (0) target = $region133
    $region132: #{tpu_custom_call.1} parent=1 // pred_region
      %4046 = dma.done [#allocation4], 32
    $region133: #{tpu_custom_call.1} parent=1 // pred_fallthru
      _
    %4047 = vsyncpa [#allocation4], 1

</llo_original>
